<compile_context>
chip_gen: v7x
topology: tpu7x:2x2x1
jax: 0.10.0
libtpu: 0.0.40
codegen_flags: <defaults>
</compile_context>

<pallas_src>
import functools

import jax
import jax.numpy as jnp
from jax.experimental import pallas as pl
from jax.experimental.pallas import tpu as pltpu


# ----------------------------------------------------------------------------
# Pallas kernel: the whole post-parameter-fusion forward pass.
# ----------------------------------------------------------------------------
def ms_lstm_kernel(h0_ref, c0_ref, f01_ref, f12_ref, f1_ref,
                   wg1_ref, wg2_ref, wc1_ref, wc2_ref,
                   gvec_ref, cvec_ref,
                   h1_ref, c1_ref, y1_ref, *, blockdiag):
    R = h0_ref.shape[0]
    H = h1_ref.shape[1]
    Ft = f01_ref.shape[1]
    Fc = f1_ref.shape[1]
    f32 = jnp.float32
    bf16 = jnp.bfloat16
    eps = 1e-5                      # nn.BatchNorm1d default
    inv_r = 1.0 / R

    gvec = gvec_ref[...]            # (6, 4H) f32: rows [b1 | g1 | be1 | b2 | g2 | be2]
    cvec = cvec_ref[...]            # (6, H)  f32: same layout for the C0 MLP

    def sigmoid(z):
        # exact sigmoid via tanh (EUP slot); avoids relying on logistic lowering
        return 0.5 * (jnp.tanh(0.5 * z) + 1.0)

    def bn_relu(pre, bias, gamma, beta):
        # Linear bias + BatchNorm1d (training-mode, biased batch stats) + ReLU,
        # with one-pass sum / sum-of-squares statistics.
        y = pre + bias
        m = jnp.sum(y, axis=0, keepdims=True) * inv_r
        ex2 = jnp.sum(y * y, axis=0, keepdims=True) * inv_r
        y = (y - m) * jax.lax.rsqrt(ex2 - m * m + eps) * gamma + beta
        return jnp.maximum(y, 0.0)

    def mm(a, w):
        return jnp.dot(a, w, preferred_element_type=f32)

    # In-kernel bf16 casts (no separate XLA cast ops / HBM round trips).
    h0b = h0_ref[...].astype(bf16)
    c0b = c0_ref[...].astype(bf16)
    f01b = f01_ref[...].astype(bf16)
    f12b = f12_ref[...].astype(bf16)
    f1b = f1_ref[...].astype(bf16)

    # ---- C0 branch first: mlp_C0(cat(f01, C0)), concat realized as partial matmuls
    zc = mm(f01b, wc1_ref[0:Ft, :]) + mm(c0b, wc1_ref[Ft:Ft + H, :])
    yc = bn_relu(zc, cvec[0:1, :], cvec[1:2, :], cvec[2:3, :])
    c0_hat = bn_relu(mm(yc.astype(bf16), wc2_ref[...]),
                     cvec[3:4, :], cvec[4:5, :], cvec[5:6, :])        # (R, H) f32

    # ---- fused layer-1 of the 4 gate MLPs (I, F, O, C1_tilde): x @ Wg1 where
    #      x = cat(H0, f01, f12, f1) is never materialized — per-input row blocks.
    o1, o2, o3 = H, H + Ft, H + 2 * Ft
    z1 = (mm(h0b, wg1_ref[0:o1, :]) + mm(f01b, wg1_ref[o1:o2, :])
          + mm(f12b, wg1_ref[o2:o3, :]) + mm(f1b, wg1_ref[o3:o3 + Fc, :]))
    # Park the (R, 4H) bf16 layer-1 activations in VMEM scratch (keeps vreg pressure low).
    y1_ref[...] = bn_relu(z1, gvec[0:1, :], gvec[1:2, :], gvec[2:3, :]).astype(bf16)

    if blockdiag:
        # v6e / v7x (256^2 MXU): one wide (R,4H)@(4H,4H) block-diagonal matmul,
        # one fused BN over (R,4H), then lane-aligned 128-wide gate slices.
        y2 = bn_relu(mm(y1_ref[...], wg2_ref[...]),
                     gvec[3:4, :], gvec[4:5, :], gvec[5:6, :])        # (R, 4H) f32
        c1 = (sigmoid(y2[:, H:2 * H]) * c0_hat                        # F * C0_hat
              + sigmoid(y2[:, 0:H]) * jnp.tanh(y2[:, 3 * H:4 * H]))   # + I * C1_tilde
        h1 = sigmoid(y2[:, 2 * H:3 * H]) * jnp.tanh(c1)               # O * tanh(C1)
    else:
        # v5e / v5p / v4 (128^2 MXU): four native 128x128 matmuls, streamed into the
        # combine so at most 2-3 (R,H) f32 temps are ever live. Weight/activation
        # slices are static, lane/sublane-aligned ref views (zero-cost).
        def gate_pre(g):
            lo = g * H
            z = mm(y1_ref[:, lo:lo + H], wg2_ref[lo:lo + H, :])
            return bn_relu(z, gvec[3:4, lo:lo + H], gvec[4:5, lo:lo + H],
                           gvec[5:6, lo:lo + H])

        c1 = sigmoid(gate_pre(1)) * c0_hat                            # F * C0_hat
        c1 = c1 + sigmoid(gate_pre(0)) * jnp.tanh(gate_pre(3))        # + I * C1_tilde
        h1 = sigmoid(gate_pre(2)) * jnp.tanh(c1)                      # O * tanh(C1)

    h1_ref[...] = h1.astype(h1_ref.dtype)
    c1_ref[...] = c1.astype(c1_ref.dtype)


# ----------------------------------------------------------------------------
# Wrapper: fuse/pack parameters (weights only) and call the kernel.
# ----------------------------------------------------------------------------
_GATES = ("I", "F", "O", "C1")          # order fixes the gate slices inside the kernel


def _prefer_blockdiag_layer2():
    # 256^2-MXU chips (v6e, v7x) prefer one wide block-diagonal layer-2 matmul;
    # 128^2-MXU chips (<= v5) map the four per-gate 128x128 matmuls natively.
    try:
        kind = jax.devices()[0].device_kind.lower()
    except Exception:
        return True
    return not any(t in kind for t in ("v2", "v3", "v4", "v5"))


def _block_diag(blocks, dtype):
    h, w = blocks[0].shape
    n = len(blocks)
    out = jnp.zeros((n * h, n * w), dtype)
    for i, b in enumerate(blocks):
        out = out.at[i * h:(i + 1) * h, i * w:(i + 1) * w].set(b.astype(dtype))
    return out


def ms_lstm_cell_forward(H0, C0, f01, f12, f1, params, blockdiag=None):
    R, hidden = H0.shape
    if blockdiag is None:
        blockdiag = _prefer_blockdiag_layer2()
    bf16 = jnp.bfloat16

    # Fuse the four gate MLPs that share input x into single weight slabs.
    wg1 = jnp.concatenate([params[g]["w1"] for g in _GATES], axis=1).astype(bf16)  # (Din, 4H)
    if blockdiag:
        wg2 = _block_diag([params[g]["w2"] for g in _GATES], bf16)                 # (4H, 4H)
    else:
        wg2 = jnp.concatenate([params[g]["w2"] for g in _GATES], axis=0).astype(bf16)  # (4H, H)
    wc1 = params["C0"]["w1"].astype(bf16)                                          # (Ft+H, H)
    wc2 = params["C0"]["w2"].astype(bf16)                                          # (H, H)

    keys = ("b1", "g1", "be1", "b2", "g2", "be2")
    gvec = jnp.stack([jnp.concatenate([params[g][k] for g in _GATES], axis=0)
                      for k in keys], axis=0).astype(jnp.float32)                  # (6, 4H)
    cvec = jnp.stack([params["C0"][k] for k in keys], axis=0).astype(jnp.float32)  # (6, H)

    args = (H0, C0, f01, f12, f1, wg1, wg2, wc1, wc2, gvec, cvec)

    # No grid: a single resident invocation with full-array VMEM refs (no dead
    # double-buffer copies of the weight slabs).  Total VMEM ~1.5 MiB at demo size.
    h1, c1 = pl.pallas_call(
        functools.partial(ms_lstm_kernel, blockdiag=blockdiag),
        out_shape=(jax.ShapeDtypeStruct((R, hidden), jnp.float32),
                   jax.ShapeDtypeStruct((R, hidden), jnp.float32)),
        in_specs=[pl.BlockSpec(memory_space=pltpu.MemorySpace.VMEM) for _ in args],
        out_specs=(pl.BlockSpec(memory_space=pltpu.MemorySpace.VMEM),
                   pl.BlockSpec(memory_space=pltpu.MemorySpace.VMEM)),
        scratch_shapes=[pltpu.VMEM((R, 4 * hidden), bf16)],
    )(*args)
    return h1, c1


# ----------------------------------------------------------------------------
# Pure-JAX f32 reference (same semantics) for a sanity check.
# ----------------------------------------------------------------------------
def ms_lstm_cell_reference(H0, C0, f01, f12, f1, params):
    hi = jax.lax.Precision.HIGHEST
    eps = 1e-5

    def mlp(y, p):
        for l in ("1", "2"):
            y = jnp.dot(y, p["w" + l], precision=hi) + p["b" + l]
            m = jnp.mean(y, axis=0, keepdims=True)
            v = jnp.mean((y - m) ** 2, axis=0, keepdims=True)
            y = (y - m) * jax.lax.rsqrt(v + eps) * p["g" + l] + p["be" + l]
            y = jnp.maximum(y, 0.0)
        return y

    x = jnp.concatenate([H0, f01, f12, f1], axis=-1)
    gate_i = jax.nn.sigmoid(mlp(x, params["I"]))
    gate_f = jax.nn.sigmoid(mlp(x, params["F"]))
    gate_o = jax.nn.sigmoid(mlp(x, params["O"]))
    c0_hat = mlp(jnp.concatenate([f01, C0], axis=-1), params["C0"])
    c1_tilde = jnp.tanh(mlp(x, params["C1"]))
    c1 = gate_f * c0_hat + gate_i * c1_tilde
    h1 = gate_o * jnp.tanh(c1)
    return h1, c1


if __name__ == "__main__":
    # Small shapes consistent with the module: B=2 clouds of N=64 points,
    # content_size=64, motion_size=64, hidden_size=128.
    B, N = 2, 64
    F_CON, F_T, HIDDEN = 64, 64, 128
    R = B * N
    DIN = HIDDEN + F_CON + 2 * F_T
    DC = HIDDEN + F_T

    key = jax.random.PRNGKey(0)
    k_h, k_c, k_f01, k_f12, k_f1, k_p = jax.random.split(key, 6)

    H0 = jax.random.normal(k_h, (R, HIDDEN), jnp.float32)
    C0 = jax.random.normal(k_c, (R, HIDDEN), jnp.float32)
    f01 = jax.random.normal(k_f01, (R, F_T), jnp.float32)
    f12 = jax.random.normal(k_f12, (R, F_T), jnp.float32)
    f1 = jax.random.normal(k_f1, (R, F_CON), jnp.float32)

    # Kaiming-style Linear weights (reset() semantics); BN affine params are
    # randomized slightly so every code path is exercised by the check.
    def make_mlp(kk, din, h):
        ks = jax.random.split(kk, 8)
        kaiming = lambda k_, i, o: jax.random.normal(k_, (i, o), jnp.float32) * (2.0 / i) ** 0.5
        small = lambda k_, n: 0.1 * jax.random.normal(k_, (n,), jnp.float32)
        return {
            "w1": kaiming(ks[0], din, h), "b1": small(ks[1], h),
            "g1": 1.0 + small(ks[2], h), "be1": small(ks[3], h),
            "w2": kaiming(ks[4], h, h), "b2": small(ks[5], h),
            "g2": 1.0 + small(ks[6], h), "be2": small(ks[7], h),
        }

    kp = jax.random.split(k_p, 5)
    params = {
        "I":  make_mlp(kp[0], DIN, HIDDEN),
        "F":  make_mlp(kp[1], DIN, HIDDEN),
        "O":  make_mlp(kp[2], DIN, HIDDEN),
        "C1": make_mlp(kp[3], DIN, HIDDEN),
        "C0": make_mlp(kp[4], DC, HIDDEN),
    }

    # blockdiag decided once, at trace time, from the device generation.
    use_bd = _prefer_blockdiag_layer2()
    fwd = jax.jit(functools.partial(ms_lstm_cell_forward, blockdiag=use_bd))

    h1, c1 = fwd(H0, C0, f01, f12, f1, params)
    h1 = jax.block_until_ready(h1)
    c1 = jax.block_until_ready(c1)

    ref_h1, ref_c1 = ms_lstm_cell_reference(H0, C0, f01, f12, f1, params)
    ref_h1 = jax.block_until_ready(ref_h1)
    ref_c1 = jax.block_until_ready(ref_c1)

    assert h1.shape == (R, HIDDEN) and c1.shape == (R, HIDDEN)
    assert bool(jnp.all(jnp.isfinite(h1))) and bool(jnp.all(jnp.isfinite(c1)))
    # bf16 matmul operands vs. an f32 HIGHEST-precision reference.
    assert bool(jnp.allclose(h1, ref_h1, atol=5e-2, rtol=5e-2)), \
        float(jnp.max(jnp.abs(h1 - ref_h1)))
    assert bool(jnp.allclose(c1, ref_c1, atol=5e-2, rtol=5e-2)), \
        float(jnp.max(jnp.abs(c1 - ref_c1)))
    print("KERNEL_OK")
</pallas_src>

<mosaic_0001>
module attributes {stable_mosaic.version = 11 : i64} {
  func.func @ms_lstm_kernel(%arg0: memref<128x128xf32, #tpu.memory_space<vmem>>, %arg1: memref<128x128xf32, #tpu.memory_space<vmem>>, %arg2: memref<128x64xf32, #tpu.memory_space<vmem>>, %arg3: memref<128x64xf32, #tpu.memory_space<vmem>>, %arg4: memref<128x64xf32, #tpu.memory_space<vmem>>, %arg5: memref<320x512xbf16, #tpu.memory_space<vmem>>, %arg6: memref<512x512xbf16, #tpu.memory_space<vmem>>, %arg7: memref<192x128xbf16, #tpu.memory_space<vmem>>, %arg8: memref<128x128xbf16, #tpu.memory_space<vmem>>, %arg9: memref<6x512xf32, #tpu.memory_space<vmem>>, %arg10: memref<6x128xf32, #tpu.memory_space<vmem>>, %arg11: memref<128x128xf32, #tpu.memory_space<vmem>>, %arg12: memref<128x128xf32, #tpu.memory_space<vmem>>, %arg13: memref<128x512xbf16, #tpu.memory_space<vmem>>) attributes {dimension_semantics = [], scalar_prefetch = 0 : i64, scratch_operands = 1 : i64, tpu.core_type = #tpu.core_type<tc>} {
    %c0 = arith.constant 0 : index
    %c0_0 = arith.constant 0 : index
    %0 = vector.load %arg9[%c0, %c0_0] : memref<6x512xf32, #tpu.memory_space<vmem>>, vector<6x512xf32>
    %c0_1 = arith.constant 0 : index
    %c0_2 = arith.constant 0 : index
    %1 = vector.load %arg10[%c0_1, %c0_2] : memref<6x128xf32, #tpu.memory_space<vmem>>, vector<6x128xf32>
    %c0_3 = arith.constant 0 : index
    %c0_4 = arith.constant 0 : index
    %2 = vector.load %arg0[%c0_3, %c0_4] : memref<128x128xf32, #tpu.memory_space<vmem>>, vector<128x128xf32>
    %3 = arith.truncf %2 : vector<128x128xf32> to vector<128x128xbf16>
    %c0_5 = arith.constant 0 : index
    %c0_6 = arith.constant 0 : index
    %4 = vector.load %arg1[%c0_5, %c0_6] : memref<128x128xf32, #tpu.memory_space<vmem>>, vector<128x128xf32>
    %5 = arith.truncf %4 : vector<128x128xf32> to vector<128x128xbf16>
    %c0_7 = arith.constant 0 : index
    %c0_8 = arith.constant 0 : index
    %6 = vector.load %arg2[%c0_7, %c0_8] : memref<128x64xf32, #tpu.memory_space<vmem>>, vector<128x64xf32>
    %7 = arith.truncf %6 : vector<128x64xf32> to vector<128x64xbf16>
    %c0_9 = arith.constant 0 : index
    %c0_10 = arith.constant 0 : index
    %8 = vector.load %arg3[%c0_9, %c0_10] : memref<128x64xf32, #tpu.memory_space<vmem>>, vector<128x64xf32>
    %9 = arith.truncf %8 : vector<128x64xf32> to vector<128x64xbf16>
    %c0_11 = arith.constant 0 : index
    %c0_12 = arith.constant 0 : index
    %10 = vector.load %arg4[%c0_11, %c0_12] : memref<128x64xf32, #tpu.memory_space<vmem>>, vector<128x64xf32>
    %11 = arith.truncf %10 : vector<128x64xf32> to vector<128x64xbf16>
    %c0_13 = arith.constant 0 : index
    %c0_14 = arith.constant 0 : index
    %12 = vector.load %arg7[%c0_13, %c0_14] : memref<192x128xbf16, #tpu.memory_space<vmem>>, vector<64x128xbf16>
    %cst = arith.constant dense<0.000000e+00> : vector<128x128xf32>
    %13 = tpu.matmul %7, %12, %cst {dimension_numbers = #tpu.dot_dimension_numbers<[1], [0], [0], [1], [0, 0, 1, 1], [], []>} : vector<128x64xbf16>, vector<64x128xbf16>, vector<128x128xf32> -> vector<128x128xf32>
    %c64 = arith.constant 64 : index
    %c0_15 = arith.constant 0 : index
    %14 = vector.load %arg7[%c64, %c0_15] : memref<192x128xbf16, #tpu.memory_space<vmem>>, vector<128x128xbf16>
    %cst_16 = arith.constant dense<0.000000e+00> : vector<128x128xf32>
    %15 = tpu.matmul %5, %14, %cst_16 {dimension_numbers = #tpu.dot_dimension_numbers<[1], [0], [0], [1], [0, 0, 1, 1], [], []>} : vector<128x128xbf16>, vector<128x128xbf16>, vector<128x128xf32> -> vector<128x128xf32>
    %16 = arith.addf %13, %15 : vector<128x128xf32>
    %17 = vector.extract_strided_slice %1 {offsets = [0, 0], sizes = [1, 128], strides = [1, 1]} : vector<6x128xf32> to vector<1x128xf32>
    %18 = vector.extract_strided_slice %1 {offsets = [1, 0], sizes = [1, 128], strides = [1, 1]} : vector<6x128xf32> to vector<1x128xf32>
    %19 = vector.extract_strided_slice %1 {offsets = [2, 0], sizes = [1, 128], strides = [1, 1]} : vector<6x128xf32> to vector<1x128xf32>
    %20 = vector.broadcast %17 : vector<1x128xf32> to vector<128x128xf32>
    %21 = arith.addf %16, %20 : vector<128x128xf32>
    %cst_17 = arith.constant dense<0.000000e+00> : vector<128xf32>
    %22 = vector.multi_reduction <add>, %21, %cst_17 [0] : vector<128x128xf32> to vector<128xf32>
    %23 = vector.shape_cast %22 : vector<128xf32> to vector<1x128xf32>
    %cst_18 = arith.constant 7.812500e-03 : f32
    %24 = vector.broadcast %cst_18 : f32 to vector<1x128xf32>
    %25 = arith.mulf %23, %24 : vector<1x128xf32>
    %26 = arith.mulf %21, %21 : vector<128x128xf32>
    %cst_19 = arith.constant dense<0.000000e+00> : vector<128xf32>
    %27 = vector.multi_reduction <add>, %26, %cst_19 [0] : vector<128x128xf32> to vector<128xf32>
    %28 = vector.shape_cast %27 : vector<128xf32> to vector<1x128xf32>
    %cst_20 = arith.constant 7.812500e-03 : f32
    %29 = vector.broadcast %cst_20 : f32 to vector<1x128xf32>
    %30 = arith.mulf %28, %29 : vector<1x128xf32>
    %31 = vector.broadcast %25 : vector<1x128xf32> to vector<128x128xf32>
    %32 = arith.subf %21, %31 : vector<128x128xf32>
    %33 = arith.mulf %25, %25 : vector<1x128xf32>
    %34 = arith.subf %30, %33 : vector<1x128xf32>
    %cst_21 = arith.constant 9.99999974E-6 : f32
    %35 = vector.broadcast %cst_21 : f32 to vector<1x128xf32>
    %36 = arith.addf %34, %35 : vector<1x128xf32>
    %37 = math.rsqrt %36 : vector<1x128xf32>
    %38 = vector.broadcast %37 : vector<1x128xf32> to vector<128x128xf32>
    %39 = arith.mulf %32, %38 : vector<128x128xf32>
    %40 = vector.broadcast %18 : vector<1x128xf32> to vector<128x128xf32>
    %41 = arith.mulf %39, %40 : vector<128x128xf32>
    %42 = vector.broadcast %19 : vector<1x128xf32> to vector<128x128xf32>
    %43 = arith.addf %41, %42 : vector<128x128xf32>
    %cst_22 = arith.constant 0.000000e+00 : f32
    %44 = vector.broadcast %cst_22 : f32 to vector<128x128xf32>
    %45 = arith.maximumf %43, %44 : vector<128x128xf32>
    %46 = arith.truncf %45 : vector<128x128xf32> to vector<128x128xbf16>
    %c0_23 = arith.constant 0 : index
    %c0_24 = arith.constant 0 : index
    %47 = vector.load %arg8[%c0_23, %c0_24] : memref<128x128xbf16, #tpu.memory_space<vmem>>, vector<128x128xbf16>
    %cst_25 = arith.constant dense<0.000000e+00> : vector<128x128xf32>
    %48 = tpu.matmul %46, %47, %cst_25 {dimension_numbers = #tpu.dot_dimension_numbers<[1], [0], [0], [1], [0, 0, 1, 1], [], []>} : vector<128x128xbf16>, vector<128x128xbf16>, vector<128x128xf32> -> vector<128x128xf32>
    %49 = vector.extract_strided_slice %1 {offsets = [3, 0], sizes = [1, 128], strides = [1, 1]} : vector<6x128xf32> to vector<1x128xf32>
    %50 = vector.extract_strided_slice %1 {offsets = [4, 0], sizes = [1, 128], strides = [1, 1]} : vector<6x128xf32> to vector<1x128xf32>
    %51 = vector.extract_strided_slice %1 {offsets = [5, 0], sizes = [1, 128], strides = [1, 1]} : vector<6x128xf32> to vector<1x128xf32>
    %52 = vector.broadcast %49 : vector<1x128xf32> to vector<128x128xf32>
    %53 = arith.addf %48, %52 : vector<128x128xf32>
    %cst_26 = arith.constant dense<0.000000e+00> : vector<128xf32>
    %54 = vector.multi_reduction <add>, %53, %cst_26 [0] : vector<128x128xf32> to vector<128xf32>
    %55 = vector.shape_cast %54 : vector<128xf32> to vector<1x128xf32>
    %cst_27 = arith.constant 7.812500e-03 : f32
    %56 = vector.broadcast %cst_27 : f32 to vector<1x128xf32>
    %57 = arith.mulf %55, %56 : vector<1x128xf32>
    %58 = arith.mulf %53, %53 : vector<128x128xf32>
    %cst_28 = arith.constant dense<0.000000e+00> : vector<128xf32>
    %59 = vector.multi_reduction <add>, %58, %cst_28 [0] : vector<128x128xf32> to vector<128xf32>
    %60 = vector.shape_cast %59 : vector<128xf32> to vector<1x128xf32>
    %cst_29 = arith.constant 7.812500e-03 : f32
    %61 = vector.broadcast %cst_29 : f32 to vector<1x128xf32>
    %62 = arith.mulf %60, %61 : vector<1x128xf32>
    %63 = vector.broadcast %57 : vector<1x128xf32> to vector<128x128xf32>
    %64 = arith.subf %53, %63 : vector<128x128xf32>
    %65 = arith.mulf %57, %57 : vector<1x128xf32>
    %66 = arith.subf %62, %65 : vector<1x128xf32>
    %cst_30 = arith.constant 9.99999974E-6 : f32
    %67 = vector.broadcast %cst_30 : f32 to vector<1x128xf32>
    %68 = arith.addf %66, %67 : vector<1x128xf32>
    %69 = math.rsqrt %68 : vector<1x128xf32>
    %70 = vector.broadcast %69 : vector<1x128xf32> to vector<128x128xf32>
    %71 = arith.mulf %64, %70 : vector<128x128xf32>
    %72 = vector.broadcast %50 : vector<1x128xf32> to vector<128x128xf32>
    %73 = arith.mulf %71, %72 : vector<128x128xf32>
    %74 = vector.broadcast %51 : vector<1x128xf32> to vector<128x128xf32>
    %75 = arith.addf %73, %74 : vector<128x128xf32>
    %cst_31 = arith.constant 0.000000e+00 : f32
    %76 = vector.broadcast %cst_31 : f32 to vector<128x128xf32>
    %77 = arith.maximumf %75, %76 : vector<128x128xf32>
    %c0_32 = arith.constant 0 : index
    %c0_33 = arith.constant 0 : index
    %78 = vector.load %arg5[%c0_32, %c0_33] : memref<320x512xbf16, #tpu.memory_space<vmem>>, vector<128x512xbf16>
    %cst_34 = arith.constant dense<0.000000e+00> : vector<128x512xf32>
    %79 = tpu.matmul %3, %78, %cst_34 {dimension_numbers = #tpu.dot_dimension_numbers<[1], [0], [0], [1], [0, 0, 1, 1], [], []>} : vector<128x128xbf16>, vector<128x512xbf16>, vector<128x512xf32> -> vector<128x512xf32>
    %c128 = arith.constant 128 : index
    %c0_35 = arith.constant 0 : index
    %80 = vector.load %arg5[%c128, %c0_35] : memref<320x512xbf16, #tpu.memory_space<vmem>>, vector<64x512xbf16>
    %cst_36 = arith.constant dense<0.000000e+00> : vector<128x512xf32>
    %81 = tpu.matmul %7, %80, %cst_36 {dimension_numbers = #tpu.dot_dimension_numbers<[1], [0], [0], [1], [0, 0, 1, 1], [], []>} : vector<128x64xbf16>, vector<64x512xbf16>, vector<128x512xf32> -> vector<128x512xf32>
    %82 = arith.addf %79, %81 : vector<128x512xf32>
    %c192 = arith.constant 192 : index
    %c0_37 = arith.constant 0 : index
    %83 = vector.load %arg5[%c192, %c0_37] : memref<320x512xbf16, #tpu.memory_space<vmem>>, vector<64x512xbf16>
    %cst_38 = arith.constant dense<0.000000e+00> : vector<128x512xf32>
    %84 = tpu.matmul %9, %83, %cst_38 {dimension_numbers = #tpu.dot_dimension_numbers<[1], [0], [0], [1], [0, 0, 1, 1], [], []>} : vector<128x64xbf16>, vector<64x512xbf16>, vector<128x512xf32> -> vector<128x512xf32>
    %85 = arith.addf %82, %84 : vector<128x512xf32>
    %c256 = arith.constant 256 : index
    %c0_39 = arith.constant 0 : index
    %86 = vector.load %arg5[%c256, %c0_39] : memref<320x512xbf16, #tpu.memory_space<vmem>>, vector<64x512xbf16>
    %cst_40 = arith.constant dense<0.000000e+00> : vector<128x512xf32>
    %87 = tpu.matmul %11, %86, %cst_40 {dimension_numbers = #tpu.dot_dimension_numbers<[1], [0], [0], [1], [0, 0, 1, 1], [], []>} : vector<128x64xbf16>, vector<64x512xbf16>, vector<128x512xf32> -> vector<128x512xf32>
    %88 = arith.addf %85, %87 : vector<128x512xf32>
    %89 = vector.extract_strided_slice %0 {offsets = [0, 0], sizes = [1, 512], strides = [1, 1]} : vector<6x512xf32> to vector<1x512xf32>
    %90 = vector.extract_strided_slice %0 {offsets = [1, 0], sizes = [1, 512], strides = [1, 1]} : vector<6x512xf32> to vector<1x512xf32>
    %91 = vector.extract_strided_slice %0 {offsets = [2, 0], sizes = [1, 512], strides = [1, 1]} : vector<6x512xf32> to vector<1x512xf32>
    %92 = vector.broadcast %89 : vector<1x512xf32> to vector<128x512xf32>
    %93 = arith.addf %88, %92 : vector<128x512xf32>
    %cst_41 = arith.constant dense<0.000000e+00> : vector<512xf32>
    %94 = vector.multi_reduction <add>, %93, %cst_41 [0] : vector<128x512xf32> to vector<512xf32>
    %95 = vector.shape_cast %94 : vector<512xf32> to vector<1x512xf32>
    %cst_42 = arith.constant 7.812500e-03 : f32
    %96 = vector.broadcast %cst_42 : f32 to vector<1x512xf32>
    %97 = arith.mulf %95, %96 : vector<1x512xf32>
    %98 = arith.mulf %93, %93 : vector<128x512xf32>
    %cst_43 = arith.constant dense<0.000000e+00> : vector<512xf32>
    %99 = vector.multi_reduction <add>, %98, %cst_43 [0] : vector<128x512xf32> to vector<512xf32>
    %100 = vector.shape_cast %99 : vector<512xf32> to vector<1x512xf32>
    %cst_44 = arith.constant 7.812500e-03 : f32
    %101 = vector.broadcast %cst_44 : f32 to vector<1x512xf32>
    %102 = arith.mulf %100, %101 : vector<1x512xf32>
    %103 = vector.broadcast %97 : vector<1x512xf32> to vector<128x512xf32>
    %104 = arith.subf %93, %103 : vector<128x512xf32>
    %105 = arith.mulf %97, %97 : vector<1x512xf32>
    %106 = arith.subf %102, %105 : vector<1x512xf32>
    %cst_45 = arith.constant 9.99999974E-6 : f32
    %107 = vector.broadcast %cst_45 : f32 to vector<1x512xf32>
    %108 = arith.addf %106, %107 : vector<1x512xf32>
    %109 = math.rsqrt %108 : vector<1x512xf32>
    %110 = vector.broadcast %109 : vector<1x512xf32> to vector<128x512xf32>
    %111 = arith.mulf %104, %110 : vector<128x512xf32>
    %112 = vector.broadcast %90 : vector<1x512xf32> to vector<128x512xf32>
    %113 = arith.mulf %111, %112 : vector<128x512xf32>
    %114 = vector.broadcast %91 : vector<1x512xf32> to vector<128x512xf32>
    %115 = arith.addf %113, %114 : vector<128x512xf32>
    %cst_46 = arith.constant 0.000000e+00 : f32
    %116 = vector.broadcast %cst_46 : f32 to vector<128x512xf32>
    %117 = arith.maximumf %115, %116 : vector<128x512xf32>
    %118 = arith.truncf %117 : vector<128x512xf32> to vector<128x512xbf16>
    %c0_47 = arith.constant 0 : index
    %c0_48 = arith.constant 0 : index
    %119 = vector.load %arg13[%c0_47, %c0_48] : memref<128x512xbf16, #tpu.memory_space<vmem>>, vector<128x512xbf16>
    tpu.vector_store %arg13[%c0_47, %c0_48], %118 {strides = array<i32>} : memref<128x512xbf16, #tpu.memory_space<vmem>>, vector<128x512xbf16>,
    %c0_49 = arith.constant 0 : index
    %c0_50 = arith.constant 0 : index
    %120 = vector.load %arg13[%c0_49, %c0_50] : memref<128x512xbf16, #tpu.memory_space<vmem>>, vector<128x512xbf16>
    %c0_51 = arith.constant 0 : index
    %c0_52 = arith.constant 0 : index
    %121 = vector.load %arg6[%c0_51, %c0_52] : memref<512x512xbf16, #tpu.memory_space<vmem>>, vector<512x512xbf16>
    %cst_53 = arith.constant dense<0.000000e+00> : vector<128x512xf32>
    %122 = tpu.matmul %120, %121, %cst_53 {dimension_numbers = #tpu.dot_dimension_numbers<[1], [0], [0], [1], [0, 0, 1, 1], [], []>} : vector<128x512xbf16>, vector<512x512xbf16>, vector<128x512xf32> -> vector<128x512xf32>
    %123 = vector.extract_strided_slice %0 {offsets = [3, 0], sizes = [1, 512], strides = [1, 1]} : vector<6x512xf32> to vector<1x512xf32>
    %124 = vector.extract_strided_slice %0 {offsets = [4, 0], sizes = [1, 512], strides = [1, 1]} : vector<6x512xf32> to vector<1x512xf32>
    %125 = vector.extract_strided_slice %0 {offsets = [5, 0], sizes = [1, 512], strides = [1, 1]} : vector<6x512xf32> to vector<1x512xf32>
    %126 = vector.broadcast %123 : vector<1x512xf32> to vector<128x512xf32>
    %127 = arith.addf %122, %126 : vector<128x512xf32>
    %cst_54 = arith.constant dense<0.000000e+00> : vector<512xf32>
    %128 = vector.multi_reduction <add>, %127, %cst_54 [0] : vector<128x512xf32> to vector<512xf32>
    %129 = vector.shape_cast %128 : vector<512xf32> to vector<1x512xf32>
    %cst_55 = arith.constant 7.812500e-03 : f32
    %130 = vector.broadcast %cst_55 : f32 to vector<1x512xf32>
    %131 = arith.mulf %129, %130 : vector<1x512xf32>
    %132 = arith.mulf %127, %127 : vector<128x512xf32>
    %cst_56 = arith.constant dense<0.000000e+00> : vector<512xf32>
    %133 = vector.multi_reduction <add>, %132, %cst_56 [0] : vector<128x512xf32> to vector<512xf32>
    %134 = vector.shape_cast %133 : vector<512xf32> to vector<1x512xf32>
    %cst_57 = arith.constant 7.812500e-03 : f32
    %135 = vector.broadcast %cst_57 : f32 to vector<1x512xf32>
    %136 = arith.mulf %134, %135 : vector<1x512xf32>
    %137 = vector.broadcast %131 : vector<1x512xf32> to vector<128x512xf32>
    %138 = arith.subf %127, %137 : vector<128x512xf32>
    %139 = arith.mulf %131, %131 : vector<1x512xf32>
    %140 = arith.subf %136, %139 : vector<1x512xf32>
    %cst_58 = arith.constant 9.99999974E-6 : f32
    %141 = vector.broadcast %cst_58 : f32 to vector<1x512xf32>
    %142 = arith.addf %140, %141 : vector<1x512xf32>
    %143 = math.rsqrt %142 : vector<1x512xf32>
    %144 = vector.broadcast %143 : vector<1x512xf32> to vector<128x512xf32>
    %145 = arith.mulf %138, %144 : vector<128x512xf32>
    %146 = vector.broadcast %124 : vector<1x512xf32> to vector<128x512xf32>
    %147 = arith.mulf %145, %146 : vector<128x512xf32>
    %148 = vector.broadcast %125 : vector<1x512xf32> to vector<128x512xf32>
    %149 = arith.addf %147, %148 : vector<128x512xf32>
    %cst_59 = arith.constant 0.000000e+00 : f32
    %150 = vector.broadcast %cst_59 : f32 to vector<128x512xf32>
    %151 = arith.maximumf %149, %150 : vector<128x512xf32>
    %152 = vector.extract_strided_slice %151 {offsets = [0, 128], sizes = [128, 128], strides = [1, 1]} : vector<128x512xf32> to vector<128x128xf32>
    %cst_60 = arith.constant 5.000000e-01 : f32
    %153 = vector.broadcast %cst_60 : f32 to vector<128x128xf32>
    %154 = arith.mulf %153, %152 : vector<128x128xf32>
    %155 = math.tanh %154 : vector<128x128xf32>
    %cst_61 = arith.constant 1.000000e+00 : f32
    %156 = vector.broadcast %cst_61 : f32 to vector<128x128xf32>
    %157 = arith.addf %155, %156 : vector<128x128xf32>
    %cst_62 = arith.constant 5.000000e-01 : f32
    %158 = vector.broadcast %cst_62 : f32 to vector<128x128xf32>
    %159 = arith.mulf %158, %157 : vector<128x128xf32>
    %160 = arith.mulf %159, %77 : vector<128x128xf32>
    %161 = vector.extract_strided_slice %151 {offsets = [0, 0], sizes = [128, 128], strides = [1, 1]} : vector<128x512xf32> to vector<128x128xf32>
    %cst_63 = arith.constant 5.000000e-01 : f32
    %162 = vector.broadcast %cst_63 : f32 to vector<128x128xf32>
    %163 = arith.mulf %162, %161 : vector<128x128xf32>
    %164 = math.tanh %163 : vector<128x128xf32>
    %cst_64 = arith.constant 1.000000e+00 : f32
    %165 = vector.broadcast %cst_64 : f32 to vector<128x128xf32>
    %166 = arith.addf %164, %165 : vector<128x128xf32>
    %cst_65 = arith.constant 5.000000e-01 : f32
    %167 = vector.broadcast %cst_65 : f32 to vector<128x128xf32>
    %168 = arith.mulf %167, %166 : vector<128x128xf32>
    %169 = vector.extract_strided_slice %151 {offsets = [0, 384], sizes = [128, 128], strides = [1, 1]} : vector<128x512xf32> to vector<128x128xf32>
    %170 = math.tanh %169 : vector<128x128xf32>
    %171 = arith.mulf %168, %170 : vector<128x128xf32>
    %172 = arith.addf %160, %171 : vector<128x128xf32>
    %173 = vector.extract_strided_slice %151 {offsets = [0, 256], sizes = [128, 128], strides = [1, 1]} : vector<128x512xf32> to vector<128x128xf32>
    %cst_66 = arith.constant 5.000000e-01 : f32
    %174 = vector.broadcast %cst_66 : f32 to vector<128x128xf32>
    %175 = arith.mulf %174, %173 : vector<128x128xf32>
    %176 = math.tanh %175 : vector<128x128xf32>
    %cst_67 = arith.constant 1.000000e+00 : f32
    %177 = vector.broadcast %cst_67 : f32 to vector<128x128xf32>
    %178 = arith.addf %176, %177 : vector<128x128xf32>
    %cst_68 = arith.constant 5.000000e-01 : f32
    %179 = vector.broadcast %cst_68 : f32 to vector<128x128xf32>
    %180 = arith.mulf %179, %178 : vector<128x128xf32>
    %181 = math.tanh %172 : vector<128x128xf32>
    %182 = arith.mulf %180, %181 : vector<128x128xf32>
    %c0_69 = arith.constant 0 : index
    %c0_70 = arith.constant 0 : index
    %183 = vector.load %arg11[%c0_69, %c0_70] : memref<128x128xf32, #tpu.memory_space<vmem>>, vector<128x128xf32>
    tpu.vector_store %arg11[%c0_69, %c0_70], %182 {strides = array<i32>} : memref<128x128xf32, #tpu.memory_space<vmem>>, vector<128x128xf32>,
    %c0_71 = arith.constant 0 : index
    %c0_72 = arith.constant 0 : index
    %184 = vector.load %arg12[%c0_71, %c0_72] : memref<128x128xf32, #tpu.memory_space<vmem>>, vector<128x128xf32>
    tpu.vector_store %arg12[%c0_71, %c0_72], %172 {strides = array<i32>} : memref<128x128xf32, #tpu.memory_space<vmem>>, vector<128x128xf32>,
    return
  }
}

</mosaic_0001>

<llo_original>
// kernel: ms_lstm_cell_forward.1
$region0: #{ms_lstm_cell_forward.1}
  #allocation0 [shape = 'u32[]', space=smem, size = 0x4, offset = 0x4, fixed_abs, tag = 'smem constant byte address 0x4 - core index']
  #allocation1 [shape = 'u32[144,128]{1,0:T(1,128)}', space=vmem, size = 0x12000, scoped, tag = 'internal scratch']
  #allocation2 [shape = 'bf16[128,512]{1,0:T(16,128)(2,1)}', space=vmem, size = 0x20000, scoped, tag = 'scratch operand']
  %s0 = inlined_call_operand.vmem [shape: f32[128,128], index: 0, kind: input, shape index: {}]
  %s1 = inlined_call_operand.vmem [shape: f32[128,128], index: 1, kind: input, shape index: {}]
  %s2 = inlined_call_operand.vmem [shape: f32[128,64], index: 2, kind: input, shape index: {}]
  %s3 = inlined_call_operand.vmem [shape: f32[128,64], index: 3, kind: input, shape index: {}]
  %s4 = inlined_call_operand.vmem [shape: f32[128,64], index: 4, kind: input, shape index: {}]
  %s5 = inlined_call_operand.vmem [shape: bf16[320,512], index: 5, kind: input, shape index: {}]
  %s6 = inlined_call_operand.vmem [shape: bf16[512,512], index: 6, kind: input, shape index: {}]
  %s7 = inlined_call_operand.vmem [shape: bf16[192,128], index: 7, kind: input, shape index: {}]
  %s8 = inlined_call_operand.vmem [shape: bf16[128,128], index: 8, kind: input, shape index: {}]
  %s9 = inlined_call_operand.vmem [shape: f32[6,512], index: 9, kind: input, shape index: {}]
  %s10 = inlined_call_operand.vmem [shape: f32[6,128], index: 10, kind: input, shape index: {}]
  %s11 = inlined_call_operand.hbm [shape: f32[128,128], index: 11, kind: output, shape index: {0}]
  %s12 = inlined_call_operand.hbm [shape: f32[128,128], index: 12, kind: output, shape index: {1}]
  %13 = xla_tuple %s11, %s12
  %s14 = sld [smem:[#allocation0]]
  $region62: #{ms_lstm_cell_forward.1} parent=0
    _
  %s16 = ssub.s32 1, %s14
  %s17 = scalar_select 0, %s16, %s14
  $region1: #{ms_lstm_cell_forward.1} parent=0
    #allocation3 [shape = 'u8[65536]{0}', space=vmem, size = 0x10000, scoped, tag = 'output window, operand 0, single buffered']
    #allocation4 [shape = 's32[1]{0}', space=sflag, size = 0x4, scoped, tag = 'scoped memory for ms_lstm_cell_forward.1']
    #allocation5 [shape = 'u8[65536]{0}', space=vmem, size = 0x10000, scoped, tag = 'output window, operand 1, single buffered']
    #allocation6 [shape = 's32[1]{0}', space=sflag, size = 0x4, scoped, tag = 'scoped memory for ms_lstm_cell_forward.1']
    %18 = vsyncpa [#allocation4], 0
    %19 = vsyncpa [#allocation6], 0
    // Predicated region
    $region2: #{ms_lstm_cell_forward.1} parent=1 // pred_check
      _
    $region3: #{ms_lstm_cell_forward.1} parent=1 // pred_check_branch
      %21 = sbr.rel (0) target = $region5
    $region4: #{ms_lstm_cell_forward.1} parent=1 // pred_region
      _
    $region5: #{ms_lstm_cell_forward.1} parent=1 // pred_fallthru
      _
    // Predicated region
    $region6: #{ms_lstm_cell_forward.1} parent=1 // pred_check
      _
    $region7: #{ms_lstm_cell_forward.1} parent=1 // pred_check_branch
      %23 = sbr.rel (0) target = $region9
    $region8: #{ms_lstm_cell_forward.1} parent=1 // pred_region
      _
    $region9: #{ms_lstm_cell_forward.1} parent=1 // pred_fallthru
      _
    // Predicated region
    $region10: #{ms_lstm_cell_forward.1} parent=1 // pred_check
      _
    $region11: #{ms_lstm_cell_forward.1} parent=1 // pred_check_branch
      %25 = sbr.rel (0) target = $region13
    $region12: #{ms_lstm_cell_forward.1} parent=1 // pred_region
      _
    $region13: #{ms_lstm_cell_forward.1} parent=1 // pred_fallthru
      _
    // Predicated region
    $region14: #{ms_lstm_cell_forward.1} parent=1 // pred_check
      _
    $region15: #{ms_lstm_cell_forward.1} parent=1 // pred_check_branch
      %27 = sbr.rel (0) target = $region17
    $region16: #{ms_lstm_cell_forward.1} parent=1 // pred_region
      _
    $region17: #{ms_lstm_cell_forward.1} parent=1 // pred_fallthru
      _
    // Predicated region
    $region18: #{ms_lstm_cell_forward.1} parent=1 // pred_check
      _
    $region19: #{ms_lstm_cell_forward.1} parent=1 // pred_check_branch
      %29 = sbr.rel (0) target = $region21
    $region20: #{ms_lstm_cell_forward.1} parent=1 // pred_region
      _
    $region21: #{ms_lstm_cell_forward.1} parent=1 // pred_fallthru
      _
    // Predicated region
    $region22: #{ms_lstm_cell_forward.1} parent=1 // pred_check
      _
    $region23: #{ms_lstm_cell_forward.1} parent=1 // pred_check_branch
      %31 = sbr.rel (0) target = $region25
    $region24: #{ms_lstm_cell_forward.1} parent=1 // pred_region
      _
    $region25: #{ms_lstm_cell_forward.1} parent=1 // pred_fallthru
      _
    // Predicated region
    $region26: #{ms_lstm_cell_forward.1} parent=1 // pred_check
      _
    $region27: #{ms_lstm_cell_forward.1} parent=1 // pred_check_branch
      %33 = sbr.rel (0) target = $region29
    $region28: #{ms_lstm_cell_forward.1} parent=1 // pred_region
      _
    $region29: #{ms_lstm_cell_forward.1} parent=1 // pred_fallthru
      _
    // Predicated region
    $region30: #{ms_lstm_cell_forward.1} parent=1 // pred_check
      _
    $region31: #{ms_lstm_cell_forward.1} parent=1 // pred_check_branch
      %35 = sbr.rel (0) target = $region33
    $region32: #{ms_lstm_cell_forward.1} parent=1 // pred_region
      _
    $region33: #{ms_lstm_cell_forward.1} parent=1 // pred_fallthru
      _
    // Predicated region
    $region34: #{ms_lstm_cell_forward.1} parent=1 // pred_check
      _
    $region35: #{ms_lstm_cell_forward.1} parent=1 // pred_check_branch
      %37 = sbr.rel (0) target = $region37
    $region36: #{ms_lstm_cell_forward.1} parent=1 // pred_region
      _
    $region37: #{ms_lstm_cell_forward.1} parent=1 // pred_fallthru
      _
    // Predicated region
    $region38: #{ms_lstm_cell_forward.1} parent=1 // pred_check
      _
    $region39: #{ms_lstm_cell_forward.1} parent=1 // pred_check_branch
      %39 = sbr.rel (0) target = $region41
    $region40: #{ms_lstm_cell_forward.1} parent=1 // pred_region
      _
    $region41: #{ms_lstm_cell_forward.1} parent=1 // pred_fallthru
      _
    // Predicated region
    $region42: #{ms_lstm_cell_forward.1} parent=1 // pred_check
      _
    $region43: #{ms_lstm_cell_forward.1} parent=1 // pred_check_branch
      %41 = sbr.rel (0) target = $region45
    $region44: #{ms_lstm_cell_forward.1} parent=1 // pred_region
      _
    $region45: #{ms_lstm_cell_forward.1} parent=1 // pred_fallthru
      _
    %v43 = vld [vmem:[%s9] sm:$0x3f]
    %v44 = vld [vmem:[%s9 + $0x8] sm:$0x3f]
    %v45 = vld [vmem:[%s9 + $0x10] sm:$0x3f]
    %v46 = vld [vmem:[%s9 + $0x18] sm:$0x3f]
    %v47 = vld [vmem:[%s10] sm:$0x3f]
    %v48 = vld [vmem:[%s0] sm:$0xff]
    %v49 = vld [vmem:[%s0 + $0x8] sm:$0xff]
    %v50 = vld [vmem:[%s0 + $0x10] sm:$0xff]
    %v51 = vld [vmem:[%s0 + $0x18] sm:$0xff]
    %v52 = vld [vmem:[%s0 + $0x20] sm:$0xff]
    %v53 = vld [vmem:[%s0 + $0x28] sm:$0xff]
    %v54 = vld [vmem:[%s0 + $0x30] sm:$0xff]
    %v55 = vld [vmem:[%s0 + $0x38] sm:$0xff]
    %v56 = vld [vmem:[%s0 + $0x40] sm:$0xff]
    %v57 = vld [vmem:[%s0 + $0x48] sm:$0xff]
    %v58 = vld [vmem:[%s0 + $0x50] sm:$0xff]
    %v59 = vld [vmem:[%s0 + $0x58] sm:$0xff]
    %v60 = vld [vmem:[%s0 + $0x60] sm:$0xff]
    %v61 = vld [vmem:[%s0 + $0x68] sm:$0xff]
    %v62 = vld [vmem:[%s0 + $0x70] sm:$0xff]
    %v63 = vld [vmem:[%s0 + $0x78] sm:$0xff]
    %v64 = vpack.c.bf16 %v49, %v48
    %v65 = vpack.c.bf16 %v51, %v50
    %v66 = vpack.c.bf16 %v53, %v52
    %v67 = vpack.c.bf16 %v55, %v54
    %v68 = vpack.c.bf16 %v57, %v56
    %v69 = vpack.c.bf16 %v59, %v58
    %v70 = vpack.c.bf16 %v61, %v60
    %v71 = vpack.c.bf16 %v63, %v62
    %v72 = vld [vmem:[%s1] sm:$0xff]
    %v73 = vld [vmem:[%s1 + $0x8] sm:$0xff]
    %v74 = vld [vmem:[%s1 + $0x10] sm:$0xff]
    %v75 = vld [vmem:[%s1 + $0x18] sm:$0xff]
    %v76 = vld [vmem:[%s1 + $0x20] sm:$0xff]
    %v77 = vld [vmem:[%s1 + $0x28] sm:$0xff]
    %v78 = vld [vmem:[%s1 + $0x30] sm:$0xff]
    %v79 = vld [vmem:[%s1 + $0x38] sm:$0xff]
    %v80 = vld [vmem:[%s1 + $0x40] sm:$0xff]
    %v81 = vld [vmem:[%s1 + $0x48] sm:$0xff]
    %v82 = vld [vmem:[%s1 + $0x50] sm:$0xff]
    %v83 = vld [vmem:[%s1 + $0x58] sm:$0xff]
    %v84 = vld [vmem:[%s1 + $0x60] sm:$0xff]
    %v85 = vld [vmem:[%s1 + $0x68] sm:$0xff]
    %v86 = vld [vmem:[%s1 + $0x70] sm:$0xff]
    %v87 = vld [vmem:[%s1 + $0x78] sm:$0xff]
    %v88 = vpack.c.bf16 %v73, %v72
    %v89 = vpack.c.bf16 %v75, %v74
    %v90 = vpack.c.bf16 %v77, %v76
    %v91 = vpack.c.bf16 %v79, %v78
    %v92 = vpack.c.bf16 %v81, %v80
    %v93 = vpack.c.bf16 %v83, %v82
    %v94 = vpack.c.bf16 %v85, %v84
    %v95 = vpack.c.bf16 %v87, %v86
    %v96 = vld [vmem:[%s2] sm:$0xff]
    %v97 = vld [vmem:[%s2 + $0x8] sm:$0xff]
    %v98 = vld [vmem:[%s2 + $0x10] sm:$0xff]
    %v99 = vld [vmem:[%s2 + $0x18] sm:$0xff]
    %v100 = vld [vmem:[%s2 + $0x20] sm:$0xff]
    %v101 = vld [vmem:[%s2 + $0x28] sm:$0xff]
    %v102 = vld [vmem:[%s2 + $0x30] sm:$0xff]
    %v103 = vld [vmem:[%s2 + $0x38] sm:$0xff]
    %v104 = vld [vmem:[%s2 + $0x40] sm:$0xff]
    %v105 = vld [vmem:[%s2 + $0x48] sm:$0xff]
    %v106 = vld [vmem:[%s2 + $0x50] sm:$0xff]
    %v107 = vld [vmem:[%s2 + $0x58] sm:$0xff]
    %v108 = vld [vmem:[%s2 + $0x60] sm:$0xff]
    %v109 = vld [vmem:[%s2 + $0x68] sm:$0xff]
    %v110 = vld [vmem:[%s2 + $0x70] sm:$0xff]
    %v111 = vld [vmem:[%s2 + $0x78] sm:$0xff]
    %v112 = vpack.c.bf16 %v97, %v96
    %v113 = vpack.c.bf16 %v99, %v98
    %v114 = vpack.c.bf16 %v101, %v100
    %v115 = vpack.c.bf16 %v103, %v102
    %v116 = vpack.c.bf16 %v105, %v104
    %v117 = vpack.c.bf16 %v107, %v106
    %v118 = vpack.c.bf16 %v109, %v108
    %v119 = vpack.c.bf16 %v111, %v110
    %v120 = vld [vmem:[%s3] sm:$0xff]
    %v121 = vld [vmem:[%s3 + $0x8] sm:$0xff]
    %v122 = vld [vmem:[%s3 + $0x10] sm:$0xff]
    %v123 = vld [vmem:[%s3 + $0x18] sm:$0xff]
    %v124 = vld [vmem:[%s3 + $0x20] sm:$0xff]
    %v125 = vld [vmem:[%s3 + $0x28] sm:$0xff]
    %v126 = vld [vmem:[%s3 + $0x30] sm:$0xff]
    %v127 = vld [vmem:[%s3 + $0x38] sm:$0xff]
    %v128 = vld [vmem:[%s3 + $0x40] sm:$0xff]
    %v129 = vld [vmem:[%s3 + $0x48] sm:$0xff]
    %v130 = vld [vmem:[%s3 + $0x50] sm:$0xff]
    %v131 = vld [vmem:[%s3 + $0x58] sm:$0xff]
    %v132 = vld [vmem:[%s3 + $0x60] sm:$0xff]
    %v133 = vld [vmem:[%s3 + $0x68] sm:$0xff]
    %v134 = vld [vmem:[%s3 + $0x70] sm:$0xff]
    %v135 = vld [vmem:[%s3 + $0x78] sm:$0xff]
    %v136 = vpack.c.bf16 %v121, %v120
    %v137 = vpack.c.bf16 %v123, %v122
    %v138 = vpack.c.bf16 %v125, %v124
    %v139 = vpack.c.bf16 %v127, %v126
    %v140 = vpack.c.bf16 %v129, %v128
    %v141 = vpack.c.bf16 %v131, %v130
    %v142 = vpack.c.bf16 %v133, %v132
    %v143 = vpack.c.bf16 %v135, %v134
    %v144 = vld [vmem:[%s4] sm:$0xff]
    %v145 = vld [vmem:[%s4 + $0x8] sm:$0xff]
    %v146 = vld [vmem:[%s4 + $0x10] sm:$0xff]
    %v147 = vld [vmem:[%s4 + $0x18] sm:$0xff]
    %v148 = vld [vmem:[%s4 + $0x20] sm:$0xff]
    %v149 = vld [vmem:[%s4 + $0x28] sm:$0xff]
    %v150 = vld [vmem:[%s4 + $0x30] sm:$0xff]
    %v151 = vld [vmem:[%s4 + $0x38] sm:$0xff]
    %v152 = vld [vmem:[%s4 + $0x40] sm:$0xff]
    %v153 = vld [vmem:[%s4 + $0x48] sm:$0xff]
    %v154 = vld [vmem:[%s4 + $0x50] sm:$0xff]
    %v155 = vld [vmem:[%s4 + $0x58] sm:$0xff]
    %v156 = vld [vmem:[%s4 + $0x60] sm:$0xff]
    %v157 = vld [vmem:[%s4 + $0x68] sm:$0xff]
    %v158 = vld [vmem:[%s4 + $0x70] sm:$0xff]
    %v159 = vld [vmem:[%s4 + $0x78] sm:$0xff]
    %v160 = vpack.c.bf16 %v145, %v144
    %v161 = vpack.c.bf16 %v147, %v146
    %v162 = vpack.c.bf16 %v149, %v148
    %v163 = vpack.c.bf16 %v151, %v150
    %v164 = vpack.c.bf16 %v153, %v152
    %v165 = vpack.c.bf16 %v155, %v154
    %v166 = vpack.c.bf16 %v157, %v156
    %v167 = vpack.c.bf16 %v159, %v158
    %v168 = vld [vmem:[%s7] sm:$0xf]
    %v169 = vld [vmem:[%s7 + $0x4] sm:$0xf]
    %v170 = vld [vmem:[%s7 + $0x8] sm:$0xf]
    %v171 = vld [vmem:[%s7 + $0xc] sm:$0xf]
    %v172 = vld [vmem:[%s7 + $0x10] sm:$0xf]
    %v173 = vld [vmem:[%s7 + $0x14] sm:$0xf]
    %v174 = vld [vmem:[%s7 + $0x18] sm:$0xf]
    %v175 = vld [vmem:[%s7 + $0x1c] sm:$0xf]
    %v176 = vld [vmem:[%s7 + $0x20] sm:$0xf]
    %v177 = vld [vmem:[%s7 + $0x24] sm:$0xf]
    %v178 = vld [vmem:[%s7 + $0x28] sm:$0xf]
    %v179 = vld [vmem:[%s7 + $0x2c] sm:$0xf]
    %v180 = vld [vmem:[%s7 + $0x30] sm:$0xf]
    %v181 = vld [vmem:[%s7 + $0x34] sm:$0xf]
    %v182 = vld [vmem:[%s7 + $0x38] sm:$0xf]
    %v183 = vld [vmem:[%s7 + $0x3c] sm:$0xf]
    %v184 = vld [vmem:[%s7 + $0x40] sm:$0xf]
    %v185 = vld [vmem:[%s7 + $0x44] sm:$0xf]
    %v186 = vld [vmem:[%s7 + $0x48] sm:$0xf]
    %v187 = vld [vmem:[%s7 + $0x4c] sm:$0xf]
    %v188 = vld [vmem:[%s7 + $0x50] sm:$0xf]
    %v189 = vld [vmem:[%s7 + $0x54] sm:$0xf]
    %v190 = vld [vmem:[%s7 + $0x58] sm:$0xf]
    %v191 = vld [vmem:[%s7 + $0x5c] sm:$0xf]
    %v208 = vunpack.c.l.b16 %v176
    %v209 = vunpack.c.l.b16 %v177
    %v210 = vunpack.c.l.b16 %v178
    %v211 = vunpack.c.l.b16 %v179
    %v212 = vunpack.c.l.b16 %v180
    %v213 = vunpack.c.l.b16 %v181
    %v214 = vunpack.c.l.b16 %v182
    %v215 = vunpack.c.l.b16 %v183
    %v216 = vunpack.c.l.b16 %v184
    %v217 = vunpack.c.l.b16 %v185
    %v218 = vunpack.c.l.b16 %v186
    %v219 = vunpack.c.l.b16 %v187
    %v220 = vunpack.c.l.b16 %v188
    %v221 = vunpack.c.l.b16 %v189
    %v222 = vunpack.c.l.b16 %v190
    %v223 = vunpack.c.l.b16 %v191
    %v224 = vpack.c.b16 %v209, %v208
    %v225 = vpack.c.b16 %v211, %v210
    %v226 = vpack.c.b16 %v213, %v212
    %v227 = vpack.c.b16 %v215, %v214
    %v228 = vpack.c.b16 %v217, %v216
    %v229 = vpack.c.b16 %v219, %v218
    %v230 = vpack.c.b16 %v221, %v220
    %v231 = vpack.c.b16 %v223, %v222
    %240 = vmatprep.subr.bf16.mxu0 0
    %241 = vmatpush1.bf16.msra.mxu0 %v224
    %242 = vmatprep.subr.bf16.mxu0 0
    %243 = vmatpush1.bf16.msra.mxu0 %v225
    %244 = vmatprep.subr.bf16.mxu0 0
    %245 = vmatpush1.bf16.msra.mxu0 %v226
    %246 = vmatprep.subr.bf16.mxu0 0
    %247 = vmatpush1.bf16.msra.mxu0 %v227
    %248 = vmatprep.subr.bf16.mxu0 0
    %249 = vmatpush1.bf16.msra.mxu0 %v228
    %250 = vmatprep.subr.bf16.mxu0 0
    %251 = vmatpush1.bf16.msra.mxu0 %v229
    %252 = vmatprep.subr.bf16.mxu0 0
    %253 = vmatpush1.bf16.msra.mxu0 %v230
    %254 = vmatprep.subr.bf16.mxu0 0
    %255 = vmatpush1.bf16.msra.mxu0 %v231
    %256 = vmatprep.subr.bf16.mxu0 0
    %257 = vmatpush1.bf16.msra.mxu0 0
    %258 = vmatprep.subr.bf16.mxu0 0
    %259 = vmatpush1.bf16.msra.mxu0 0
    %260 = vmatprep.subr.bf16.mxu0 0
    %261 = vmatpush1.bf16.msra.mxu0 0
    %262 = vmatprep.subr.bf16.mxu0 0
    %263 = vmatpush1.bf16.msra.mxu0 0
    %264 = vmatprep.subr.bf16.mxu0 0
    %265 = vmatpush1.bf16.msra.mxu0 0
    %266 = vmatprep.subr.bf16.mxu0 0
    %267 = vmatpush1.bf16.msra.mxu0 0
    %268 = vmatprep.subr.bf16.mxu0 0
    %269 = vmatpush1.bf16.msra.mxu0 0
    %270 = vmatprep.subr.bf16.mxu0 0
    %271 = vmatpush1.bf16.msra.mxu0 0
    %272 = vmatprep.mubr.bf16.mxu0 0
    %273 = vmatmul.mubr.bf16.gmra.mrb[0].mxu0 %v88
    %v274 = vpop.f32.mrb[0].mxu0
    %v275 = vadd.f32 0.0, %v274
    %v276 = vpop.f32.mrb[0].mxu0
    %v277 = vpop.f32.mrb[0].mxu0
    %v278 = vadd.f32 0.0, %v277
    %v279 = vpop.f32.mrb[0].mxu0
    %280 = vmatprep.mubr.bf16.mxu0 0
    %281 = vmatmul.mubr.bf16.gmra.mrb[0].mxu0 %v89
    %v282 = vpop.f32.mrb[0].mxu0
    %v283 = vadd.f32 0.0, %v282
    %v284 = vpop.f32.mrb[0].mxu0
    %v285 = vpop.f32.mrb[0].mxu0
    %v286 = vadd.f32 0.0, %v285
    %v287 = vpop.f32.mrb[0].mxu0
    %288 = vmatprep.mubr.bf16.mxu0 0
    %289 = vmatmul.mubr.bf16.gmra.mrb[0].mxu0 %v90
    %v290 = vpop.f32.mrb[0].mxu0
    %v291 = vadd.f32 0.0, %v290
    %v292 = vpop.f32.mrb[0].mxu0
    %v293 = vpop.f32.mrb[0].mxu0
    %v294 = vadd.f32 0.0, %v293
    %v295 = vpop.f32.mrb[0].mxu0
    %296 = vmatprep.mubr.bf16.mxu0 0
    %297 = vmatmul.mubr.bf16.gmra.mrb[0].mxu0 %v91
    %v298 = vpop.f32.mrb[0].mxu0
    %v299 = vadd.f32 0.0, %v298
    %v300 = vpop.f32.mrb[0].mxu0
    %v301 = vpop.f32.mrb[0].mxu0
    %v302 = vadd.f32 0.0, %v301
    %v303 = vpop.f32.mrb[0].mxu0
    %304 = vmatprep.mubr.bf16.mxu0 0
    %305 = vmatmul.mubr.bf16.gmra.mrb[0].mxu0 %v92
    %v306 = vpop.f32.mrb[0].mxu0
    %v307 = vadd.f32 0.0, %v306
    %v308 = vpop.f32.mrb[0].mxu0
    %v309 = vpop.f32.mrb[0].mxu0
    %v310 = vadd.f32 0.0, %v309
    %v311 = vpop.f32.mrb[0].mxu0
    %312 = vmatprep.mubr.bf16.mxu0 0
    %313 = vmatmul.mubr.bf16.gmra.mrb[0].mxu0 %v93
    %v314 = vpop.f32.mrb[0].mxu0
    %v315 = vadd.f32 0.0, %v314
    %v316 = vpop.f32.mrb[0].mxu0
    %v317 = vpop.f32.mrb[0].mxu0
    %v318 = vadd.f32 0.0, %v317
    %v319 = vpop.f32.mrb[0].mxu0
    %320 = vmatprep.mubr.bf16.mxu0 0
    %321 = vmatmul.mubr.bf16.gmra.mrb[0].mxu0 %v94
    %v322 = vpop.f32.mrb[0].mxu0
    %v323 = vadd.f32 0.0, %v322
    %v324 = vpop.f32.mrb[0].mxu0
    %v325 = vpop.f32.mrb[0].mxu0
    %v326 = vadd.f32 0.0, %v325
    %v327 = vpop.f32.mrb[0].mxu0
    %328 = vmatprep.mubr.bf16.mxu0 0
    %329 = vmatmul.mubr.bf16.gmra.mrb[0].mxu0 %v95
    %v330 = vpop.f32.mrb[0].mxu0
    %v331 = vadd.f32 0.0, %v330
    %v332 = vpop.f32.mrb[0].mxu0
    %v333 = vpop.f32.mrb[0].mxu0
    %v334 = vadd.f32 0.0, %v333
    %v335 = vpop.f32.mrb[0].mxu0
    %336 = vdwg.mxu0
    %v345 = vunpack.c.l.b16 %v168
    %v346 = vunpack.c.l.b16 %v169
    %v347 = vunpack.c.l.b16 %v170
    %v348 = vunpack.c.l.b16 %v171
    %v349 = vunpack.c.l.b16 %v172
    %v350 = vunpack.c.l.b16 %v173
    %v351 = vunpack.c.l.b16 %v174
    %v352 = vunpack.c.l.b16 %v175
    %v353 = vpack.c.b16 %v346, %v345
    %v354 = vpack.c.b16 %v348, %v347
    %v355 = vpack.c.b16 %v350, %v349
    %v356 = vpack.c.b16 %v352, %v351
    %vm361 = vcmask 523264
    %v363 = vsel %vm361, %v112, 0
    %v366 = vsel %vm361, %v113, 0
    %v369 = vsel %vm361, %v114, 0
    %v372 = vsel %vm361, %v115, 0
    %v375 = vsel %vm361, %v116, 0
    %v378 = vsel %vm361, %v117, 0
    %v381 = vsel %vm361, %v118, 0
    %v384 = vsel %vm361, %v119, 0
    %386 = vmatprep.subr.bf16.mxu0 0
    %387 = vmatpush1.bf16.msra.mxu0 %v353
    %388 = vmatprep.subr.bf16.mxu0 0
    %389 = vmatpush1.bf16.msra.mxu0 %v354
    %390 = vmatprep.subr.bf16.mxu0 0
    %391 = vmatpush1.bf16.msra.mxu0 %v355
    %392 = vmatprep.subr.bf16.mxu0 0
    %393 = vmatpush1.bf16.msra.mxu0 %v356
    %394 = vmatprep.subr.bf16.mxu0 0
    %395 = vmatpush1.bf16.msra.mxu0 0
    %396 = vmatprep.subr.bf16.mxu0 0
    %397 = vmatpush1.bf16.msra.mxu0 0
    %398 = vmatprep.subr.bf16.mxu0 0
    %399 = vmatpush1.bf16.msra.mxu0 0
    %400 = vmatprep.subr.bf16.mxu0 0
    %401 = vmatpush1.bf16.msra.mxu0 0
    %402 = vmatprep.subr.bf16.mxu0 0
    %403 = vmatpush1.bf16.msra.mxu0 0
    %404 = vmatprep.subr.bf16.mxu0 0
    %405 = vmatpush1.bf16.msra.mxu0 0
    %406 = vmatprep.subr.bf16.mxu0 0
    %407 = vmatpush1.bf16.msra.mxu0 0
    %408 = vmatprep.subr.bf16.mxu0 0
    %409 = vmatpush1.bf16.msra.mxu0 0
    %410 = vmatprep.subr.bf16.mxu0 0
    %411 = vmatpush1.bf16.msra.mxu0 0
    %412 = vmatprep.subr.bf16.mxu0 0
    %413 = vmatpush1.bf16.msra.mxu0 0
    %414 = vmatprep.subr.bf16.mxu0 0
    %415 = vmatpush1.bf16.msra.mxu0 0
    %416 = vmatprep.subr.bf16.mxu0 0
    %417 = vmatpush1.bf16.msra.mxu0 0
    %418 = vmatprep.mubr.bf16.mxu0 0
    %419 = vmatmul.mubr.bf16.gmra.mrb[0].mxu0 %v363
    %v420 = vpop.f32.mrb[0].mxu0
    %v421 = vadd.f32 %v275, %v420
    %v422 = vpop.f32.mrb[0].mxu0
    %v423 = vpop.f32.mrb[0].mxu0
    %v424 = vadd.f32 %v278, %v423
    %v425 = vpop.f32.mrb[0].mxu0
    %426 = vmatprep.mubr.bf16.mxu0 0
    %427 = vmatmul.mubr.bf16.gmra.mrb[0].mxu0 %v366
    %v428 = vpop.f32.mrb[0].mxu0
    %v429 = vadd.f32 %v283, %v428
    %v430 = vpop.f32.mrb[0].mxu0
    %v431 = vpop.f32.mrb[0].mxu0
    %v432 = vadd.f32 %v286, %v431
    %v433 = vpop.f32.mrb[0].mxu0
    %434 = vmatprep.mubr.bf16.mxu0 0
    %435 = vmatmul.mubr.bf16.gmra.mrb[0].mxu0 %v369
    %v436 = vpop.f32.mrb[0].mxu0
    %v437 = vadd.f32 %v291, %v436
    %v438 = vpop.f32.mrb[0].mxu0
    %v439 = vpop.f32.mrb[0].mxu0
    %v440 = vadd.f32 %v294, %v439
    %v441 = vpop.f32.mrb[0].mxu0
    %442 = vmatprep.mubr.bf16.mxu0 0
    %443 = vmatmul.mubr.bf16.gmra.mrb[0].mxu0 %v372
    %v444 = vpop.f32.mrb[0].mxu0
    %v445 = vadd.f32 %v299, %v444
    %v446 = vpop.f32.mrb[0].mxu0
    %v447 = vpop.f32.mrb[0].mxu0
    %v448 = vadd.f32 %v302, %v447
    %v449 = vpop.f32.mrb[0].mxu0
    %450 = vmatprep.mubr.bf16.mxu0 0
    %451 = vmatmul.mubr.bf16.gmra.mrb[0].mxu0 %v375
    %v452 = vpop.f32.mrb[0].mxu0
    %v453 = vadd.f32 %v307, %v452
    %v454 = vpop.f32.mrb[0].mxu0
    %v455 = vpop.f32.mrb[0].mxu0
    %v456 = vadd.f32 %v310, %v455
    %v457 = vpop.f32.mrb[0].mxu0
    %458 = vmatprep.mubr.bf16.mxu0 0
    %459 = vmatmul.mubr.bf16.gmra.mrb[0].mxu0 %v378
    %v460 = vpop.f32.mrb[0].mxu0
    %v461 = vadd.f32 %v315, %v460
    %v462 = vpop.f32.mrb[0].mxu0
    %v463 = vpop.f32.mrb[0].mxu0
    %v464 = vadd.f32 %v318, %v463
    %v465 = vpop.f32.mrb[0].mxu0
    %466 = vmatprep.mubr.bf16.mxu0 0
    %467 = vmatmul.mubr.bf16.gmra.mrb[0].mxu0 %v381
    %v468 = vpop.f32.mrb[0].mxu0
    %v469 = vadd.f32 %v323, %v468
    %v470 = vpop.f32.mrb[0].mxu0
    %v471 = vpop.f32.mrb[0].mxu0
    %v472 = vadd.f32 %v326, %v471
    %v473 = vpop.f32.mrb[0].mxu0
    %474 = vmatprep.mubr.bf16.mxu0 0
    %475 = vmatmul.mubr.bf16.gmra.mrb[0].mxu0 %v384
    %v476 = vpop.f32.mrb[0].mxu0
    %v477 = vadd.f32 %v331, %v476
    %v478 = vpop.f32.mrb[0].mxu0
    %v479 = vpop.f32.mrb[0].mxu0
    %v480 = vadd.f32 %v334, %v479
    %v481 = vpop.f32.mrb[0].mxu0
    %482 = vdwg.mxu0
    %v483 = vlaneseq
    %v484 = vshrl.u32 %v483, 7
    %v485 = vsub.s32 0, %v484
    %v486 = vrot.slane %v47, %v485
    %v487 = vadd.f32 %v421, %v486
    %v488 = vadd.f32 %v424, %v486
    %v489 = vadd.f32 %v429, %v486
    %v490 = vadd.f32 %v432, %v486
    %v491 = vadd.f32 %v437, %v486
    %v492 = vadd.f32 %v440, %v486
    %v493 = vadd.f32 %v445, %v486
    %v494 = vadd.f32 %v448, %v486
    %v495 = vadd.f32 %v453, %v486
    %v496 = vadd.f32 %v456, %v486
    %v497 = vadd.f32 %v461, %v486
    %v498 = vadd.f32 %v464, %v486
    %v499 = vadd.f32 %v469, %v486
    %v500 = vadd.f32 %v472, %v486
    %v501 = vadd.f32 %v477, %v486
    %v502 = vadd.f32 %v480, %v486
    %v503 = vadd.f32 %v487, %v488
    %v504 = vadd.f32 %v503, %v489
    %v505 = vadd.f32 %v504, %v490
    %v506 = vadd.f32 %v505, %v491
    %v507 = vadd.f32 %v506, %v492
    %v508 = vadd.f32 %v507, %v493
    %v509 = vadd.f32 %v508, %v494
    %v510 = vadd.f32 %v509, %v495
    %v511 = vadd.f32 %v510, %v496
    %v512 = vadd.f32 %v511, %v497
    %v513 = vadd.f32 %v512, %v498
    %v514 = vadd.f32 %v513, %v499
    %v515 = vadd.f32 %v514, %v500
    %v516 = vadd.f32 %v515, %v501
    %v517 = vadd.f32 %v516, %v502
    %v518 = vrot.slane %v517, 4
    %v519 = vadd.f32 %v517, %v518
    %v520 = vrot.slane %v519, 2
    %v521 = vadd.f32 %v519, %v520
    %v522 = vrot.slane %v521, 1
    %v523 = vadd.f32 %v521, %v522
    %v524 = vmul.f32 %v523, 0.0078125
    %v525 = vmul.f32 %v487, %v487
    %v526 = vmul.f32 %v488, %v488
    %v527 = vmul.f32 %v489, %v489
    %v528 = vmul.f32 %v490, %v490
    %v529 = vmul.f32 %v491, %v491
    %v530 = vmul.f32 %v492, %v492
    %v531 = vmul.f32 %v493, %v493
    %v532 = vmul.f32 %v494, %v494
    %v533 = vmul.f32 %v495, %v495
    %v534 = vmul.f32 %v496, %v496
    %v535 = vmul.f32 %v497, %v497
    %v536 = vmul.f32 %v498, %v498
    %v537 = vmul.f32 %v499, %v499
    %v538 = vmul.f32 %v500, %v500
    %v539 = vmul.f32 %v501, %v501
    %v540 = vmul.f32 %v502, %v502
    %v541 = vadd.f32 %v525, %v526
    %v542 = vadd.f32 %v541, %v527
    %v543 = vadd.f32 %v542, %v528
    %v544 = vadd.f32 %v543, %v529
    %v545 = vadd.f32 %v544, %v530
    %v546 = vadd.f32 %v545, %v531
    %v547 = vadd.f32 %v546, %v532
    %v548 = vadd.f32 %v547, %v533
    %v549 = vadd.f32 %v548, %v534
    %v550 = vadd.f32 %v549, %v535
    %v551 = vadd.f32 %v550, %v536
    %v552 = vadd.f32 %v551, %v537
    %v553 = vadd.f32 %v552, %v538
    %v554 = vadd.f32 %v553, %v539
    %v555 = vadd.f32 %v554, %v540
    %v556 = vrot.slane %v555, 4
    %v557 = vadd.f32 %v555, %v556
    %v558 = vrot.slane %v557, 2
    %v559 = vadd.f32 %v557, %v558
    %v560 = vrot.slane %v559, 1
    %v561 = vadd.f32 %v559, %v560
    %v562 = vmul.f32 %v561, 0.0078125
    %v563 = vsub.f32 %v487, %v524
    %v564 = vsub.f32 %v488, %v524
    %v565 = vsub.f32 %v489, %v524
    %v566 = vsub.f32 %v490, %v524
    %v567 = vsub.f32 %v491, %v524
    %v568 = vsub.f32 %v492, %v524
    %v569 = vsub.f32 %v493, %v524
    %v570 = vsub.f32 %v494, %v524
    %v571 = vsub.f32 %v495, %v524
    %v572 = vsub.f32 %v496, %v524
    %v573 = vsub.f32 %v497, %v524
    %v574 = vsub.f32 %v498, %v524
    %v575 = vsub.f32 %v499, %v524
    %v576 = vsub.f32 %v500, %v524
    %v577 = vsub.f32 %v501, %v524
    %v578 = vsub.f32 %v502, %v524
    %v579 = vmul.f32 %v524, %v524
    %v580 = vsub.f32 %v562, %v579
    %v581 = vadd.f32 %v580, 1e-05
    %v582 = vrsqrt.pop %v581
    %v583 = vmul.f32 %v563, %v582
    %v584 = vmul.f32 %v564, %v582
    %v585 = vmul.f32 %v565, %v582
    %v586 = vmul.f32 %v566, %v582
    %v587 = vmul.f32 %v567, %v582
    %v588 = vmul.f32 %v568, %v582
    %v589 = vmul.f32 %v569, %v582
    %v590 = vmul.f32 %v570, %v582
    %v591 = vmul.f32 %v571, %v582
    %v592 = vmul.f32 %v572, %v582
    %v593 = vmul.f32 %v573, %v582
    %v594 = vmul.f32 %v574, %v582
    %v595 = vmul.f32 %v575, %v582
    %v596 = vmul.f32 %v576, %v582
    %v597 = vmul.f32 %v577, %v582
    %v598 = vmul.f32 %v578, %v582
    %v599 = vlaneseq
    %v600 = vshrl.u32 %v599, 7
    %v601 = vsub.s32 1, %v600
    %v602 = vrot.slane %v47, %v601
    %v603 = vmul.f32 %v583, %v602
    %v604 = vmul.f32 %v584, %v602
    %v605 = vmul.f32 %v585, %v602
    %v606 = vmul.f32 %v586, %v602
    %v607 = vmul.f32 %v587, %v602
    %v608 = vmul.f32 %v588, %v602
    %v609 = vmul.f32 %v589, %v602
    %v610 = vmul.f32 %v590, %v602
    %v611 = vmul.f32 %v591, %v602
    %v612 = vmul.f32 %v592, %v602
    %v613 = vmul.f32 %v593, %v602
    %v614 = vmul.f32 %v594, %v602
    %v615 = vmul.f32 %v595, %v602
    %v616 = vmul.f32 %v596, %v602
    %v617 = vmul.f32 %v597, %v602
    %v618 = vmul.f32 %v598, %v602
    %v619 = vlaneseq
    %v620 = vshrl.u32 %v619, 7
    %v621 = vsub.s32 2, %v620
    %v622 = vrot.slane %v47, %v621
    %v623 = vadd.f32 %v603, %v622
    %v624 = vadd.f32 %v604, %v622
    %v625 = vadd.f32 %v605, %v622
    %v626 = vadd.f32 %v606, %v622
    %v627 = vadd.f32 %v607, %v622
    %v628 = vadd.f32 %v608, %v622
    %v629 = vadd.f32 %v609, %v622
    %v630 = vadd.f32 %v610, %v622
    %v631 = vadd.f32 %v611, %v622
    %v632 = vadd.f32 %v612, %v622
    %v633 = vadd.f32 %v613, %v622
    %v634 = vadd.f32 %v614, %v622
    %v635 = vadd.f32 %v615, %v622
    %v636 = vadd.f32 %v616, %v622
    %v637 = vadd.f32 %v617, %v622
    %v638 = vadd.f32 %v618, %v622
    %v639 = vmax.f32 %v623, 0.0
    %v640 = vmax.f32 %v624, 0.0
    %v641 = vmax.f32 %v625, 0.0
    %v642 = vmax.f32 %v626, 0.0
    %v643 = vmax.f32 %v627, 0.0
    %v644 = vmax.f32 %v628, 0.0
    %v645 = vmax.f32 %v629, 0.0
    %v646 = vmax.f32 %v630, 0.0
    %v647 = vmax.f32 %v631, 0.0
    %v648 = vmax.f32 %v632, 0.0
    %v649 = vmax.f32 %v633, 0.0
    %v650 = vmax.f32 %v634, 0.0
    %v651 = vmax.f32 %v635, 0.0
    %v652 = vmax.f32 %v636, 0.0
    %v653 = vmax.f32 %v637, 0.0
    %v654 = vmax.f32 %v638, 0.0
    %v655 = vpack.c.bf16 %v640, %v639
    %v656 = vpack.c.bf16 %v642, %v641
    %v657 = vpack.c.bf16 %v644, %v643
    %v658 = vpack.c.bf16 %v646, %v645
    %v659 = vpack.c.bf16 %v648, %v647
    %v660 = vpack.c.bf16 %v650, %v649
    %v661 = vpack.c.bf16 %v652, %v651
    %v662 = vpack.c.bf16 %v654, %v653
    %v663 = vld [vmem:[%s8] sm:$0xf]
    %v664 = vld [vmem:[%s8 + $0x4] sm:$0xf]
    %v665 = vld [vmem:[%s8 + $0x8] sm:$0xf]
    %v666 = vld [vmem:[%s8 + $0xc] sm:$0xf]
    %v667 = vld [vmem:[%s8 + $0x10] sm:$0xf]
    %v668 = vld [vmem:[%s8 + $0x14] sm:$0xf]
    %v669 = vld [vmem:[%s8 + $0x18] sm:$0xf]
    %v670 = vld [vmem:[%s8 + $0x1c] sm:$0xf]
    %v671 = vld [vmem:[%s8 + $0x20] sm:$0xf]
    %v672 = vld [vmem:[%s8 + $0x24] sm:$0xf]
    %v673 = vld [vmem:[%s8 + $0x28] sm:$0xf]
    %v674 = vld [vmem:[%s8 + $0x2c] sm:$0xf]
    %v675 = vld [vmem:[%s8 + $0x30] sm:$0xf]
    %v676 = vld [vmem:[%s8 + $0x34] sm:$0xf]
    %v677 = vld [vmem:[%s8 + $0x38] sm:$0xf]
    %v678 = vld [vmem:[%s8 + $0x3c] sm:$0xf]
    %v679 = vlaneseq
    %v680 = vshrl.u32 %v679, 7
    %v681 = vsub.s32 3, %v680
    %v682 = vrot.slane %v47, %v681
    %v699 = vunpack.c.l.b16 %v663
    %v700 = vunpack.c.l.b16 %v664
    %v701 = vunpack.c.l.b16 %v665
    %v702 = vunpack.c.l.b16 %v666
    %v703 = vunpack.c.l.b16 %v667
    %v704 = vunpack.c.l.b16 %v668
    %v705 = vunpack.c.l.b16 %v669
    %v706 = vunpack.c.l.b16 %v670
    %v707 = vunpack.c.l.b16 %v671
    %v708 = vunpack.c.l.b16 %v672
    %v709 = vunpack.c.l.b16 %v673
    %v710 = vunpack.c.l.b16 %v674
    %v711 = vunpack.c.l.b16 %v675
    %v712 = vunpack.c.l.b16 %v676
    %v713 = vunpack.c.l.b16 %v677
    %v714 = vunpack.c.l.b16 %v678
    %v715 = vpack.c.b16 %v700, %v699
    %v716 = vpack.c.b16 %v702, %v701
    %v717 = vpack.c.b16 %v704, %v703
    %v718 = vpack.c.b16 %v706, %v705
    %v719 = vpack.c.b16 %v708, %v707
    %v720 = vpack.c.b16 %v710, %v709
    %v721 = vpack.c.b16 %v712, %v711
    %v722 = vpack.c.b16 %v714, %v713
    %731 = vmatprep.subr.bf16.mxu0 0
    %732 = vmatpush1.bf16.msra.mxu0 %v715
    %733 = vmatprep.subr.bf16.mxu0 0
    %734 = vmatpush1.bf16.msra.mxu0 %v716
    %735 = vmatprep.subr.bf16.mxu0 0
    %736 = vmatpush1.bf16.msra.mxu0 %v717
    %737 = vmatprep.subr.bf16.mxu0 0
    %738 = vmatpush1.bf16.msra.mxu0 %v718
    %739 = vmatprep.subr.bf16.mxu0 0
    %740 = vmatpush1.bf16.msra.mxu0 %v719
    %741 = vmatprep.subr.bf16.mxu0 0
    %742 = vmatpush1.bf16.msra.mxu0 %v720
    %743 = vmatprep.subr.bf16.mxu0 0
    %744 = vmatpush1.bf16.msra.mxu0 %v721
    %745 = vmatprep.subr.bf16.mxu0 0
    %746 = vmatpush1.bf16.msra.mxu0 %v722
    %747 = vmatprep.subr.bf16.mxu0 0
    %748 = vmatpush1.bf16.msra.mxu0 0
    %749 = vmatprep.subr.bf16.mxu0 0
    %750 = vmatpush1.bf16.msra.mxu0 0
    %751 = vmatprep.subr.bf16.mxu0 0
    %752 = vmatpush1.bf16.msra.mxu0 0
    %753 = vmatprep.subr.bf16.mxu0 0
    %754 = vmatpush1.bf16.msra.mxu0 0
    %755 = vmatprep.subr.bf16.mxu0 0
    %756 = vmatpush1.bf16.msra.mxu0 0
    %757 = vmatprep.subr.bf16.mxu0 0
    %758 = vmatpush1.bf16.msra.mxu0 0
    %759 = vmatprep.subr.bf16.mxu0 0
    %760 = vmatpush1.bf16.msra.mxu0 0
    %761 = vmatprep.subr.bf16.mxu0 0
    %762 = vmatpush1.bf16.msra.mxu0 0
    %763 = vmatprep.mubr.bf16.mxu0 0
    %764 = vmatmul.mubr.bf16.gmra.mrb[0].mxu0 %v655
    %v765 = vpop.f32.mrb[0].mxu0
    %v766 = vadd.f32 %v682, %v765
    %v767 = vpop.f32.mrb[0].mxu0
    %v768 = vpop.f32.mrb[0].mxu0
    %v769 = vadd.f32 %v682, %v768
    %v770 = vpop.f32.mrb[0].mxu0
    %771 = vmatprep.mubr.bf16.mxu0 0
    %772 = vmatmul.mubr.bf16.gmra.mrb[0].mxu0 %v656
    %v773 = vpop.f32.mrb[0].mxu0
    %v774 = vadd.f32 %v682, %v773
    %v775 = vpop.f32.mrb[0].mxu0
    %v776 = vpop.f32.mrb[0].mxu0
    %v777 = vadd.f32 %v682, %v776
    %v778 = vpop.f32.mrb[0].mxu0
    %779 = vmatprep.mubr.bf16.mxu0 0
    %780 = vmatmul.mubr.bf16.gmra.mrb[0].mxu0 %v657
    %v781 = vpop.f32.mrb[0].mxu0
    %v782 = vadd.f32 %v682, %v781
    %v783 = vpop.f32.mrb[0].mxu0
    %v784 = vpop.f32.mrb[0].mxu0
    %v785 = vadd.f32 %v682, %v784
    %v786 = vpop.f32.mrb[0].mxu0
    %787 = vmatprep.mubr.bf16.mxu0 0
    %788 = vmatmul.mubr.bf16.gmra.mrb[0].mxu0 %v658
    %v789 = vpop.f32.mrb[0].mxu0
    %v790 = vadd.f32 %v682, %v789
    %v791 = vpop.f32.mrb[0].mxu0
    %v792 = vpop.f32.mrb[0].mxu0
    %v793 = vadd.f32 %v682, %v792
    %v794 = vpop.f32.mrb[0].mxu0
    %795 = vmatprep.mubr.bf16.mxu0 0
    %796 = vmatmul.mubr.bf16.gmra.mrb[0].mxu0 %v659
    %v797 = vpop.f32.mrb[0].mxu0
    %v798 = vadd.f32 %v682, %v797
    %v799 = vpop.f32.mrb[0].mxu0
    %v800 = vpop.f32.mrb[0].mxu0
    %v801 = vadd.f32 %v682, %v800
    %v802 = vpop.f32.mrb[0].mxu0
    %803 = vmatprep.mubr.bf16.mxu0 0
    %804 = vmatmul.mubr.bf16.gmra.mrb[0].mxu0 %v660
    %v805 = vpop.f32.mrb[0].mxu0
    %v806 = vadd.f32 %v682, %v805
    %v807 = vpop.f32.mrb[0].mxu0
    %v808 = vpop.f32.mrb[0].mxu0
    %v809 = vadd.f32 %v682, %v808
    %v810 = vpop.f32.mrb[0].mxu0
    %811 = vmatprep.mubr.bf16.mxu0 0
    %812 = vmatmul.mubr.bf16.gmra.mrb[0].mxu0 %v661
    %v813 = vpop.f32.mrb[0].mxu0
    %v814 = vadd.f32 %v682, %v813
    %v815 = vpop.f32.mrb[0].mxu0
    %v816 = vpop.f32.mrb[0].mxu0
    %v817 = vadd.f32 %v682, %v816
    %v818 = vpop.f32.mrb[0].mxu0
    %819 = vmatprep.mubr.bf16.mxu0 0
    %820 = vmatmul.mubr.bf16.gmra.mrb[0].mxu0 %v662
    %v821 = vpop.f32.mrb[0].mxu0
    %v822 = vadd.f32 %v682, %v821
    %v823 = vpop.f32.mrb[0].mxu0
    %v824 = vpop.f32.mrb[0].mxu0
    %v825 = vadd.f32 %v682, %v824
    %v826 = vpop.f32.mrb[0].mxu0
    %827 = vdwg.mxu0
    %v828 = vadd.f32 %v766, %v769
    %v829 = vadd.f32 %v828, %v774
    %v830 = vadd.f32 %v829, %v777
    %v831 = vadd.f32 %v830, %v782
    %v832 = vadd.f32 %v831, %v785
    %v833 = vadd.f32 %v832, %v790
    %v834 = vadd.f32 %v833, %v793
    %v835 = vadd.f32 %v834, %v798
    %v836 = vadd.f32 %v835, %v801
    %v837 = vadd.f32 %v836, %v806
    %v838 = vadd.f32 %v837, %v809
    %v839 = vadd.f32 %v838, %v814
    %v840 = vadd.f32 %v839, %v817
    %v841 = vadd.f32 %v840, %v822
    %v842 = vadd.f32 %v841, %v825
    %v843 = vrot.slane %v842, 4
    %v844 = vadd.f32 %v842, %v843
    %v845 = vrot.slane %v844, 2
    %v846 = vadd.f32 %v844, %v845
    %v847 = vrot.slane %v846, 1
    %v848 = vadd.f32 %v846, %v847
    %v849 = vmul.f32 %v848, 0.0078125
    %v850 = vmul.f32 %v766, %v766
    %v851 = vmul.f32 %v769, %v769
    %v852 = vmul.f32 %v774, %v774
    %v853 = vmul.f32 %v777, %v777
    %v854 = vmul.f32 %v782, %v782
    %v855 = vmul.f32 %v785, %v785
    %v856 = vmul.f32 %v790, %v790
    %v857 = vmul.f32 %v793, %v793
    %v858 = vmul.f32 %v798, %v798
    %v859 = vmul.f32 %v801, %v801
    %v860 = vmul.f32 %v806, %v806
    %v861 = vmul.f32 %v809, %v809
    %v862 = vmul.f32 %v814, %v814
    %v863 = vmul.f32 %v817, %v817
    %v864 = vmul.f32 %v822, %v822
    %v865 = vmul.f32 %v825, %v825
    %v866 = vadd.f32 %v850, %v851
    %v867 = vadd.f32 %v866, %v852
    %v868 = vadd.f32 %v867, %v853
    %v869 = vadd.f32 %v868, %v854
    %v870 = vadd.f32 %v869, %v855
    %v871 = vadd.f32 %v870, %v856
    %v872 = vadd.f32 %v871, %v857
    %v873 = vadd.f32 %v872, %v858
    %v874 = vadd.f32 %v873, %v859
    %v875 = vadd.f32 %v874, %v860
    %v876 = vadd.f32 %v875, %v861
    %v877 = vadd.f32 %v876, %v862
    %v878 = vadd.f32 %v877, %v863
    %v879 = vadd.f32 %v878, %v864
    %v880 = vadd.f32 %v879, %v865
    %v881 = vrot.slane %v880, 4
    %v882 = vadd.f32 %v880, %v881
    %v883 = vrot.slane %v882, 2
    %v884 = vadd.f32 %v882, %v883
    %v885 = vrot.slane %v884, 1
    %v886 = vadd.f32 %v884, %v885
    %v887 = vmul.f32 %v886, 0.0078125
    %v888 = vsub.f32 %v766, %v849
    %v889 = vsub.f32 %v769, %v849
    %v890 = vsub.f32 %v774, %v849
    %v891 = vsub.f32 %v777, %v849
    %v892 = vsub.f32 %v782, %v849
    %v893 = vsub.f32 %v785, %v849
    %v894 = vsub.f32 %v790, %v849
    %v895 = vsub.f32 %v793, %v849
    %v896 = vsub.f32 %v798, %v849
    %v897 = vsub.f32 %v801, %v849
    %v898 = vsub.f32 %v806, %v849
    %v899 = vsub.f32 %v809, %v849
    %v900 = vsub.f32 %v814, %v849
    %v901 = vsub.f32 %v817, %v849
    %v902 = vsub.f32 %v822, %v849
    %v903 = vsub.f32 %v825, %v849
    %v904 = vmul.f32 %v849, %v849
    %v905 = vsub.f32 %v887, %v904
    %v906 = vadd.f32 %v905, 1e-05
    %v907 = vrsqrt.pop %v906
    %v908 = vmul.f32 %v888, %v907
    %v909 = vmul.f32 %v889, %v907
    %v910 = vmul.f32 %v890, %v907
    %v911 = vmul.f32 %v891, %v907
    %v912 = vmul.f32 %v892, %v907
    %v913 = vmul.f32 %v893, %v907
    %v914 = vmul.f32 %v894, %v907
    %v915 = vmul.f32 %v895, %v907
    %v916 = vmul.f32 %v896, %v907
    %v917 = vmul.f32 %v897, %v907
    %v918 = vmul.f32 %v898, %v907
    %v919 = vmul.f32 %v899, %v907
    %v920 = vmul.f32 %v900, %v907
    %v921 = vmul.f32 %v901, %v907
    %v922 = vmul.f32 %v902, %v907
    %v923 = vmul.f32 %v903, %v907
    %v924 = vlaneseq
    %v925 = vshrl.u32 %v924, 7
    %v926 = vsub.s32 4, %v925
    %v927 = vrot.slane %v47, %v926
    %v928 = vmul.f32 %v908, %v927
    %v929 = vmul.f32 %v909, %v927
    %v930 = vmul.f32 %v910, %v927
    %v931 = vmul.f32 %v911, %v927
    %v932 = vmul.f32 %v912, %v927
    %v933 = vmul.f32 %v913, %v927
    %v934 = vmul.f32 %v914, %v927
    %v935 = vmul.f32 %v915, %v927
    %v936 = vmul.f32 %v916, %v927
    %v937 = vmul.f32 %v917, %v927
    %v938 = vmul.f32 %v918, %v927
    %v939 = vmul.f32 %v919, %v927
    %v940 = vmul.f32 %v920, %v927
    %v941 = vmul.f32 %v921, %v927
    %v942 = vmul.f32 %v922, %v927
    %v943 = vmul.f32 %v923, %v927
    %v944 = vlaneseq
    %v945 = vshrl.u32 %v944, 7
    %v946 = vsub.s32 5, %v945
    %v947 = vrot.slane %v47, %v946
    %v948 = vadd.f32 %v928, %v947
    %v949 = vadd.f32 %v929, %v947
    %v950 = vadd.f32 %v930, %v947
    %v951 = vadd.f32 %v931, %v947
    %v952 = vadd.f32 %v932, %v947
    %v953 = vadd.f32 %v933, %v947
    %v954 = vadd.f32 %v934, %v947
    %v955 = vadd.f32 %v935, %v947
    %v956 = vadd.f32 %v936, %v947
    %v957 = vadd.f32 %v937, %v947
    %v958 = vadd.f32 %v938, %v947
    %v959 = vadd.f32 %v939, %v947
    %v960 = vadd.f32 %v940, %v947
    %v961 = vadd.f32 %v941, %v947
    %v962 = vadd.f32 %v942, %v947
    %v963 = vadd.f32 %v943, %v947
    %v964 = vmax.f32 %v948, 0.0
    %v965 = vmax.f32 %v949, 0.0
    %v966 = vmax.f32 %v950, 0.0
    %v967 = vmax.f32 %v951, 0.0
    %v968 = vmax.f32 %v952, 0.0
    %v969 = vmax.f32 %v953, 0.0
    %v970 = vmax.f32 %v954, 0.0
    %v971 = vmax.f32 %v955, 0.0
    %v972 = vmax.f32 %v956, 0.0
    %v973 = vmax.f32 %v957, 0.0
    %v974 = vmax.f32 %v958, 0.0
    %v975 = vmax.f32 %v959, 0.0
    %v976 = vmax.f32 %v960, 0.0
    %v977 = vmax.f32 %v961, 0.0
    %v978 = vmax.f32 %v962, 0.0
    %v979 = vmax.f32 %v963, 0.0
    %v980 = vld [vmem:[%s5] sm:$0xff]
    %v981 = vld [vmem:[%s5 + $0x8] sm:$0xff]
    %v982 = vld [vmem:[%s5 + $0x10] sm:$0xff]
    %v983 = vld [vmem:[%s5 + $0x18] sm:$0xff]
    %v984 = vld [vmem:[%s5 + $0x20] sm:$0xff]
    %v985 = vld [vmem:[%s5 + $0x28] sm:$0xff]
    %v986 = vld [vmem:[%s5 + $0x30] sm:$0xff]
    %v987 = vld [vmem:[%s5 + $0x38] sm:$0xff]
    %v988 = vld [vmem:[%s5 + $0x40] sm:$0xff]
    %v989 = vld [vmem:[%s5 + $0x48] sm:$0xff]
    %v990 = vld [vmem:[%s5 + $0x50] sm:$0xff]
    %v991 = vld [vmem:[%s5 + $0x58] sm:$0xff]
    %v992 = vld [vmem:[%s5 + $0x60] sm:$0xff]
    %v993 = vld [vmem:[%s5 + $0x68] sm:$0xff]
    %v994 = vld [vmem:[%s5 + $0x70] sm:$0xff]
    %v995 = vld [vmem:[%s5 + $0x78] sm:$0xff]
    %v996 = vld [vmem:[%s5 + $0x80] sm:$0xff]
    %v997 = vld [vmem:[%s5 + $0x88] sm:$0xff]
    %v998 = vld [vmem:[%s5 + $0x90] sm:$0xff]
    %v999 = vld [vmem:[%s5 + $0x98] sm:$0xff]
    %v1000 = vld [vmem:[%s5 + $0xa0] sm:$0xff]
    %v1001 = vld [vmem:[%s5 + $0xa8] sm:$0xff]
    %v1002 = vld [vmem:[%s5 + $0xb0] sm:$0xff]
    %v1003 = vld [vmem:[%s5 + $0xb8] sm:$0xff]
    %v1004 = vld [vmem:[%s5 + $0xc0] sm:$0xff]
    %v1005 = vld [vmem:[%s5 + $0xc8] sm:$0xff]
    %v1006 = vld [vmem:[%s5 + $0xd0] sm:$0xff]
    %v1007 = vld [vmem:[%s5 + $0xd8] sm:$0xff]
    %v1008 = vld [vmem:[%s5 + $0xe0] sm:$0xff]
    %v1009 = vld [vmem:[%s5 + $0xe8] sm:$0xff]
    %v1010 = vld [vmem:[%s5 + $0xf0] sm:$0xff]
    %v1011 = vld [vmem:[%s5 + $0xf8] sm:$0xff]
    %v1012 = vld [vmem:[%s5 + $0x100] sm:$0xff]
    %v1013 = vld [vmem:[%s5 + $0x108] sm:$0xff]
    %v1014 = vld [vmem:[%s5 + $0x110] sm:$0xff]
    %v1015 = vld [vmem:[%s5 + $0x118] sm:$0xff]
    %v1016 = vld [vmem:[%s5 + $0x120] sm:$0xff]
    %v1017 = vld [vmem:[%s5 + $0x128] sm:$0xff]
    %v1018 = vld [vmem:[%s5 + $0x130] sm:$0xff]
    %v1019 = vld [vmem:[%s5 + $0x138] sm:$0xff]
    %v1020 = vld [vmem:[%s5 + $0x140] sm:$0xff]
    %v1021 = vld [vmem:[%s5 + $0x148] sm:$0xff]
    %v1022 = vld [vmem:[%s5 + $0x150] sm:$0xff]
    %v1023 = vld [vmem:[%s5 + $0x158] sm:$0xff]
    %v1024 = vld [vmem:[%s5 + $0x160] sm:$0xff]
    %v1025 = vld [vmem:[%s5 + $0x168] sm:$0xff]
    %v1026 = vld [vmem:[%s5 + $0x170] sm:$0xff]
    %v1027 = vld [vmem:[%s5 + $0x178] sm:$0xff]
    %v1044 = vunpack.c.l.b16 %v1012
    %v1045 = vunpack.c.h.b16 %v1012
    %v1046 = vunpack.c.l.b16 %v1013
    %v1047 = vunpack.c.h.b16 %v1013
    %v1048 = vunpack.c.l.b16 %v1014
    %v1049 = vunpack.c.h.b16 %v1014
    %v1050 = vunpack.c.l.b16 %v1015
    %v1051 = vunpack.c.h.b16 %v1015
    %v1052 = vunpack.c.l.b16 %v1016
    %v1053 = vunpack.c.h.b16 %v1016
    %v1054 = vunpack.c.l.b16 %v1017
    %v1055 = vunpack.c.h.b16 %v1017
    %v1056 = vunpack.c.l.b16 %v1018
    %v1057 = vunpack.c.h.b16 %v1018
    %v1058 = vunpack.c.l.b16 %v1019
    %v1059 = vunpack.c.h.b16 %v1019
    %v1060 = vunpack.c.l.b16 %v1020
    %v1061 = vunpack.c.h.b16 %v1020
    %v1062 = vunpack.c.l.b16 %v1021
    %v1063 = vunpack.c.h.b16 %v1021
    %v1064 = vunpack.c.l.b16 %v1022
    %v1065 = vunpack.c.h.b16 %v1022
    %v1066 = vunpack.c.l.b16 %v1023
    %v1067 = vunpack.c.h.b16 %v1023
    %v1068 = vunpack.c.l.b16 %v1024
    %v1069 = vunpack.c.h.b16 %v1024
    %v1070 = vunpack.c.l.b16 %v1025
    %v1071 = vunpack.c.h.b16 %v1025
    %v1072 = vunpack.c.l.b16 %v1026
    %v1073 = vunpack.c.h.b16 %v1026
    %v1074 = vunpack.c.l.b16 %v1027
    %v1075 = vunpack.c.h.b16 %v1027
    %v1076 = vpack.c.b16 %v1048, %v1044
    %v1077 = vpack.c.b16 %v1049, %v1045
    %v1078 = vpack.c.b16 %v1050, %v1046
    %v1079 = vpack.c.b16 %v1051, %v1047
    %v1080 = vpack.c.b16 %v1056, %v1052
    %v1081 = vpack.c.b16 %v1057, %v1053
    %v1082 = vpack.c.b16 %v1058, %v1054
    %v1083 = vpack.c.b16 %v1059, %v1055
    %v1084 = vpack.c.b16 %v1064, %v1060
    %v1085 = vpack.c.b16 %v1065, %v1061
    %v1086 = vpack.c.b16 %v1066, %v1062
    %v1087 = vpack.c.b16 %v1067, %v1063
    %v1088 = vpack.c.b16 %v1072, %v1068
    %v1089 = vpack.c.b16 %v1073, %v1069
    %v1090 = vpack.c.b16 %v1074, %v1070
    %v1091 = vpack.c.b16 %v1075, %v1071
    %1108 = vmatprep.subr.bf16.mxu0 %v1077
    %1109 = vmatpush1.bf16.msra.mxu0 %v1076
    %1110 = vmatprep.subr.bf16.mxu0 %v1081
    %1111 = vmatpush1.bf16.msra.mxu0 %v1080
    %1112 = vmatprep.subr.bf16.mxu0 %v1085
    %1113 = vmatpush1.bf16.msra.mxu0 %v1084
    %1114 = vmatprep.subr.bf16.mxu0 %v1089
    %1115 = vmatpush1.bf16.msra.mxu0 %v1088
    %1116 = vmatprep.subr.bf16.mxu0 0
    %1117 = vmatpush1.bf16.msra.mxu0 0
    %1118 = vmatprep.subr.bf16.mxu0 0
    %1119 = vmatpush1.bf16.msra.mxu0 0
    %1120 = vmatprep.subr.bf16.mxu0 0
    %1121 = vmatpush1.bf16.msra.mxu0 0
    %1122 = vmatprep.subr.bf16.mxu0 0
    %1123 = vmatpush1.bf16.msra.mxu0 0
    %1124 = vmatprep.subr.bf16.mxu0 0
    %1125 = vmatpush1.bf16.msra.mxu0 0
    %1126 = vmatprep.subr.bf16.mxu0 0
    %1127 = vmatpush1.bf16.msra.mxu0 0
    %1128 = vmatprep.subr.bf16.mxu0 0
    %1129 = vmatpush1.bf16.msra.mxu0 0
    %1130 = vmatprep.subr.bf16.mxu0 0
    %1131 = vmatpush1.bf16.msra.mxu0 0
    %1132 = vmatprep.subr.bf16.mxu0 0
    %1133 = vmatpush1.bf16.msra.mxu0 0
    %1134 = vmatprep.subr.bf16.mxu0 0
    %1135 = vmatpush1.bf16.msra.mxu0 0
    %1136 = vmatprep.subr.bf16.mxu0 0
    %1137 = vmatpush1.bf16.msra.mxu0 0
    %1138 = vmatprep.subr.bf16.mxu0 0
    %1139 = vmatpush1.bf16.msra.mxu0 0
    %1140 = vmatprep.mubr.bf16.mxu0 0
    %1141 = vmatmul.mubr.bf16.gmra.mrb[0].mxu0 %v363
    %v1142 = vpop.f32.mrb[0].mxu0
    %v1143 = vadd.f32 0.0, %v1142
    %v1144 = vpop.f32.mrb[0].mxu0
    %v1145 = vadd.f32 0.0, %v1144
    %v1146 = vpop.f32.mrb[0].mxu0
    %v1147 = vadd.f32 0.0, %v1146
    %v1148 = vpop.f32.mrb[0].mxu0
    %v1149 = vadd.f32 0.0, %v1148
    %1150 = vmatprep.mubr.bf16.mxu0 0
    %1151 = vmatmul.mubr.bf16.gmra.mrb[0].mxu0 %v366
    %v1152 = vpop.f32.mrb[0].mxu0
    %v1153 = vadd.f32 0.0, %v1152
    %v1154 = vpop.f32.mrb[0].mxu0
    %v1155 = vadd.f32 0.0, %v1154
    %v1156 = vpop.f32.mrb[0].mxu0
    %v1157 = vadd.f32 0.0, %v1156
    %v1158 = vpop.f32.mrb[0].mxu0
    %v1159 = vadd.f32 0.0, %v1158
    %1160 = vmatprep.mubr.bf16.mxu0 0
    %1161 = vmatmul.mubr.bf16.gmra.mrb[0].mxu0 %v369
    %v1162 = vpop.f32.mrb[0].mxu0
    %v1163 = vadd.f32 0.0, %v1162
    %v1164 = vpop.f32.mrb[0].mxu0
    %v1165 = vadd.f32 0.0, %v1164
    %v1166 = vpop.f32.mrb[0].mxu0
    %v1167 = vadd.f32 0.0, %v1166
    %v1168 = vpop.f32.mrb[0].mxu0
    %v1169 = vadd.f32 0.0, %v1168
    %1170 = vmatprep.mubr.bf16.mxu0 0
    %1171 = vmatmul.mubr.bf16.gmra.mrb[0].mxu0 %v372
    %v1172 = vpop.f32.mrb[0].mxu0
    %v1173 = vadd.f32 0.0, %v1172
    %v1174 = vpop.f32.mrb[0].mxu0
    %v1175 = vadd.f32 0.0, %v1174
    %v1176 = vpop.f32.mrb[0].mxu0
    %v1177 = vadd.f32 0.0, %v1176
    %v1178 = vpop.f32.mrb[0].mxu0
    %v1179 = vadd.f32 0.0, %v1178
    %1180 = vmatprep.mubr.bf16.mxu0 0
    %1181 = vmatmul.mubr.bf16.gmra.mrb[0].mxu0 %v375
    %v1182 = vpop.f32.mrb[0].mxu0
    %v1183 = vadd.f32 0.0, %v1182
    %v1184 = vpop.f32.mrb[0].mxu0
    %v1185 = vadd.f32 0.0, %v1184
    %v1186 = vpop.f32.mrb[0].mxu0
    %v1187 = vadd.f32 0.0, %v1186
    %v1188 = vpop.f32.mrb[0].mxu0
    %v1189 = vadd.f32 0.0, %v1188
    %1190 = vmatprep.mubr.bf16.mxu0 0
    %1191 = vmatmul.mubr.bf16.gmra.mrb[0].mxu0 %v378
    %v1192 = vpop.f32.mrb[0].mxu0
    %v1193 = vadd.f32 0.0, %v1192
    %v1194 = vpop.f32.mrb[0].mxu0
    %v1195 = vadd.f32 0.0, %v1194
    %v1196 = vpop.f32.mrb[0].mxu0
    %v1197 = vadd.f32 0.0, %v1196
    %v1198 = vpop.f32.mrb[0].mxu0
    %v1199 = vadd.f32 0.0, %v1198
    %1200 = vmatprep.mubr.bf16.mxu0 0
    %1201 = vmatmul.mubr.bf16.gmra.mrb[0].mxu0 %v381
    %v1202 = vpop.f32.mrb[0].mxu0
    %v1203 = vadd.f32 0.0, %v1202
    %v1204 = vpop.f32.mrb[0].mxu0
    %v1205 = vadd.f32 0.0, %v1204
    %v1206 = vpop.f32.mrb[0].mxu0
    %v1207 = vadd.f32 0.0, %v1206
    %v1208 = vpop.f32.mrb[0].mxu0
    %v1209 = vadd.f32 0.0, %v1208
    %1210 = vmatprep.mubr.bf16.mxu0 0
    %1211 = vmatmul.mubr.bf16.gmra.mrb[0].mxu0 %v384
    %v1212 = vpop.f32.mrb[0].mxu0
    %v1213 = vadd.f32 0.0, %v1212
    %v1214 = vpop.f32.mrb[0].mxu0
    %v1215 = vadd.f32 0.0, %v1214
    %v1216 = vpop.f32.mrb[0].mxu0
    %v1217 = vadd.f32 0.0, %v1216
    %v1218 = vpop.f32.mrb[0].mxu0
    %v1219 = vadd.f32 0.0, %v1218
    %1220 = vdwg.mxu0
    %1221 = vmatprep.subr.bf16.mxu0 %v1079
    %1222 = vmatpush1.bf16.msra.mxu0 %v1078
    %1223 = vmatprep.subr.bf16.mxu0 %v1083
    %1224 = vmatpush1.bf16.msra.mxu0 %v1082
    %1225 = vmatprep.subr.bf16.mxu0 %v1087
    %1226 = vmatpush1.bf16.msra.mxu0 %v1086
    %1227 = vmatprep.subr.bf16.mxu0 %v1091
    %1228 = vmatpush1.bf16.msra.mxu0 %v1090
    %1229 = vmatprep.subr.bf16.mxu0 0
    %1230 = vmatpush1.bf16.msra.mxu0 0
    %1231 = vmatprep.subr.bf16.mxu0 0
    %1232 = vmatpush1.bf16.msra.mxu0 0
    %1233 = vmatprep.subr.bf16.mxu0 0
    %1234 = vmatpush1.bf16.msra.mxu0 0
    %1235 = vmatprep.subr.bf16.mxu0 0
    %1236 = vmatpush1.bf16.msra.mxu0 0
    %1237 = vmatprep.subr.bf16.mxu0 0
    %1238 = vmatpush1.bf16.msra.mxu0 0
    %1239 = vmatprep.subr.bf16.mxu0 0
    %1240 = vmatpush1.bf16.msra.mxu0 0
    %1241 = vmatprep.subr.bf16.mxu0 0
    %1242 = vmatpush1.bf16.msra.mxu0 0
    %1243 = vmatprep.subr.bf16.mxu0 0
    %1244 = vmatpush1.bf16.msra.mxu0 0
    %1245 = vmatprep.subr.bf16.mxu0 0
    %1246 = vmatpush1.bf16.msra.mxu0 0
    %1247 = vmatprep.subr.bf16.mxu0 0
    %1248 = vmatpush1.bf16.msra.mxu0 0
    %1249 = vmatprep.subr.bf16.mxu0 0
    %1250 = vmatpush1.bf16.msra.mxu0 0
    %1251 = vmatprep.subr.bf16.mxu0 0
    %1252 = vmatpush1.bf16.msra.mxu0 0
    %1253 = vmatprep.mubr.bf16.mxu0 0
    %1254 = vmatmul.mubr.bf16.gmra.mrb[0].mxu0 %v363
    %v1255 = vpop.f32.mrb[0].mxu0
    %v1256 = vadd.f32 0.0, %v1255
    %v1257 = vpop.f32.mrb[0].mxu0
    %v1258 = vadd.f32 0.0, %v1257
    %v1259 = vpop.f32.mrb[0].mxu0
    %v1260 = vadd.f32 0.0, %v1259
    %v1261 = vpop.f32.mrb[0].mxu0
    %v1262 = vadd.f32 0.0, %v1261
    %1263 = vmatprep.mubr.bf16.mxu0 0
    %1264 = vmatmul.mubr.bf16.gmra.mrb[0].mxu0 %v366
    %v1265 = vpop.f32.mrb[0].mxu0
    %v1266 = vadd.f32 0.0, %v1265
    %v1267 = vpop.f32.mrb[0].mxu0
    %v1268 = vadd.f32 0.0, %v1267
    %v1269 = vpop.f32.mrb[0].mxu0
    %v1270 = vadd.f32 0.0, %v1269
    %v1271 = vpop.f32.mrb[0].mxu0
    %v1272 = vadd.f32 0.0, %v1271
    %1273 = vmatprep.mubr.bf16.mxu0 0
    %1274 = vmatmul.mubr.bf16.gmra.mrb[0].mxu0 %v369
    %v1275 = vpop.f32.mrb[0].mxu0
    %v1276 = vadd.f32 0.0, %v1275
    %v1277 = vpop.f32.mrb[0].mxu0
    %v1278 = vadd.f32 0.0, %v1277
    %v1279 = vpop.f32.mrb[0].mxu0
    %v1280 = vadd.f32 0.0, %v1279
    %v1281 = vpop.f32.mrb[0].mxu0
    %v1282 = vadd.f32 0.0, %v1281
    %1283 = vmatprep.mubr.bf16.mxu0 0
    %1284 = vmatmul.mubr.bf16.gmra.mrb[0].mxu0 %v372
    %v1285 = vpop.f32.mrb[0].mxu0
    %v1286 = vadd.f32 0.0, %v1285
    %v1287 = vpop.f32.mrb[0].mxu0
    %v1288 = vadd.f32 0.0, %v1287
    %v1289 = vpop.f32.mrb[0].mxu0
    %v1290 = vadd.f32 0.0, %v1289
    %v1291 = vpop.f32.mrb[0].mxu0
    %v1292 = vadd.f32 0.0, %v1291
    %1293 = vmatprep.mubr.bf16.mxu0 0
    %1294 = vmatmul.mubr.bf16.gmra.mrb[0].mxu0 %v375
    %v1295 = vpop.f32.mrb[0].mxu0
    %v1296 = vadd.f32 0.0, %v1295
    %v1297 = vpop.f32.mrb[0].mxu0
    %v1298 = vadd.f32 0.0, %v1297
    %v1299 = vpop.f32.mrb[0].mxu0
    %v1300 = vadd.f32 0.0, %v1299
    %v1301 = vpop.f32.mrb[0].mxu0
    %v1302 = vadd.f32 0.0, %v1301
    %1303 = vmatprep.mubr.bf16.mxu0 0
    %1304 = vmatmul.mubr.bf16.gmra.mrb[0].mxu0 %v378
    %v1305 = vpop.f32.mrb[0].mxu0
    %v1306 = vadd.f32 0.0, %v1305
    %v1307 = vpop.f32.mrb[0].mxu0
    %v1308 = vadd.f32 0.0, %v1307
    %v1309 = vpop.f32.mrb[0].mxu0
    %v1310 = vadd.f32 0.0, %v1309
    %v1311 = vpop.f32.mrb[0].mxu0
    %v1312 = vadd.f32 0.0, %v1311
    %1313 = vmatprep.mubr.bf16.mxu0 0
    %1314 = vmatmul.mubr.bf16.gmra.mrb[0].mxu0 %v381
    %v1315 = vpop.f32.mrb[0].mxu0
    %v1316 = vadd.f32 0.0, %v1315
    %v1317 = vpop.f32.mrb[0].mxu0
    %v1318 = vadd.f32 0.0, %v1317
    %v1319 = vpop.f32.mrb[0].mxu0
    %v1320 = vadd.f32 0.0, %v1319
    %v1321 = vpop.f32.mrb[0].mxu0
    %v1322 = vadd.f32 0.0, %v1321
    %1323 = vmatprep.mubr.bf16.mxu0 0
    %1324 = vmatmul.mubr.bf16.gmra.mrb[0].mxu0 %v384
    %v1325 = vpop.f32.mrb[0].mxu0
    %v1326 = vadd.f32 0.0, %v1325
    %v1327 = vpop.f32.mrb[0].mxu0
    %v1328 = vadd.f32 0.0, %v1327
    %v1329 = vpop.f32.mrb[0].mxu0
    %v1330 = vadd.f32 0.0, %v1329
    %v1331 = vpop.f32.mrb[0].mxu0
    %v1332 = vadd.f32 0.0, %v1331
    %1333 = vdwg.mxu0
    %v1366 = vunpack.c.l.b16 %v980
    %v1367 = vunpack.c.h.b16 %v980
    %v1368 = vunpack.c.l.b16 %v981
    %v1369 = vunpack.c.h.b16 %v981
    %v1370 = vunpack.c.l.b16 %v982
    %v1371 = vunpack.c.h.b16 %v982
    %v1372 = vunpack.c.l.b16 %v983
    %v1373 = vunpack.c.h.b16 %v983
    %v1374 = vunpack.c.l.b16 %v984
    %v1375 = vunpack.c.h.b16 %v984
    %v1376 = vunpack.c.l.b16 %v985
    %v1377 = vunpack.c.h.b16 %v985
    %v1378 = vunpack.c.l.b16 %v986
    %v1379 = vunpack.c.h.b16 %v986
    %v1380 = vunpack.c.l.b16 %v987
    %v1381 = vunpack.c.h.b16 %v987
    %v1382 = vunpack.c.l.b16 %v988
    %v1383 = vunpack.c.h.b16 %v988
    %v1384 = vunpack.c.l.b16 %v989
    %v1385 = vunpack.c.h.b16 %v989
    %v1386 = vunpack.c.l.b16 %v990
    %v1387 = vunpack.c.h.b16 %v990
    %v1388 = vunpack.c.l.b16 %v991
    %v1389 = vunpack.c.h.b16 %v991
    %v1390 = vunpack.c.l.b16 %v992
    %v1391 = vunpack.c.h.b16 %v992
    %v1392 = vunpack.c.l.b16 %v993
    %v1393 = vunpack.c.h.b16 %v993
    %v1394 = vunpack.c.l.b16 %v994
    %v1395 = vunpack.c.h.b16 %v994
    %v1396 = vunpack.c.l.b16 %v995
    %v1397 = vunpack.c.h.b16 %v995
    %v1398 = vunpack.c.l.b16 %v996
    %v1399 = vunpack.c.h.b16 %v996
    %v1400 = vunpack.c.l.b16 %v997
    %v1401 = vunpack.c.h.b16 %v997
    %v1402 = vunpack.c.l.b16 %v998
    %v1403 = vunpack.c.h.b16 %v998
    %v1404 = vunpack.c.l.b16 %v999
    %v1405 = vunpack.c.h.b16 %v999
    %v1406 = vunpack.c.l.b16 %v1000
    %v1407 = vunpack.c.h.b16 %v1000
    %v1408 = vunpack.c.l.b16 %v1001
    %v1409 = vunpack.c.h.b16 %v1001
    %v1410 = vunpack.c.l.b16 %v1002
    %v1411 = vunpack.c.h.b16 %v1002
    %v1412 = vunpack.c.l.b16 %v1003
    %v1413 = vunpack.c.h.b16 %v1003
    %v1414 = vunpack.c.l.b16 %v1004
    %v1415 = vunpack.c.h.b16 %v1004
    %v1416 = vunpack.c.l.b16 %v1005
    %v1417 = vunpack.c.h.b16 %v1005
    %v1418 = vunpack.c.l.b16 %v1006
    %v1419 = vunpack.c.h.b16 %v1006
    %v1420 = vunpack.c.l.b16 %v1007
    %v1421 = vunpack.c.h.b16 %v1007
    %v1422 = vunpack.c.l.b16 %v1008
    %v1423 = vunpack.c.h.b16 %v1008
    %v1424 = vunpack.c.l.b16 %v1009
    %v1425 = vunpack.c.h.b16 %v1009
    %v1426 = vunpack.c.l.b16 %v1010
    %v1427 = vunpack.c.h.b16 %v1010
    %v1428 = vunpack.c.l.b16 %v1011
    %v1429 = vunpack.c.h.b16 %v1011
    %v1430 = vpack.c.b16 %v1370, %v1366
    %v1431 = vpack.c.b16 %v1371, %v1367
    %v1432 = vpack.c.b16 %v1372, %v1368
    %v1433 = vpack.c.b16 %v1373, %v1369
    %v1434 = vpack.c.b16 %v1378, %v1374
    %v1435 = vpack.c.b16 %v1379, %v1375
    %v1436 = vpack.c.b16 %v1380, %v1376
    %v1437 = vpack.c.b16 %v1381, %v1377
    %v1438 = vpack.c.b16 %v1386, %v1382
    %v1439 = vpack.c.b16 %v1387, %v1383
    %v1440 = vpack.c.b16 %v1388, %v1384
    %v1441 = vpack.c.b16 %v1389, %v1385
    %v1442 = vpack.c.b16 %v1394, %v1390
    %v1443 = vpack.c.b16 %v1395, %v1391
    %v1444 = vpack.c.b16 %v1396, %v1392
    %v1445 = vpack.c.b16 %v1397, %v1393
    %v1446 = vpack.c.b16 %v1402, %v1398
    %v1447 = vpack.c.b16 %v1403, %v1399
    %v1448 = vpack.c.b16 %v1404, %v1400
    %v1449 = vpack.c.b16 %v1405, %v1401
    %v1450 = vpack.c.b16 %v1410, %v1406
    %v1451 = vpack.c.b16 %v1411, %v1407
    %v1452 = vpack.c.b16 %v1412, %v1408
    %v1453 = vpack.c.b16 %v1413, %v1409
    %v1454 = vpack.c.b16 %v1418, %v1414
    %v1455 = vpack.c.b16 %v1419, %v1415
    %v1456 = vpack.c.b16 %v1420, %v1416
    %v1457 = vpack.c.b16 %v1421, %v1417
    %v1458 = vpack.c.b16 %v1426, %v1422
    %v1459 = vpack.c.b16 %v1427, %v1423
    %v1460 = vpack.c.b16 %v1428, %v1424
    %v1461 = vpack.c.b16 %v1429, %v1425
    %1494 = vmatprep.subr.bf16.mxu0 %v1431
    %1495 = vmatpush1.bf16.msra.mxu0 %v1430
    %1496 = vmatprep.subr.bf16.mxu0 %v1435
    %1497 = vmatpush1.bf16.msra.mxu0 %v1434
    %1498 = vmatprep.subr.bf16.mxu0 %v1439
    %1499 = vmatpush1.bf16.msra.mxu0 %v1438
    %1500 = vmatprep.subr.bf16.mxu0 %v1443
    %1501 = vmatpush1.bf16.msra.mxu0 %v1442
    %1502 = vmatprep.subr.bf16.mxu0 %v1447
    %1503 = vmatpush1.bf16.msra.mxu0 %v1446
    %1504 = vmatprep.subr.bf16.mxu0 %v1451
    %1505 = vmatpush1.bf16.msra.mxu0 %v1450
    %1506 = vmatprep.subr.bf16.mxu0 %v1455
    %1507 = vmatpush1.bf16.msra.mxu0 %v1454
    %1508 = vmatprep.subr.bf16.mxu0 %v1459
    %1509 = vmatpush1.bf16.msra.mxu0 %v1458
    %1510 = vmatprep.subr.bf16.mxu0 0
    %1511 = vmatpush1.bf16.msra.mxu0 0
    %1512 = vmatprep.subr.bf16.mxu0 0
    %1513 = vmatpush1.bf16.msra.mxu0 0
    %1514 = vmatprep.subr.bf16.mxu0 0
    %1515 = vmatpush1.bf16.msra.mxu0 0
    %1516 = vmatprep.subr.bf16.mxu0 0
    %1517 = vmatpush1.bf16.msra.mxu0 0
    %1518 = vmatprep.subr.bf16.mxu0 0
    %1519 = vmatpush1.bf16.msra.mxu0 0
    %1520 = vmatprep.subr.bf16.mxu0 0
    %1521 = vmatpush1.bf16.msra.mxu0 0
    %1522 = vmatprep.subr.bf16.mxu0 0
    %1523 = vmatpush1.bf16.msra.mxu0 0
    %1524 = vmatprep.subr.bf16.mxu0 0
    %1525 = vmatpush1.bf16.msra.mxu0 0
    %1526 = vmatprep.mubr.bf16.mxu0 0
    %1527 = vmatmul.mubr.bf16.gmra.mrb[0].mxu0 %v64
    %v1528 = vpop.f32.mrb[0].mxu0
    %v1529 = vadd.f32 %v1143, %v1528
    %v1530 = vpop.f32.mrb[0].mxu0
    %v1531 = vadd.f32 %v1145, %v1530
    %v1532 = vpop.f32.mrb[0].mxu0
    %v1533 = vadd.f32 %v1147, %v1532
    %v1534 = vpop.f32.mrb[0].mxu0
    %v1535 = vadd.f32 %v1149, %v1534
    %1536 = vmatprep.mubr.bf16.mxu0 0
    %1537 = vmatmul.mubr.bf16.gmra.mrb[0].mxu0 %v65
    %v1538 = vpop.f32.mrb[0].mxu0
    %v1539 = vadd.f32 %v1153, %v1538
    %v1540 = vpop.f32.mrb[0].mxu0
    %v1541 = vadd.f32 %v1155, %v1540
    %v1542 = vpop.f32.mrb[0].mxu0
    %v1543 = vadd.f32 %v1157, %v1542
    %v1544 = vpop.f32.mrb[0].mxu0
    %v1545 = vadd.f32 %v1159, %v1544
    %1546 = vmatprep.mubr.bf16.mxu0 0
    %1547 = vmatmul.mubr.bf16.gmra.mrb[0].mxu0 %v66
    %v1548 = vpop.f32.mrb[0].mxu0
    %v1549 = vadd.f32 %v1163, %v1548
    %v1550 = vpop.f32.mrb[0].mxu0
    %v1551 = vadd.f32 %v1165, %v1550
    %v1552 = vpop.f32.mrb[0].mxu0
    %v1553 = vadd.f32 %v1167, %v1552
    %v1554 = vpop.f32.mrb[0].mxu0
    %v1555 = vadd.f32 %v1169, %v1554
    %1556 = vmatprep.mubr.bf16.mxu0 0
    %1557 = vmatmul.mubr.bf16.gmra.mrb[0].mxu0 %v67
    %v1558 = vpop.f32.mrb[0].mxu0
    %v1559 = vadd.f32 %v1173, %v1558
    %v1560 = vpop.f32.mrb[0].mxu0
    %v1561 = vadd.f32 %v1175, %v1560
    %v1562 = vpop.f32.mrb[0].mxu0
    %v1563 = vadd.f32 %v1177, %v1562
    %v1564 = vpop.f32.mrb[0].mxu0
    %v1565 = vadd.f32 %v1179, %v1564
    %1566 = vmatprep.mubr.bf16.mxu0 0
    %1567 = vmatmul.mubr.bf16.gmra.mrb[0].mxu0 %v68
    %v1568 = vpop.f32.mrb[0].mxu0
    %v1569 = vadd.f32 %v1183, %v1568
    %v1570 = vpop.f32.mrb[0].mxu0
    %v1571 = vadd.f32 %v1185, %v1570
    %v1572 = vpop.f32.mrb[0].mxu0
    %v1573 = vadd.f32 %v1187, %v1572
    %v1574 = vpop.f32.mrb[0].mxu0
    %v1575 = vadd.f32 %v1189, %v1574
    %1576 = vmatprep.mubr.bf16.mxu0 0
    %1577 = vmatmul.mubr.bf16.gmra.mrb[0].mxu0 %v69
    %v1578 = vpop.f32.mrb[0].mxu0
    %v1579 = vadd.f32 %v1193, %v1578
    %v1580 = vpop.f32.mrb[0].mxu0
    %v1581 = vadd.f32 %v1195, %v1580
    %v1582 = vpop.f32.mrb[0].mxu0
    %v1583 = vadd.f32 %v1197, %v1582
    %v1584 = vpop.f32.mrb[0].mxu0
    %v1585 = vadd.f32 %v1199, %v1584
    %1586 = vmatprep.mubr.bf16.mxu0 0
    %1587 = vmatmul.mubr.bf16.gmra.mrb[0].mxu0 %v70
    %v1588 = vpop.f32.mrb[0].mxu0
    %v1589 = vadd.f32 %v1203, %v1588
    %v1590 = vpop.f32.mrb[0].mxu0
    %v1591 = vadd.f32 %v1205, %v1590
    %v1592 = vpop.f32.mrb[0].mxu0
    %v1593 = vadd.f32 %v1207, %v1592
    %v1594 = vpop.f32.mrb[0].mxu0
    %v1595 = vadd.f32 %v1209, %v1594
    %1596 = vmatprep.mubr.bf16.mxu0 0
    %1597 = vmatmul.mubr.bf16.gmra.mrb[0].mxu0 %v71
    %v1598 = vpop.f32.mrb[0].mxu0
    %v1599 = vadd.f32 %v1213, %v1598
    %v1600 = vpop.f32.mrb[0].mxu0
    %v1601 = vadd.f32 %v1215, %v1600
    %v1602 = vpop.f32.mrb[0].mxu0
    %v1603 = vadd.f32 %v1217, %v1602
    %v1604 = vpop.f32.mrb[0].mxu0
    %v1605 = vadd.f32 %v1219, %v1604
    %1606 = vdwg.mxu0
    %1607 = vmatprep.subr.bf16.mxu0 %v1433
    %1608 = vmatpush1.bf16.msra.mxu0 %v1432
    %1609 = vmatprep.subr.bf16.mxu0 %v1437
    %1610 = vmatpush1.bf16.msra.mxu0 %v1436
    %1611 = vmatprep.subr.bf16.mxu0 %v1441
    %1612 = vmatpush1.bf16.msra.mxu0 %v1440
    %1613 = vmatprep.subr.bf16.mxu0 %v1445
    %1614 = vmatpush1.bf16.msra.mxu0 %v1444
    %1615 = vmatprep.subr.bf16.mxu0 %v1449
    %1616 = vmatpush1.bf16.msra.mxu0 %v1448
    %1617 = vmatprep.subr.bf16.mxu0 %v1453
    %1618 = vmatpush1.bf16.msra.mxu0 %v1452
    %1619 = vmatprep.subr.bf16.mxu0 %v1457
    %1620 = vmatpush1.bf16.msra.mxu0 %v1456
    %1621 = vmatprep.subr.bf16.mxu0 %v1461
    %1622 = vmatpush1.bf16.msra.mxu0 %v1460
    %1623 = vmatprep.subr.bf16.mxu0 0
    %1624 = vmatpush1.bf16.msra.mxu0 0
    %1625 = vmatprep.subr.bf16.mxu0 0
    %1626 = vmatpush1.bf16.msra.mxu0 0
    %1627 = vmatprep.subr.bf16.mxu0 0
    %1628 = vmatpush1.bf16.msra.mxu0 0
    %1629 = vmatprep.subr.bf16.mxu0 0
    %1630 = vmatpush1.bf16.msra.mxu0 0
    %1631 = vmatprep.subr.bf16.mxu0 0
    %1632 = vmatpush1.bf16.msra.mxu0 0
    %1633 = vmatprep.subr.bf16.mxu0 0
    %1634 = vmatpush1.bf16.msra.mxu0 0
    %1635 = vmatprep.subr.bf16.mxu0 0
    %1636 = vmatpush1.bf16.msra.mxu0 0
    %1637 = vmatprep.subr.bf16.mxu0 0
    %1638 = vmatpush1.bf16.msra.mxu0 0
    %1639 = vmatprep.mubr.bf16.mxu0 0
    %1640 = vmatmul.mubr.bf16.gmra.mrb[0].mxu0 %v64
    %v1641 = vpop.f32.mrb[0].mxu0
    %v1642 = vadd.f32 %v1256, %v1641
    %v1643 = vpop.f32.mrb[0].mxu0
    %v1644 = vadd.f32 %v1258, %v1643
    %v1645 = vpop.f32.mrb[0].mxu0
    %v1646 = vadd.f32 %v1260, %v1645
    %v1647 = vpop.f32.mrb[0].mxu0
    %v1648 = vadd.f32 %v1262, %v1647
    %1649 = vmatprep.mubr.bf16.mxu0 0
    %1650 = vmatmul.mubr.bf16.gmra.mrb[0].mxu0 %v65
    %v1651 = vpop.f32.mrb[0].mxu0
    %v1652 = vadd.f32 %v1266, %v1651
    %v1653 = vpop.f32.mrb[0].mxu0
    %v1654 = vadd.f32 %v1268, %v1653
    %v1655 = vpop.f32.mrb[0].mxu0
    %v1656 = vadd.f32 %v1270, %v1655
    %v1657 = vpop.f32.mrb[0].mxu0
    %v1658 = vadd.f32 %v1272, %v1657
    %1659 = vmatprep.mubr.bf16.mxu0 0
    %1660 = vmatmul.mubr.bf16.gmra.mrb[0].mxu0 %v66
    %v1661 = vpop.f32.mrb[0].mxu0
    %v1662 = vadd.f32 %v1276, %v1661
    %v1663 = vpop.f32.mrb[0].mxu0
    %v1664 = vadd.f32 %v1278, %v1663
    %v1665 = vpop.f32.mrb[0].mxu0
    %v1666 = vadd.f32 %v1280, %v1665
    %v1667 = vpop.f32.mrb[0].mxu0
    %v1668 = vadd.f32 %v1282, %v1667
    %1669 = vmatprep.mubr.bf16.mxu0 0
    %1670 = vmatmul.mubr.bf16.gmra.mrb[0].mxu0 %v67
    %v1671 = vpop.f32.mrb[0].mxu0
    %v1672 = vadd.f32 %v1286, %v1671
    %v1673 = vpop.f32.mrb[0].mxu0
    %v1674 = vadd.f32 %v1288, %v1673
    %v1675 = vpop.f32.mrb[0].mxu0
    %v1676 = vadd.f32 %v1290, %v1675
    %v1677 = vpop.f32.mrb[0].mxu0
    %v1678 = vadd.f32 %v1292, %v1677
    %1679 = vmatprep.mubr.bf16.mxu0 0
    %1680 = vmatmul.mubr.bf16.gmra.mrb[0].mxu0 %v68
    %v1681 = vpop.f32.mrb[0].mxu0
    %v1682 = vadd.f32 %v1296, %v1681
    %v1683 = vpop.f32.mrb[0].mxu0
    %v1684 = vadd.f32 %v1298, %v1683
    %v1685 = vpop.f32.mrb[0].mxu0
    %v1686 = vadd.f32 %v1300, %v1685
    %v1687 = vpop.f32.mrb[0].mxu0
    %v1688 = vadd.f32 %v1302, %v1687
    %1689 = vmatprep.mubr.bf16.mxu0 0
    %1690 = vmatmul.mubr.bf16.gmra.mrb[0].mxu0 %v69
    %v1691 = vpop.f32.mrb[0].mxu0
    %v1692 = vadd.f32 %v1306, %v1691
    %v1693 = vpop.f32.mrb[0].mxu0
    %v1694 = vadd.f32 %v1308, %v1693
    %v1695 = vpop.f32.mrb[0].mxu0
    %v1696 = vadd.f32 %v1310, %v1695
    %v1697 = vpop.f32.mrb[0].mxu0
    %v1698 = vadd.f32 %v1312, %v1697
    %1699 = vmatprep.mubr.bf16.mxu0 0
    %1700 = vmatmul.mubr.bf16.gmra.mrb[0].mxu0 %v70
    %v1701 = vpop.f32.mrb[0].mxu0
    %v1702 = vadd.f32 %v1316, %v1701
    %v1703 = vpop.f32.mrb[0].mxu0
    %v1704 = vadd.f32 %v1318, %v1703
    %v1705 = vpop.f32.mrb[0].mxu0
    %v1706 = vadd.f32 %v1320, %v1705
    %v1707 = vpop.f32.mrb[0].mxu0
    %v1708 = vadd.f32 %v1322, %v1707
    %1709 = vmatprep.mubr.bf16.mxu0 0
    %1710 = vmatmul.mubr.bf16.gmra.mrb[0].mxu0 %v71
    %v1711 = vpop.f32.mrb[0].mxu0
    %v1712 = vadd.f32 %v1326, %v1711
    %v1713 = vpop.f32.mrb[0].mxu0
    %v1714 = vadd.f32 %v1328, %v1713
    %v1715 = vpop.f32.mrb[0].mxu0
    %v1716 = vadd.f32 %v1330, %v1715
    %v1717 = vpop.f32.mrb[0].mxu0
    %v1718 = vadd.f32 %v1332, %v1717
    %1719 = vdwg.mxu0
    %v1720 = vld [vmem:[%s5 + $0x180] sm:$0xff]
    %v1721 = vld [vmem:[%s5 + $0x188] sm:$0xff]
    %v1722 = vld [vmem:[%s5 + $0x190] sm:$0xff]
    %v1723 = vld [vmem:[%s5 + $0x198] sm:$0xff]
    %v1724 = vld [vmem:[%s5 + $0x1a0] sm:$0xff]
    %v1725 = vld [vmem:[%s5 + $0x1a8] sm:$0xff]
    %v1726 = vld [vmem:[%s5 + $0x1b0] sm:$0xff]
    %v1727 = vld [vmem:[%s5 + $0x1b8] sm:$0xff]
    %v1728 = vld [vmem:[%s5 + $0x1c0] sm:$0xff]
    %v1729 = vld [vmem:[%s5 + $0x1c8] sm:$0xff]
    %v1730 = vld [vmem:[%s5 + $0x1d0] sm:$0xff]
    %v1731 = vld [vmem:[%s5 + $0x1d8] sm:$0xff]
    %v1732 = vld [vmem:[%s5 + $0x1e0] sm:$0xff]
    %v1733 = vld [vmem:[%s5 + $0x1e8] sm:$0xff]
    %v1734 = vld [vmem:[%s5 + $0x1f0] sm:$0xff]
    %v1735 = vld [vmem:[%s5 + $0x1f8] sm:$0xff]
    %v1752 = vunpack.c.l.b16 %v1720
    %v1753 = vunpack.c.h.b16 %v1720
    %v1754 = vunpack.c.l.b16 %v1721
    %v1755 = vunpack.c.h.b16 %v1721
    %v1756 = vunpack.c.l.b16 %v1722
    %v1757 = vunpack.c.h.b16 %v1722
    %v1758 = vunpack.c.l.b16 %v1723
    %v1759 = vunpack.c.h.b16 %v1723
    %v1760 = vunpack.c.l.b16 %v1724
    %v1761 = vunpack.c.h.b16 %v1724
    %v1762 = vunpack.c.l.b16 %v1725
    %v1763 = vunpack.c.h.b16 %v1725
    %v1764 = vunpack.c.l.b16 %v1726
    %v1765 = vunpack.c.h.b16 %v1726
    %v1766 = vunpack.c.l.b16 %v1727
    %v1767 = vunpack.c.h.b16 %v1727
    %v1768 = vunpack.c.l.b16 %v1728
    %v1769 = vunpack.c.h.b16 %v1728
    %v1770 = vunpack.c.l.b16 %v1729
    %v1771 = vunpack.c.h.b16 %v1729
    %v1772 = vunpack.c.l.b16 %v1730
    %v1773 = vunpack.c.h.b16 %v1730
    %v1774 = vunpack.c.l.b16 %v1731
    %v1775 = vunpack.c.h.b16 %v1731
    %v1776 = vunpack.c.l.b16 %v1732
    %v1777 = vunpack.c.h.b16 %v1732
    %v1778 = vunpack.c.l.b16 %v1733
    %v1779 = vunpack.c.h.b16 %v1733
    %v1780 = vunpack.c.l.b16 %v1734
    %v1781 = vunpack.c.h.b16 %v1734
    %v1782 = vunpack.c.l.b16 %v1735
    %v1783 = vunpack.c.h.b16 %v1735
    %v1784 = vpack.c.b16 %v1756, %v1752
    %v1785 = vpack.c.b16 %v1757, %v1753
    %v1786 = vpack.c.b16 %v1758, %v1754
    %v1787 = vpack.c.b16 %v1759, %v1755
    %v1788 = vpack.c.b16 %v1764, %v1760
    %v1789 = vpack.c.b16 %v1765, %v1761
    %v1790 = vpack.c.b16 %v1766, %v1762
    %v1791 = vpack.c.b16 %v1767, %v1763
    %v1792 = vpack.c.b16 %v1772, %v1768
    %v1793 = vpack.c.b16 %v1773, %v1769
    %v1794 = vpack.c.b16 %v1774, %v1770
    %v1795 = vpack.c.b16 %v1775, %v1771
    %v1796 = vpack.c.b16 %v1780, %v1776
    %v1797 = vpack.c.b16 %v1781, %v1777
    %v1798 = vpack.c.b16 %v1782, %v1778
    %v1799 = vpack.c.b16 %v1783, %v1779
    %v1817 = vsel %vm361, %v136, 0
    %v1820 = vsel %vm361, %v137, 0
    %v1823 = vsel %vm361, %v138, 0
    %v1826 = vsel %vm361, %v139, 0
    %v1829 = vsel %vm361, %v140, 0
    %v1832 = vsel %vm361, %v141, 0
    %v1835 = vsel %vm361, %v142, 0
    %v1838 = vsel %vm361, %v143, 0
    %1840 = vmatprep.subr.bf16.mxu0 %v1785
    %1841 = vmatpush1.bf16.msra.mxu0 %v1784
    %1842 = vmatprep.subr.bf16.mxu0 %v1789
    %1843 = vmatpush1.bf16.msra.mxu0 %v1788
    %1844 = vmatprep.subr.bf16.mxu0 %v1793
    %1845 = vmatpush1.bf16.msra.mxu0 %v1792
    %1846 = vmatprep.subr.bf16.mxu0 %v1797
    %1847 = vmatpush1.bf16.msra.mxu0 %v1796
    %1848 = vmatprep.subr.bf16.mxu0 0
    %1849 = vmatpush1.bf16.msra.mxu0 0
    %1850 = vmatprep.subr.bf16.mxu0 0
    %1851 = vmatpush1.bf16.msra.mxu0 0
    %1852 = vmatprep.subr.bf16.mxu0 0
    %1853 = vmatpush1.bf16.msra.mxu0 0
    %1854 = vmatprep.subr.bf16.mxu0 0
    %1855 = vmatpush1.bf16.msra.mxu0 0
    %1856 = vmatprep.subr.bf16.mxu0 0
    %1857 = vmatpush1.bf16.msra.mxu0 0
    %1858 = vmatprep.subr.bf16.mxu0 0
    %1859 = vmatpush1.bf16.msra.mxu0 0
    %1860 = vmatprep.subr.bf16.mxu0 0
    %1861 = vmatpush1.bf16.msra.mxu0 0
    %1862 = vmatprep.subr.bf16.mxu0 0
    %1863 = vmatpush1.bf16.msra.mxu0 0
    %1864 = vmatprep.subr.bf16.mxu0 0
    %1865 = vmatpush1.bf16.msra.mxu0 0
    %1866 = vmatprep.subr.bf16.mxu0 0
    %1867 = vmatpush1.bf16.msra.mxu0 0
    %1868 = vmatprep.subr.bf16.mxu0 0
    %1869 = vmatpush1.bf16.msra.mxu0 0
    %1870 = vmatprep.subr.bf16.mxu0 0
    %1871 = vmatpush1.bf16.msra.mxu0 0
    %1872 = vmatprep.mubr.bf16.mxu0 0
    %1873 = vmatmul.mubr.bf16.gmra.mrb[0].mxu0 %v1817
    %v1874 = vpop.f32.mrb[0].mxu0
    %v1875 = vadd.f32 0.0, %v1874
    %v1876 = vpop.f32.mrb[0].mxu0
    %v1877 = vadd.f32 0.0, %v1876
    %v1878 = vpop.f32.mrb[0].mxu0
    %v1879 = vadd.f32 0.0, %v1878
    %v1880 = vpop.f32.mrb[0].mxu0
    %v1881 = vadd.f32 0.0, %v1880
    %1882 = vmatprep.mubr.bf16.mxu0 0
    %1883 = vmatmul.mubr.bf16.gmra.mrb[0].mxu0 %v1820
    %v1884 = vpop.f32.mrb[0].mxu0
    %v1885 = vadd.f32 0.0, %v1884
    %v1886 = vpop.f32.mrb[0].mxu0
    %v1887 = vadd.f32 0.0, %v1886
    %v1888 = vpop.f32.mrb[0].mxu0
    %v1889 = vadd.f32 0.0, %v1888
    %v1890 = vpop.f32.mrb[0].mxu0
    %v1891 = vadd.f32 0.0, %v1890
    %1892 = vmatprep.mubr.bf16.mxu0 0
    %1893 = vmatmul.mubr.bf16.gmra.mrb[0].mxu0 %v1823
    %v1894 = vpop.f32.mrb[0].mxu0
    %v1895 = vadd.f32 0.0, %v1894
    %v1896 = vpop.f32.mrb[0].mxu0
    %v1897 = vadd.f32 0.0, %v1896
    %v1898 = vpop.f32.mrb[0].mxu0
    %v1899 = vadd.f32 0.0, %v1898
    %v1900 = vpop.f32.mrb[0].mxu0
    %v1901 = vadd.f32 0.0, %v1900
    %1902 = vmatprep.mubr.bf16.mxu0 0
    %1903 = vmatmul.mubr.bf16.gmra.mrb[0].mxu0 %v1826
    %v1904 = vpop.f32.mrb[0].mxu0
    %v1905 = vadd.f32 0.0, %v1904
    %v1906 = vpop.f32.mrb[0].mxu0
    %v1907 = vadd.f32 0.0, %v1906
    %v1908 = vpop.f32.mrb[0].mxu0
    %v1909 = vadd.f32 0.0, %v1908
    %v1910 = vpop.f32.mrb[0].mxu0
    %v1911 = vadd.f32 0.0, %v1910
    %1912 = vmatprep.mubr.bf16.mxu0 0
    %1913 = vmatmul.mubr.bf16.gmra.mrb[0].mxu0 %v1829
    %v1914 = vpop.f32.mrb[0].mxu0
    %v1915 = vadd.f32 0.0, %v1914
    %v1916 = vpop.f32.mrb[0].mxu0
    %v1917 = vadd.f32 0.0, %v1916
    %v1918 = vpop.f32.mrb[0].mxu0
    %v1919 = vadd.f32 0.0, %v1918
    %v1920 = vpop.f32.mrb[0].mxu0
    %v1921 = vadd.f32 0.0, %v1920
    %1922 = vmatprep.mubr.bf16.mxu0 0
    %1923 = vmatmul.mubr.bf16.gmra.mrb[0].mxu0 %v1832
    %v1924 = vpop.f32.mrb[0].mxu0
    %v1925 = vadd.f32 0.0, %v1924
    %v1926 = vpop.f32.mrb[0].mxu0
    %v1927 = vadd.f32 0.0, %v1926
    %v1928 = vpop.f32.mrb[0].mxu0
    %v1929 = vadd.f32 0.0, %v1928
    %v1930 = vpop.f32.mrb[0].mxu0
    %v1931 = vadd.f32 0.0, %v1930
    %1932 = vmatprep.mubr.bf16.mxu0 0
    %1933 = vmatmul.mubr.bf16.gmra.mrb[0].mxu0 %v1835
    %v1934 = vpop.f32.mrb[0].mxu0
    %v1935 = vadd.f32 0.0, %v1934
    %v1936 = vpop.f32.mrb[0].mxu0
    %v1937 = vadd.f32 0.0, %v1936
    %v1938 = vpop.f32.mrb[0].mxu0
    %v1939 = vadd.f32 0.0, %v1938
    %v1940 = vpop.f32.mrb[0].mxu0
    %v1941 = vadd.f32 0.0, %v1940
    %1942 = vmatprep.mubr.bf16.mxu0 0
    %1943 = vmatmul.mubr.bf16.gmra.mrb[0].mxu0 %v1838
    %v1944 = vpop.f32.mrb[0].mxu0
    %v1945 = vadd.f32 0.0, %v1944
    %v1946 = vpop.f32.mrb[0].mxu0
    %v1947 = vadd.f32 0.0, %v1946
    %v1948 = vpop.f32.mrb[0].mxu0
    %v1949 = vadd.f32 0.0, %v1948
    %v1950 = vpop.f32.mrb[0].mxu0
    %v1951 = vadd.f32 0.0, %v1950
    %1952 = vdwg.mxu0
    %1953 = vmatprep.subr.bf16.mxu0 %v1787
    %1954 = vmatpush1.bf16.msra.mxu0 %v1786
    %1955 = vmatprep.subr.bf16.mxu0 %v1791
    %1956 = vmatpush1.bf16.msra.mxu0 %v1790
    %1957 = vmatprep.subr.bf16.mxu0 %v1795
    %1958 = vmatpush1.bf16.msra.mxu0 %v1794
    %1959 = vmatprep.subr.bf16.mxu0 %v1799
    %1960 = vmatpush1.bf16.msra.mxu0 %v1798
    %1961 = vmatprep.subr.bf16.mxu0 0
    %1962 = vmatpush1.bf16.msra.mxu0 0
    %1963 = vmatprep.subr.bf16.mxu0 0
    %1964 = vmatpush1.bf16.msra.mxu0 0
    %1965 = vmatprep.subr.bf16.mxu0 0
    %1966 = vmatpush1.bf16.msra.mxu0 0
    %1967 = vmatprep.subr.bf16.mxu0 0
    %1968 = vmatpush1.bf16.msra.mxu0 0
    %1969 = vmatprep.subr.bf16.mxu0 0
    %1970 = vmatpush1.bf16.msra.mxu0 0
    %1971 = vmatprep.subr.bf16.mxu0 0
    %1972 = vmatpush1.bf16.msra.mxu0 0
    %1973 = vmatprep.subr.bf16.mxu0 0
    %1974 = vmatpush1.bf16.msra.mxu0 0
    %1975 = vmatprep.subr.bf16.mxu0 0
    %1976 = vmatpush1.bf16.msra.mxu0 0
    %1977 = vmatprep.subr.bf16.mxu0 0
    %1978 = vmatpush1.bf16.msra.mxu0 0
    %1979 = vmatprep.subr.bf16.mxu0 0
    %1980 = vmatpush1.bf16.msra.mxu0 0
    %1981 = vmatprep.subr.bf16.mxu0 0
    %1982 = vmatpush1.bf16.msra.mxu0 0
    %1983 = vmatprep.subr.bf16.mxu0 0
    %1984 = vmatpush1.bf16.msra.mxu0 0
    %1985 = vmatprep.mubr.bf16.mxu0 0
    %1986 = vmatmul.mubr.bf16.gmra.mrb[0].mxu0 %v1817
    %v1987 = vpop.f32.mrb[0].mxu0
    %v1988 = vadd.f32 0.0, %v1987
    %v1989 = vpop.f32.mrb[0].mxu0
    %v1990 = vadd.f32 0.0, %v1989
    %v1991 = vpop.f32.mrb[0].mxu0
    %v1992 = vadd.f32 0.0, %v1991
    %v1993 = vpop.f32.mrb[0].mxu0
    %v1994 = vadd.f32 0.0, %v1993
    %1995 = vmatprep.mubr.bf16.mxu0 0
    %1996 = vmatmul.mubr.bf16.gmra.mrb[0].mxu0 %v1820
    %v1997 = vpop.f32.mrb[0].mxu0
    %v1998 = vadd.f32 0.0, %v1997
    %v1999 = vpop.f32.mrb[0].mxu0
    %v2000 = vadd.f32 0.0, %v1999
    %v2001 = vpop.f32.mrb[0].mxu0
    %v2002 = vadd.f32 0.0, %v2001
    %v2003 = vpop.f32.mrb[0].mxu0
    %v2004 = vadd.f32 0.0, %v2003
    %2005 = vmatprep.mubr.bf16.mxu0 0
    %2006 = vmatmul.mubr.bf16.gmra.mrb[0].mxu0 %v1823
    %v2007 = vpop.f32.mrb[0].mxu0
    %v2008 = vadd.f32 0.0, %v2007
    %v2009 = vpop.f32.mrb[0].mxu0
    %v2010 = vadd.f32 0.0, %v2009
    %v2011 = vpop.f32.mrb[0].mxu0
    %v2012 = vadd.f32 0.0, %v2011
    %v2013 = vpop.f32.mrb[0].mxu0
    %v2014 = vadd.f32 0.0, %v2013
    %2015 = vmatprep.mubr.bf16.mxu0 0
    %2016 = vmatmul.mubr.bf16.gmra.mrb[0].mxu0 %v1826
    %v2017 = vpop.f32.mrb[0].mxu0
    %v2018 = vadd.f32 0.0, %v2017
    %v2019 = vpop.f32.mrb[0].mxu0
    %v2020 = vadd.f32 0.0, %v2019
    %v2021 = vpop.f32.mrb[0].mxu0
    %v2022 = vadd.f32 0.0, %v2021
    %v2023 = vpop.f32.mrb[0].mxu0
    %v2024 = vadd.f32 0.0, %v2023
    %2025 = vmatprep.mubr.bf16.mxu0 0
    %2026 = vmatmul.mubr.bf16.gmra.mrb[0].mxu0 %v1829
    %v2027 = vpop.f32.mrb[0].mxu0
    %v2028 = vadd.f32 0.0, %v2027
    %v2029 = vpop.f32.mrb[0].mxu0
    %v2030 = vadd.f32 0.0, %v2029
    %v2031 = vpop.f32.mrb[0].mxu0
    %v2032 = vadd.f32 0.0, %v2031
    %v2033 = vpop.f32.mrb[0].mxu0
    %v2034 = vadd.f32 0.0, %v2033
    %2035 = vmatprep.mubr.bf16.mxu0 0
    %2036 = vmatmul.mubr.bf16.gmra.mrb[0].mxu0 %v1832
    %v2037 = vpop.f32.mrb[0].mxu0
    %v2038 = vadd.f32 0.0, %v2037
    %v2039 = vpop.f32.mrb[0].mxu0
    %v2040 = vadd.f32 0.0, %v2039
    %v2041 = vpop.f32.mrb[0].mxu0
    %v2042 = vadd.f32 0.0, %v2041
    %v2043 = vpop.f32.mrb[0].mxu0
    %v2044 = vadd.f32 0.0, %v2043
    %2045 = vmatprep.mubr.bf16.mxu0 0
    %2046 = vmatmul.mubr.bf16.gmra.mrb[0].mxu0 %v1835
    %v2047 = vpop.f32.mrb[0].mxu0
    %v2048 = vadd.f32 0.0, %v2047
    %v2049 = vpop.f32.mrb[0].mxu0
    %v2050 = vadd.f32 0.0, %v2049
    %v2051 = vpop.f32.mrb[0].mxu0
    %v2052 = vadd.f32 0.0, %v2051
    %v2053 = vpop.f32.mrb[0].mxu0
    %v2054 = vadd.f32 0.0, %v2053
    %2055 = vmatprep.mubr.bf16.mxu0 0
    %2056 = vmatmul.mubr.bf16.gmra.mrb[0].mxu0 %v1838
    %v2057 = vpop.f32.mrb[0].mxu0
    %v2058 = vadd.f32 0.0, %v2057
    %v2059 = vpop.f32.mrb[0].mxu0
    %v2060 = vadd.f32 0.0, %v2059
    %v2061 = vpop.f32.mrb[0].mxu0
    %v2062 = vadd.f32 0.0, %v2061
    %v2063 = vpop.f32.mrb[0].mxu0
    %v2064 = vadd.f32 0.0, %v2063
    %2065 = vdwg.mxu0
    %v2066 = vadd.f32 %v1529, %v1875
    %v2067 = vadd.f32 %v1531, %v1877
    %v2068 = vadd.f32 %v1642, %v1988
    %v2069 = vadd.f32 %v1644, %v1990
    %v2070 = vadd.f32 %v1533, %v1879
    %v2071 = vadd.f32 %v1535, %v1881
    %v2072 = vadd.f32 %v1646, %v1992
    %v2073 = vadd.f32 %v1648, %v1994
    %v2074 = vadd.f32 %v1539, %v1885
    %v2075 = vadd.f32 %v1541, %v1887
    %v2076 = vadd.f32 %v1652, %v1998
    %v2077 = vadd.f32 %v1654, %v2000
    %v2078 = vadd.f32 %v1543, %v1889
    %v2079 = vadd.f32 %v1545, %v1891
    %v2080 = vadd.f32 %v1656, %v2002
    %v2081 = vadd.f32 %v1658, %v2004
    %v2082 = vadd.f32 %v1549, %v1895
    %v2083 = vadd.f32 %v1551, %v1897
    %v2084 = vadd.f32 %v1662, %v2008
    %v2085 = vadd.f32 %v1664, %v2010
    %v2086 = vadd.f32 %v1553, %v1899
    %v2087 = vadd.f32 %v1555, %v1901
    %v2088 = vadd.f32 %v1666, %v2012
    %v2089 = vadd.f32 %v1668, %v2014
    %v2090 = vadd.f32 %v1559, %v1905
    %v2091 = vadd.f32 %v1561, %v1907
    %v2092 = vadd.f32 %v1672, %v2018
    %v2093 = vadd.f32 %v1674, %v2020
    %v2094 = vadd.f32 %v1563, %v1909
    %v2095 = vadd.f32 %v1565, %v1911
    %v2096 = vadd.f32 %v1676, %v2022
    %v2097 = vadd.f32 %v1678, %v2024
    %v2098 = vadd.f32 %v1569, %v1915
    %v2099 = vadd.f32 %v1571, %v1917
    %v2100 = vadd.f32 %v1682, %v2028
    %v2101 = vadd.f32 %v1684, %v2030
    %v2102 = vadd.f32 %v1573, %v1919
    %v2103 = vadd.f32 %v1575, %v1921
    %v2104 = vadd.f32 %v1686, %v2032
    %v2105 = vadd.f32 %v1688, %v2034
    %v2106 = vadd.f32 %v1579, %v1925
    %v2107 = vadd.f32 %v1581, %v1927
    %v2108 = vadd.f32 %v1692, %v2038
    %v2109 = vadd.f32 %v1694, %v2040
    %v2110 = vadd.f32 %v1583, %v1929
    %v2111 = vadd.f32 %v1585, %v1931
    %v2112 = vadd.f32 %v1696, %v2042
    %v2113 = vadd.f32 %v1698, %v2044
    %v2114 = vadd.f32 %v1589, %v1935
    %v2115 = vadd.f32 %v1591, %v1937
    %v2116 = vadd.f32 %v1702, %v2048
    %v2117 = vadd.f32 %v1704, %v2050
    %v2118 = vadd.f32 %v1593, %v1939
    %v2119 = vadd.f32 %v1595, %v1941
    %v2120 = vadd.f32 %v1706, %v2052
    %v2121 = vadd.f32 %v1708, %v2054
    %v2122 = vadd.f32 %v1599, %v1945
    %v2123 = vadd.f32 %v1601, %v1947
    %v2124 = vadd.f32 %v1712, %v2058
    %v2125 = vadd.f32 %v1714, %v2060
    %v2126 = vadd.f32 %v1603, %v1949
    %v2127 = vadd.f32 %v1605, %v1951
    %v2128 = vadd.f32 %v1716, %v2062
    %v2129 = vadd.f32 %v1718, %v2064
    %v2130 = vld [vmem:[%s5 + $0x200] sm:$0xff]
    %v2131 = vld [vmem:[%s5 + $0x208] sm:$0xff]
    %v2132 = vld [vmem:[%s5 + $0x210] sm:$0xff]
    %v2133 = vld [vmem:[%s5 + $0x218] sm:$0xff]
    %v2134 = vld [vmem:[%s5 + $0x220] sm:$0xff]
    %v2135 = vld [vmem:[%s5 + $0x228] sm:$0xff]
    %v2136 = vld [vmem:[%s5 + $0x230] sm:$0xff]
    %v2137 = vld [vmem:[%s5 + $0x238] sm:$0xff]
    %v2138 = vld [vmem:[%s5 + $0x240] sm:$0xff]
    %v2139 = vld [vmem:[%s5 + $0x248] sm:$0xff]
    %v2140 = vld [vmem:[%s5 + $0x250] sm:$0xff]
    %v2141 = vld [vmem:[%s5 + $0x258] sm:$0xff]
    %v2142 = vld [vmem:[%s5 + $0x260] sm:$0xff]
    %v2143 = vld [vmem:[%s5 + $0x268] sm:$0xff]
    %v2144 = vld [vmem:[%s5 + $0x270] sm:$0xff]
    %v2145 = vld [vmem:[%s5 + $0x278] sm:$0xff]
    %v2162 = vunpack.c.l.b16 %v2130
    %v2163 = vunpack.c.h.b16 %v2130
    %v2164 = vunpack.c.l.b16 %v2131
    %v2165 = vunpack.c.h.b16 %v2131
    %v2166 = vunpack.c.l.b16 %v2132
    %v2167 = vunpack.c.h.b16 %v2132
    %v2168 = vunpack.c.l.b16 %v2133
    %v2169 = vunpack.c.h.b16 %v2133
    %v2170 = vunpack.c.l.b16 %v2134
    %v2171 = vunpack.c.h.b16 %v2134
    %v2172 = vunpack.c.l.b16 %v2135
    %v2173 = vunpack.c.h.b16 %v2135
    %v2174 = vunpack.c.l.b16 %v2136
    %v2175 = vunpack.c.h.b16 %v2136
    %v2176 = vunpack.c.l.b16 %v2137
    %v2177 = vunpack.c.h.b16 %v2137
    %v2178 = vunpack.c.l.b16 %v2138
    %v2179 = vunpack.c.h.b16 %v2138
    %v2180 = vunpack.c.l.b16 %v2139
    %v2181 = vunpack.c.h.b16 %v2139
    %v2182 = vunpack.c.l.b16 %v2140
    %v2183 = vunpack.c.h.b16 %v2140
    %v2184 = vunpack.c.l.b16 %v2141
    %v2185 = vunpack.c.h.b16 %v2141
    %v2186 = vunpack.c.l.b16 %v2142
    %v2187 = vunpack.c.h.b16 %v2142
    %v2188 = vunpack.c.l.b16 %v2143
    %v2189 = vunpack.c.h.b16 %v2143
    %v2190 = vunpack.c.l.b16 %v2144
    %v2191 = vunpack.c.h.b16 %v2144
    %v2192 = vunpack.c.l.b16 %v2145
    %v2193 = vunpack.c.h.b16 %v2145
    %v2194 = vpack.c.b16 %v2166, %v2162
    %v2195 = vpack.c.b16 %v2167, %v2163
    %v2196 = vpack.c.b16 %v2168, %v2164
    %v2197 = vpack.c.b16 %v2169, %v2165
    %v2198 = vpack.c.b16 %v2174, %v2170
    %v2199 = vpack.c.b16 %v2175, %v2171
    %v2200 = vpack.c.b16 %v2176, %v2172
    %v2201 = vpack.c.b16 %v2177, %v2173
    %v2202 = vpack.c.b16 %v2182, %v2178
    %v2203 = vpack.c.b16 %v2183, %v2179
    %v2204 = vpack.c.b16 %v2184, %v2180
    %v2205 = vpack.c.b16 %v2185, %v2181
    %v2206 = vpack.c.b16 %v2190, %v2186
    %v2207 = vpack.c.b16 %v2191, %v2187
    %v2208 = vpack.c.b16 %v2192, %v2188
    %v2209 = vpack.c.b16 %v2193, %v2189
    %v2227 = vsel %vm361, %v160, 0
    %v2230 = vsel %vm361, %v161, 0
    %v2233 = vsel %vm361, %v162, 0
    %v2236 = vsel %vm361, %v163, 0
    %v2239 = vsel %vm361, %v164, 0
    %v2242 = vsel %vm361, %v165, 0
    %v2245 = vsel %vm361, %v166, 0
    %v2248 = vsel %vm361, %v167, 0
    %2250 = vmatprep.subr.bf16.mxu0 %v2195
    %2251 = vmatpush1.bf16.msra.mxu0 %v2194
    %2252 = vmatprep.subr.bf16.mxu0 %v2199
    %2253 = vmatpush1.bf16.msra.mxu0 %v2198
    %2254 = vmatprep.subr.bf16.mxu0 %v2203
    %2255 = vmatpush1.bf16.msra.mxu0 %v2202
    %2256 = vmatprep.subr.bf16.mxu0 %v2207
    %2257 = vmatpush1.bf16.msra.mxu0 %v2206
    %2258 = vmatprep.subr.bf16.mxu0 0
    %2259 = vmatpush1.bf16.msra.mxu0 0
    %2260 = vmatprep.subr.bf16.mxu0 0
    %2261 = vmatpush1.bf16.msra.mxu0 0
    %2262 = vmatprep.subr.bf16.mxu0 0
    %2263 = vmatpush1.bf16.msra.mxu0 0
    %2264 = vmatprep.subr.bf16.mxu0 0
    %2265 = vmatpush1.bf16.msra.mxu0 0
    %2266 = vmatprep.subr.bf16.mxu0 0
    %2267 = vmatpush1.bf16.msra.mxu0 0
    %2268 = vmatprep.subr.bf16.mxu0 0
    %2269 = vmatpush1.bf16.msra.mxu0 0
    %2270 = vmatprep.subr.bf16.mxu0 0
    %2271 = vmatpush1.bf16.msra.mxu0 0
    %2272 = vmatprep.subr.bf16.mxu0 0
    %2273 = vmatpush1.bf16.msra.mxu0 0
    %2274 = vmatprep.subr.bf16.mxu0 0
    %2275 = vmatpush1.bf16.msra.mxu0 0
    %2276 = vmatprep.subr.bf16.mxu0 0
    %2277 = vmatpush1.bf16.msra.mxu0 0
    %2278 = vmatprep.subr.bf16.mxu0 0
    %2279 = vmatpush1.bf16.msra.mxu0 0
    %2280 = vmatprep.subr.bf16.mxu0 0
    %2281 = vmatpush1.bf16.msra.mxu0 0
    %2282 = vmatprep.mubr.bf16.mxu0 0
    %2283 = vmatmul.mubr.bf16.gmra.mrb[0].mxu0 %v2227
    %v2284 = vpop.f32.mrb[0].mxu0
    %v2285 = vadd.f32 0.0, %v2284
    %v2286 = vpop.f32.mrb[0].mxu0
    %v2287 = vadd.f32 0.0, %v2286
    %v2288 = vpop.f32.mrb[0].mxu0
    %v2289 = vadd.f32 0.0, %v2288
    %v2290 = vpop.f32.mrb[0].mxu0
    %v2291 = vadd.f32 0.0, %v2290
    %2292 = vmatprep.mubr.bf16.mxu0 0
    %2293 = vmatmul.mubr.bf16.gmra.mrb[0].mxu0 %v2230
    %v2294 = vpop.f32.mrb[0].mxu0
    %v2295 = vadd.f32 0.0, %v2294
    %v2296 = vpop.f32.mrb[0].mxu0
    %v2297 = vadd.f32 0.0, %v2296
    %v2298 = vpop.f32.mrb[0].mxu0
    %v2299 = vadd.f32 0.0, %v2298
    %v2300 = vpop.f32.mrb[0].mxu0
    %v2301 = vadd.f32 0.0, %v2300
    %2302 = vmatprep.mubr.bf16.mxu0 0
    %2303 = vmatmul.mubr.bf16.gmra.mrb[0].mxu0 %v2233
    %v2304 = vpop.f32.mrb[0].mxu0
    %v2305 = vadd.f32 0.0, %v2304
    %v2306 = vpop.f32.mrb[0].mxu0
    %v2307 = vadd.f32 0.0, %v2306
    %v2308 = vpop.f32.mrb[0].mxu0
    %v2309 = vadd.f32 0.0, %v2308
    %v2310 = vpop.f32.mrb[0].mxu0
    %v2311 = vadd.f32 0.0, %v2310
    %2312 = vmatprep.mubr.bf16.mxu0 0
    %2313 = vmatmul.mubr.bf16.gmra.mrb[0].mxu0 %v2236
    %v2314 = vpop.f32.mrb[0].mxu0
    %v2315 = vadd.f32 0.0, %v2314
    %v2316 = vpop.f32.mrb[0].mxu0
    %v2317 = vadd.f32 0.0, %v2316
    %v2318 = vpop.f32.mrb[0].mxu0
    %v2319 = vadd.f32 0.0, %v2318
    %v2320 = vpop.f32.mrb[0].mxu0
    %v2321 = vadd.f32 0.0, %v2320
    %2322 = vmatprep.mubr.bf16.mxu0 0
    %2323 = vmatmul.mubr.bf16.gmra.mrb[0].mxu0 %v2239
    %v2324 = vpop.f32.mrb[0].mxu0
    %v2325 = vadd.f32 0.0, %v2324
    %v2326 = vpop.f32.mrb[0].mxu0
    %v2327 = vadd.f32 0.0, %v2326
    %v2328 = vpop.f32.mrb[0].mxu0
    %v2329 = vadd.f32 0.0, %v2328
    %v2330 = vpop.f32.mrb[0].mxu0
    %v2331 = vadd.f32 0.0, %v2330
    %2332 = vmatprep.mubr.bf16.mxu0 0
    %2333 = vmatmul.mubr.bf16.gmra.mrb[0].mxu0 %v2242
    %v2334 = vpop.f32.mrb[0].mxu0
    %v2335 = vadd.f32 0.0, %v2334
    %v2336 = vpop.f32.mrb[0].mxu0
    %v2337 = vadd.f32 0.0, %v2336
    %v2338 = vpop.f32.mrb[0].mxu0
    %v2339 = vadd.f32 0.0, %v2338
    %v2340 = vpop.f32.mrb[0].mxu0
    %v2341 = vadd.f32 0.0, %v2340
    %2342 = vmatprep.mubr.bf16.mxu0 0
    %2343 = vmatmul.mubr.bf16.gmra.mrb[0].mxu0 %v2245
    %v2344 = vpop.f32.mrb[0].mxu0
    %v2345 = vadd.f32 0.0, %v2344
    %v2346 = vpop.f32.mrb[0].mxu0
    %v2347 = vadd.f32 0.0, %v2346
    %v2348 = vpop.f32.mrb[0].mxu0
    %v2349 = vadd.f32 0.0, %v2348
    %v2350 = vpop.f32.mrb[0].mxu0
    %v2351 = vadd.f32 0.0, %v2350
    %2352 = vmatprep.mubr.bf16.mxu0 0
    %2353 = vmatmul.mubr.bf16.gmra.mrb[0].mxu0 %v2248
    %v2354 = vpop.f32.mrb[0].mxu0
    %v2355 = vadd.f32 0.0, %v2354
    %v2356 = vpop.f32.mrb[0].mxu0
    %v2357 = vadd.f32 0.0, %v2356
    %v2358 = vpop.f32.mrb[0].mxu0
    %v2359 = vadd.f32 0.0, %v2358
    %v2360 = vpop.f32.mrb[0].mxu0
    %v2361 = vadd.f32 0.0, %v2360
    %2362 = vdwg.mxu0
    %2363 = vmatprep.subr.bf16.mxu0 %v2197
    %2364 = vmatpush1.bf16.msra.mxu0 %v2196
    %2365 = vmatprep.subr.bf16.mxu0 %v2201
    %2366 = vmatpush1.bf16.msra.mxu0 %v2200
    %2367 = vmatprep.subr.bf16.mxu0 %v2205
    %2368 = vmatpush1.bf16.msra.mxu0 %v2204
    %2369 = vmatprep.subr.bf16.mxu0 %v2209
    %2370 = vmatpush1.bf16.msra.mxu0 %v2208
    %2371 = vmatprep.subr.bf16.mxu0 0
    %2372 = vmatpush1.bf16.msra.mxu0 0
    %2373 = vmatprep.subr.bf16.mxu0 0
    %2374 = vmatpush1.bf16.msra.mxu0 0
    %2375 = vmatprep.subr.bf16.mxu0 0
    %2376 = vmatpush1.bf16.msra.mxu0 0
    %2377 = vmatprep.subr.bf16.mxu0 0
    %2378 = vmatpush1.bf16.msra.mxu0 0
    %2379 = vmatprep.subr.bf16.mxu0 0
    %2380 = vmatpush1.bf16.msra.mxu0 0
    %2381 = vmatprep.subr.bf16.mxu0 0
    %2382 = vmatpush1.bf16.msra.mxu0 0
    %2383 = vmatprep.subr.bf16.mxu0 0
    %2384 = vmatpush1.bf16.msra.mxu0 0
    %2385 = vmatprep.subr.bf16.mxu0 0
    %2386 = vmatpush1.bf16.msra.mxu0 0
    %2387 = vmatprep.subr.bf16.mxu0 0
    %2388 = vmatpush1.bf16.msra.mxu0 0
    %2389 = vmatprep.subr.bf16.mxu0 0
    %2390 = vmatpush1.bf16.msra.mxu0 0
    %2391 = vmatprep.subr.bf16.mxu0 0
    %2392 = vmatpush1.bf16.msra.mxu0 0
    %2393 = vmatprep.subr.bf16.mxu0 0
    %2394 = vmatpush1.bf16.msra.mxu0 0
    %2395 = vmatprep.mubr.bf16.mxu0 0
    %2396 = vmatmul.mubr.bf16.gmra.mrb[0].mxu0 %v2227
    %v2397 = vpop.f32.mrb[0].mxu0
    %v2398 = vadd.f32 0.0, %v2397
    %v2399 = vpop.f32.mrb[0].mxu0
    %v2400 = vadd.f32 0.0, %v2399
    %v2401 = vpop.f32.mrb[0].mxu0
    %v2402 = vadd.f32 0.0, %v2401
    %v2403 = vpop.f32.mrb[0].mxu0
    %v2404 = vadd.f32 0.0, %v2403
    %2405 = vmatprep.mubr.bf16.mxu0 0
    %2406 = vmatmul.mubr.bf16.gmra.mrb[0].mxu0 %v2230
    %v2407 = vpop.f32.mrb[0].mxu0
    %v2408 = vadd.f32 0.0, %v2407
    %v2409 = vpop.f32.mrb[0].mxu0
    %v2410 = vadd.f32 0.0, %v2409
    %v2411 = vpop.f32.mrb[0].mxu0
    %v2412 = vadd.f32 0.0, %v2411
    %v2413 = vpop.f32.mrb[0].mxu0
    %v2414 = vadd.f32 0.0, %v2413
    %2415 = vmatprep.mubr.bf16.mxu0 0
    %2416 = vmatmul.mubr.bf16.gmra.mrb[0].mxu0 %v2233
    %v2417 = vpop.f32.mrb[0].mxu0
    %v2418 = vadd.f32 0.0, %v2417
    %v2419 = vpop.f32.mrb[0].mxu0
    %v2420 = vadd.f32 0.0, %v2419
    %v2421 = vpop.f32.mrb[0].mxu0
    %v2422 = vadd.f32 0.0, %v2421
    %v2423 = vpop.f32.mrb[0].mxu0
    %v2424 = vadd.f32 0.0, %v2423
    %2425 = vmatprep.mubr.bf16.mxu0 0
    %2426 = vmatmul.mubr.bf16.gmra.mrb[0].mxu0 %v2236
    %v2427 = vpop.f32.mrb[0].mxu0
    %v2428 = vadd.f32 0.0, %v2427
    %v2429 = vpop.f32.mrb[0].mxu0
    %v2430 = vadd.f32 0.0, %v2429
    %v2431 = vpop.f32.mrb[0].mxu0
    %v2432 = vadd.f32 0.0, %v2431
    %v2433 = vpop.f32.mrb[0].mxu0
    %v2434 = vadd.f32 0.0, %v2433
    %2435 = vmatprep.mubr.bf16.mxu0 0
    %2436 = vmatmul.mubr.bf16.gmra.mrb[0].mxu0 %v2239
    %v2437 = vpop.f32.mrb[0].mxu0
    %v2438 = vadd.f32 0.0, %v2437
    %v2439 = vpop.f32.mrb[0].mxu0
    %v2440 = vadd.f32 0.0, %v2439
    %v2441 = vpop.f32.mrb[0].mxu0
    %v2442 = vadd.f32 0.0, %v2441
    %v2443 = vpop.f32.mrb[0].mxu0
    %v2444 = vadd.f32 0.0, %v2443
    %2445 = vmatprep.mubr.bf16.mxu0 0
    %2446 = vmatmul.mubr.bf16.gmra.mrb[0].mxu0 %v2242
    %v2447 = vpop.f32.mrb[0].mxu0
    %v2448 = vadd.f32 0.0, %v2447
    %v2449 = vpop.f32.mrb[0].mxu0
    %v2450 = vadd.f32 0.0, %v2449
    %v2451 = vpop.f32.mrb[0].mxu0
    %v2452 = vadd.f32 0.0, %v2451
    %v2453 = vpop.f32.mrb[0].mxu0
    %v2454 = vadd.f32 0.0, %v2453
    %2455 = vmatprep.mubr.bf16.mxu0 0
    %2456 = vmatmul.mubr.bf16.gmra.mrb[0].mxu0 %v2245
    %v2457 = vpop.f32.mrb[0].mxu0
    %v2458 = vadd.f32 0.0, %v2457
    %v2459 = vpop.f32.mrb[0].mxu0
    %v2460 = vadd.f32 0.0, %v2459
    %v2461 = vpop.f32.mrb[0].mxu0
    %v2462 = vadd.f32 0.0, %v2461
    %v2463 = vpop.f32.mrb[0].mxu0
    %v2464 = vadd.f32 0.0, %v2463
    %2465 = vmatprep.mubr.bf16.mxu0 0
    %2466 = vmatmul.mubr.bf16.gmra.mrb[0].mxu0 %v2248
    %v2467 = vpop.f32.mrb[0].mxu0
    %v2468 = vadd.f32 0.0, %v2467
    %v2469 = vpop.f32.mrb[0].mxu0
    %v2470 = vadd.f32 0.0, %v2469
    %v2471 = vpop.f32.mrb[0].mxu0
    %v2472 = vadd.f32 0.0, %v2471
    %v2473 = vpop.f32.mrb[0].mxu0
    %v2474 = vadd.f32 0.0, %v2473
    %2475 = vdwg.mxu0
    %v2476 = vadd.f32 %v2066, %v2285
    %v2477 = vadd.f32 %v2067, %v2287
    %v2478 = vadd.f32 %v2068, %v2398
    %v2479 = vadd.f32 %v2069, %v2400
    %v2480 = vadd.f32 %v2070, %v2289
    %v2481 = vadd.f32 %v2071, %v2291
    %v2482 = vadd.f32 %v2072, %v2402
    %v2483 = vadd.f32 %v2073, %v2404
    %v2484 = vadd.f32 %v2074, %v2295
    %v2485 = vadd.f32 %v2075, %v2297
    %v2486 = vadd.f32 %v2076, %v2408
    %v2487 = vadd.f32 %v2077, %v2410
    %v2488 = vadd.f32 %v2078, %v2299
    %v2489 = vadd.f32 %v2079, %v2301
    %v2490 = vadd.f32 %v2080, %v2412
    %v2491 = vadd.f32 %v2081, %v2414
    %v2492 = vadd.f32 %v2082, %v2305
    %v2493 = vadd.f32 %v2083, %v2307
    %v2494 = vadd.f32 %v2084, %v2418
    %v2495 = vadd.f32 %v2085, %v2420
    %v2496 = vadd.f32 %v2086, %v2309
    %v2497 = vadd.f32 %v2087, %v2311
    %v2498 = vadd.f32 %v2088, %v2422
    %v2499 = vadd.f32 %v2089, %v2424
    %v2500 = vadd.f32 %v2090, %v2315
    %v2501 = vadd.f32 %v2091, %v2317
    %v2502 = vadd.f32 %v2092, %v2428
    %v2503 = vadd.f32 %v2093, %v2430
    %v2504 = vadd.f32 %v2094, %v2319
    %v2505 = vadd.f32 %v2095, %v2321
    %v2506 = vadd.f32 %v2096, %v2432
    %v2507 = vadd.f32 %v2097, %v2434
    %v2508 = vadd.f32 %v2098, %v2325
    %v2509 = vadd.f32 %v2099, %v2327
    %v2510 = vadd.f32 %v2100, %v2438
    %v2511 = vadd.f32 %v2101, %v2440
    %v2512 = vadd.f32 %v2102, %v2329
    %v2513 = vadd.f32 %v2103, %v2331
    %v2514 = vadd.f32 %v2104, %v2442
    %v2515 = vadd.f32 %v2105, %v2444
    %v2516 = vadd.f32 %v2106, %v2335
    %v2517 = vadd.f32 %v2107, %v2337
    %v2518 = vadd.f32 %v2108, %v2448
    %v2519 = vadd.f32 %v2109, %v2450
    %v2520 = vadd.f32 %v2110, %v2339
    %v2521 = vadd.f32 %v2111, %v2341
    %v2522 = vadd.f32 %v2112, %v2452
    %v2523 = vadd.f32 %v2113, %v2454
    %v2524 = vadd.f32 %v2114, %v2345
    %v2525 = vadd.f32 %v2115, %v2347
    %v2526 = vadd.f32 %v2116, %v2458
    %v2527 = vadd.f32 %v2117, %v2460
    %v2528 = vadd.f32 %v2118, %v2349
    %v2529 = vadd.f32 %v2119, %v2351
    %v2530 = vadd.f32 %v2120, %v2462
    %v2531 = vadd.f32 %v2121, %v2464
    %v2532 = vadd.f32 %v2122, %v2355
    %v2533 = vadd.f32 %v2123, %v2357
    %v2534 = vadd.f32 %v2124, %v2468
    %v2535 = vadd.f32 %v2125, %v2470
    %v2536 = vadd.f32 %v2126, %v2359
    %v2537 = vadd.f32 %v2127, %v2361
    %v2538 = vadd.f32 %v2128, %v2472
    %v2539 = vadd.f32 %v2129, %v2474
    %v2540 = vlaneseq
    %v2541 = vshrl.u32 %v2540, 7
    %v2542 = vsub.s32 0, %v2541
    %v2543 = vrot.slane %v43, %v2542
    %v2544 = vlaneseq
    %v2545 = vshrl.u32 %v2544, 7
    %v2546 = vsub.s32 0, %v2545
    %v2547 = vrot.slane %v44, %v2546
    %v2548 = vlaneseq
    %v2549 = vshrl.u32 %v2548, 7
    %v2550 = vsub.s32 0, %v2549
    %v2551 = vrot.slane %v45, %v2550
    %v2552 = vlaneseq
    %v2553 = vshrl.u32 %v2552, 7
    %v2554 = vsub.s32 0, %v2553
    %v2555 = vrot.slane %v46, %v2554
    %v2556 = vadd.f32 %v2476, %v2543
    %v2557 = vadd.f32 %v2477, %v2547
    %v2558 = vadd.f32 %v2478, %v2551
    %v2559 = vadd.f32 %v2479, %v2555
    %v2560 = vadd.f32 %v2480, %v2543
    %v2561 = vadd.f32 %v2481, %v2547
    %v2562 = vadd.f32 %v2482, %v2551
    %v2563 = vadd.f32 %v2483, %v2555
    %v2564 = vadd.f32 %v2484, %v2543
    %v2565 = vadd.f32 %v2485, %v2547
    %v2566 = vadd.f32 %v2486, %v2551
    %v2567 = vadd.f32 %v2487, %v2555
    %v2568 = vadd.f32 %v2488, %v2543
    %v2569 = vadd.f32 %v2489, %v2547
    %v2570 = vadd.f32 %v2490, %v2551
    %v2571 = vadd.f32 %v2491, %v2555
    %v2572 = vadd.f32 %v2492, %v2543
    %v2573 = vadd.f32 %v2493, %v2547
    %v2574 = vadd.f32 %v2494, %v2551
    %v2575 = vadd.f32 %v2495, %v2555
    %v2576 = vadd.f32 %v2496, %v2543
    %v2577 = vadd.f32 %v2497, %v2547
    %v2578 = vadd.f32 %v2498, %v2551
    %v2579 = vadd.f32 %v2499, %v2555
    %v2580 = vadd.f32 %v2500, %v2543
    %v2581 = vadd.f32 %v2501, %v2547
    %v2582 = vadd.f32 %v2502, %v2551
    %v2583 = vadd.f32 %v2503, %v2555
    %v2584 = vadd.f32 %v2504, %v2543
    %v2585 = vadd.f32 %v2505, %v2547
    %v2586 = vadd.f32 %v2506, %v2551
    %v2587 = vadd.f32 %v2507, %v2555
    %v2588 = vadd.f32 %v2508, %v2543
    %v2589 = vadd.f32 %v2509, %v2547
    %v2590 = vadd.f32 %v2510, %v2551
    %v2591 = vadd.f32 %v2511, %v2555
    %v2592 = vadd.f32 %v2512, %v2543
    %v2593 = vadd.f32 %v2513, %v2547
    %v2594 = vadd.f32 %v2514, %v2551
    %v2595 = vadd.f32 %v2515, %v2555
    %v2596 = vadd.f32 %v2516, %v2543
    %v2597 = vadd.f32 %v2517, %v2547
    %v2598 = vadd.f32 %v2518, %v2551
    %v2599 = vadd.f32 %v2519, %v2555
    %v2600 = vadd.f32 %v2520, %v2543
    %v2601 = vadd.f32 %v2521, %v2547
    %v2602 = vadd.f32 %v2522, %v2551
    %v2603 = vadd.f32 %v2523, %v2555
    %v2604 = vadd.f32 %v2524, %v2543
    %v2605 = vadd.f32 %v2525, %v2547
    %v2606 = vadd.f32 %v2526, %v2551
    %v2607 = vadd.f32 %v2527, %v2555
    %v2608 = vadd.f32 %v2528, %v2543
    %v2609 = vadd.f32 %v2529, %v2547
    %v2610 = vadd.f32 %v2530, %v2551
    %v2611 = vadd.f32 %v2531, %v2555
    %v2612 = vadd.f32 %v2532, %v2543
    %v2613 = vadd.f32 %v2533, %v2547
    %v2614 = vadd.f32 %v2534, %v2551
    %v2615 = vadd.f32 %v2535, %v2555
    %v2616 = vadd.f32 %v2536, %v2543
    %v2617 = vadd.f32 %v2537, %v2547
    %v2618 = vadd.f32 %v2538, %v2551
    %v2619 = vadd.f32 %v2539, %v2555
    %v2620 = vadd.f32 %v2556, %v2560
    %v2621 = vadd.f32 %v2620, %v2564
    %v2622 = vadd.f32 %v2621, %v2568
    %v2623 = vadd.f32 %v2622, %v2572
    %v2624 = vadd.f32 %v2623, %v2576
    %v2625 = vadd.f32 %v2624, %v2580
    %v2626 = vadd.f32 %v2625, %v2584
    %v2627 = vadd.f32 %v2626, %v2588
    %v2628 = vadd.f32 %v2627, %v2592
    %v2629 = vadd.f32 %v2628, %v2596
    %v2630 = vadd.f32 %v2629, %v2600
    %v2631 = vadd.f32 %v2630, %v2604
    %v2632 = vadd.f32 %v2631, %v2608
    %v2633 = vadd.f32 %v2632, %v2612
    %v2634 = vadd.f32 %v2633, %v2616
    %v2635 = vrot.slane %v2634, 4
    %v2636 = vadd.f32 %v2634, %v2635
    %v2637 = vrot.slane %v2636, 2
    %v2638 = vadd.f32 %v2636, %v2637
    %v2639 = vrot.slane %v2638, 1
    %v2640 = vadd.f32 %v2638, %v2639
    %v2641 = vadd.f32 %v2557, %v2561
    %v2642 = vadd.f32 %v2641, %v2565
    %v2643 = vadd.f32 %v2642, %v2569
    %v2644 = vadd.f32 %v2643, %v2573
    %v2645 = vadd.f32 %v2644, %v2577
    %v2646 = vadd.f32 %v2645, %v2581
    %v2647 = vadd.f32 %v2646, %v2585
    %v2648 = vadd.f32 %v2647, %v2589
    %v2649 = vadd.f32 %v2648, %v2593
    %v2650 = vadd.f32 %v2649, %v2597
    %v2651 = vadd.f32 %v2650, %v2601
    %v2652 = vadd.f32 %v2651, %v2605
    %v2653 = vadd.f32 %v2652, %v2609
    %v2654 = vadd.f32 %v2653, %v2613
    %v2655 = vadd.f32 %v2654, %v2617
    %v2656 = vrot.slane %v2655, 4
    %v2657 = vadd.f32 %v2655, %v2656
    %v2658 = vrot.slane %v2657, 2
    %v2659 = vadd.f32 %v2657, %v2658
    %v2660 = vrot.slane %v2659, 1
    %v2661 = vadd.f32 %v2659, %v2660
    %v2662 = vadd.f32 %v2558, %v2562
    %v2663 = vadd.f32 %v2662, %v2566
    %v2664 = vadd.f32 %v2663, %v2570
    %v2665 = vadd.f32 %v2664, %v2574
    %v2666 = vadd.f32 %v2665, %v2578
    %v2667 = vadd.f32 %v2666, %v2582
    %v2668 = vadd.f32 %v2667, %v2586
    %v2669 = vadd.f32 %v2668, %v2590
    %v2670 = vadd.f32 %v2669, %v2594
    %v2671 = vadd.f32 %v2670, %v2598
    %v2672 = vadd.f32 %v2671, %v2602
    %v2673 = vadd.f32 %v2672, %v2606
    %v2674 = vadd.f32 %v2673, %v2610
    %v2675 = vadd.f32 %v2674, %v2614
    %v2676 = vadd.f32 %v2675, %v2618
    %v2677 = vrot.slane %v2676, 4
    %v2678 = vadd.f32 %v2676, %v2677
    %v2679 = vrot.slane %v2678, 2
    %v2680 = vadd.f32 %v2678, %v2679
    %v2681 = vrot.slane %v2680, 1
    %v2682 = vadd.f32 %v2680, %v2681
    %v2683 = vadd.f32 %v2559, %v2563
    %v2684 = vadd.f32 %v2683, %v2567
    %v2685 = vadd.f32 %v2684, %v2571
    %v2686 = vadd.f32 %v2685, %v2575
    %v2687 = vadd.f32 %v2686, %v2579
    %v2688 = vadd.f32 %v2687, %v2583
    %v2689 = vadd.f32 %v2688, %v2587
    %v2690 = vadd.f32 %v2689, %v2591
    %v2691 = vadd.f32 %v2690, %v2595
    %v2692 = vadd.f32 %v2691, %v2599
    %v2693 = vadd.f32 %v2692, %v2603
    %v2694 = vadd.f32 %v2693, %v2607
    %v2695 = vadd.f32 %v2694, %v2611
    %v2696 = vadd.f32 %v2695, %v2615
    %v2697 = vadd.f32 %v2696, %v2619
    %v2698 = vrot.slane %v2697, 4
    %v2699 = vadd.f32 %v2697, %v2698
    %v2700 = vrot.slane %v2699, 2
    %v2701 = vadd.f32 %v2699, %v2700
    %v2702 = vrot.slane %v2701, 1
    %v2703 = vadd.f32 %v2701, %v2702
    %v2704 = vmul.f32 %v2640, 0.0078125
    %v2705 = vmul.f32 %v2661, 0.0078125
    %v2706 = vmul.f32 %v2682, 0.0078125
    %v2707 = vmul.f32 %v2703, 0.0078125
    %v2708 = vmul.f32 %v2556, %v2556
    %v2709 = vmul.f32 %v2557, %v2557
    %v2710 = vmul.f32 %v2558, %v2558
    %v2711 = vmul.f32 %v2559, %v2559
    %v2712 = vmul.f32 %v2560, %v2560
    %v2713 = vmul.f32 %v2561, %v2561
    %v2714 = vmul.f32 %v2562, %v2562
    %v2715 = vmul.f32 %v2563, %v2563
    %v2716 = vmul.f32 %v2564, %v2564
    %v2717 = vmul.f32 %v2565, %v2565
    %v2718 = vmul.f32 %v2566, %v2566
    %v2719 = vmul.f32 %v2567, %v2567
    %v2720 = vmul.f32 %v2568, %v2568
    %v2721 = vmul.f32 %v2569, %v2569
    %v2722 = vmul.f32 %v2570, %v2570
    %v2723 = vmul.f32 %v2571, %v2571
    %v2724 = vmul.f32 %v2572, %v2572
    %v2725 = vmul.f32 %v2573, %v2573
    %v2726 = vmul.f32 %v2574, %v2574
    %v2727 = vmul.f32 %v2575, %v2575
    %v2728 = vmul.f32 %v2576, %v2576
    %v2729 = vmul.f32 %v2577, %v2577
    %v2730 = vmul.f32 %v2578, %v2578
    %v2731 = vmul.f32 %v2579, %v2579
    %v2732 = vmul.f32 %v2580, %v2580
    %v2733 = vmul.f32 %v2581, %v2581
    %v2734 = vmul.f32 %v2582, %v2582
    %v2735 = vmul.f32 %v2583, %v2583
    %v2736 = vmul.f32 %v2584, %v2584
    %v2737 = vmul.f32 %v2585, %v2585
    %v2738 = vmul.f32 %v2586, %v2586
    %v2739 = vmul.f32 %v2587, %v2587
    %v2740 = vmul.f32 %v2588, %v2588
    %v2741 = vmul.f32 %v2589, %v2589
    %v2742 = vmul.f32 %v2590, %v2590
    %v2743 = vmul.f32 %v2591, %v2591
    %v2744 = vmul.f32 %v2592, %v2592
    %v2745 = vmul.f32 %v2593, %v2593
    %v2746 = vmul.f32 %v2594, %v2594
    %v2747 = vmul.f32 %v2595, %v2595
    %v2748 = vmul.f32 %v2596, %v2596
    %v2749 = vmul.f32 %v2597, %v2597
    %v2750 = vmul.f32 %v2598, %v2598
    %v2751 = vmul.f32 %v2599, %v2599
    %v2752 = vmul.f32 %v2600, %v2600
    %v2753 = vmul.f32 %v2601, %v2601
    %v2754 = vmul.f32 %v2602, %v2602
    %v2755 = vmul.f32 %v2603, %v2603
    %v2756 = vmul.f32 %v2604, %v2604
    %v2757 = vmul.f32 %v2605, %v2605
    %v2758 = vmul.f32 %v2606, %v2606
    %v2759 = vmul.f32 %v2607, %v2607
    %v2760 = vmul.f32 %v2608, %v2608
    %v2761 = vmul.f32 %v2609, %v2609
    %v2762 = vmul.f32 %v2610, %v2610
    %v2763 = vmul.f32 %v2611, %v2611
    %v2764 = vmul.f32 %v2612, %v2612
    %v2765 = vmul.f32 %v2613, %v2613
    %v2766 = vmul.f32 %v2614, %v2614
    %v2767 = vmul.f32 %v2615, %v2615
    %v2768 = vmul.f32 %v2616, %v2616
    %v2769 = vmul.f32 %v2617, %v2617
    %v2770 = vmul.f32 %v2618, %v2618
    %v2771 = vmul.f32 %v2619, %v2619
    %v2772 = vadd.f32 %v2708, %v2712
    %v2773 = vadd.f32 %v2772, %v2716
    %v2774 = vadd.f32 %v2773, %v2720
    %v2775 = vadd.f32 %v2774, %v2724
    %v2776 = vadd.f32 %v2775, %v2728
    %v2777 = vadd.f32 %v2776, %v2732
    %v2778 = vadd.f32 %v2777, %v2736
    %v2779 = vadd.f32 %v2778, %v2740
    %v2780 = vadd.f32 %v2779, %v2744
    %v2781 = vadd.f32 %v2780, %v2748
    %v2782 = vadd.f32 %v2781, %v2752
    %v2783 = vadd.f32 %v2782, %v2756
    %v2784 = vadd.f32 %v2783, %v2760
    %v2785 = vadd.f32 %v2784, %v2764
    %v2786 = vadd.f32 %v2785, %v2768
    %v2787 = vrot.slane %v2786, 4
    %v2788 = vadd.f32 %v2786, %v2787
    %v2789 = vrot.slane %v2788, 2
    %v2790 = vadd.f32 %v2788, %v2789
    %v2791 = vrot.slane %v2790, 1
    %v2792 = vadd.f32 %v2790, %v2791
    %v2793 = vadd.f32 %v2709, %v2713
    %v2794 = vadd.f32 %v2793, %v2717
    %v2795 = vadd.f32 %v2794, %v2721
    %v2796 = vadd.f32 %v2795, %v2725
    %v2797 = vadd.f32 %v2796, %v2729
    %v2798 = vadd.f32 %v2797, %v2733
    %v2799 = vadd.f32 %v2798, %v2737
    %v2800 = vadd.f32 %v2799, %v2741
    %v2801 = vadd.f32 %v2800, %v2745
    %v2802 = vadd.f32 %v2801, %v2749
    %v2803 = vadd.f32 %v2802, %v2753
    %v2804 = vadd.f32 %v2803, %v2757
    %v2805 = vadd.f32 %v2804, %v2761
    %v2806 = vadd.f32 %v2805, %v2765
    %v2807 = vadd.f32 %v2806, %v2769
    %v2808 = vrot.slane %v2807, 4
    %v2809 = vadd.f32 %v2807, %v2808
    %v2810 = vrot.slane %v2809, 2
    %v2811 = vadd.f32 %v2809, %v2810
    %v2812 = vrot.slane %v2811, 1
    %v2813 = vadd.f32 %v2811, %v2812
    %v2814 = vadd.f32 %v2710, %v2714
    %v2815 = vadd.f32 %v2814, %v2718
    %v2816 = vadd.f32 %v2815, %v2722
    %v2817 = vadd.f32 %v2816, %v2726
    %v2818 = vadd.f32 %v2817, %v2730
    %v2819 = vadd.f32 %v2818, %v2734
    %v2820 = vadd.f32 %v2819, %v2738
    %v2821 = vadd.f32 %v2820, %v2742
    %v2822 = vadd.f32 %v2821, %v2746
    %v2823 = vadd.f32 %v2822, %v2750
    %v2824 = vadd.f32 %v2823, %v2754
    %v2825 = vadd.f32 %v2824, %v2758
    %v2826 = vadd.f32 %v2825, %v2762
    %v2827 = vadd.f32 %v2826, %v2766
    %v2828 = vadd.f32 %v2827, %v2770
    %v2829 = vrot.slane %v2828, 4
    %v2830 = vadd.f32 %v2828, %v2829
    %v2831 = vrot.slane %v2830, 2
    %v2832 = vadd.f32 %v2830, %v2831
    %v2833 = vrot.slane %v2832, 1
    %v2834 = vadd.f32 %v2832, %v2833
    %v2835 = vadd.f32 %v2711, %v2715
    %v2836 = vadd.f32 %v2835, %v2719
    %v2837 = vadd.f32 %v2836, %v2723
    %v2838 = vadd.f32 %v2837, %v2727
    %v2839 = vadd.f32 %v2838, %v2731
    %v2840 = vadd.f32 %v2839, %v2735
    %v2841 = vadd.f32 %v2840, %v2739
    %v2842 = vadd.f32 %v2841, %v2743
    %v2843 = vadd.f32 %v2842, %v2747
    %v2844 = vadd.f32 %v2843, %v2751
    %v2845 = vadd.f32 %v2844, %v2755
    %v2846 = vadd.f32 %v2845, %v2759
    %v2847 = vadd.f32 %v2846, %v2763
    %v2848 = vadd.f32 %v2847, %v2767
    %v2849 = vadd.f32 %v2848, %v2771
    %v2850 = vrot.slane %v2849, 4
    %v2851 = vadd.f32 %v2849, %v2850
    %v2852 = vrot.slane %v2851, 2
    %v2853 = vadd.f32 %v2851, %v2852
    %v2854 = vrot.slane %v2853, 1
    %v2855 = vadd.f32 %v2853, %v2854
    %v2856 = vmul.f32 %v2792, 0.0078125
    %v2857 = vmul.f32 %v2813, 0.0078125
    %v2858 = vmul.f32 %v2834, 0.0078125
    %v2859 = vmul.f32 %v2855, 0.0078125
    %v2860 = vsub.f32 %v2556, %v2704
    %v2861 = vsub.f32 %v2557, %v2705
    %v2862 = vsub.f32 %v2558, %v2706
    %v2863 = vsub.f32 %v2559, %v2707
    %v2864 = vsub.f32 %v2560, %v2704
    %v2865 = vsub.f32 %v2561, %v2705
    %v2866 = vsub.f32 %v2562, %v2706
    %v2867 = vsub.f32 %v2563, %v2707
    %v2868 = vsub.f32 %v2564, %v2704
    %v2869 = vsub.f32 %v2565, %v2705
    %v2870 = vsub.f32 %v2566, %v2706
    %v2871 = vsub.f32 %v2567, %v2707
    %v2872 = vsub.f32 %v2568, %v2704
    %v2873 = vsub.f32 %v2569, %v2705
    %v2874 = vsub.f32 %v2570, %v2706
    %v2875 = vsub.f32 %v2571, %v2707
    %v2876 = vsub.f32 %v2572, %v2704
    %v2877 = vsub.f32 %v2573, %v2705
    %v2878 = vsub.f32 %v2574, %v2706
    %v2879 = vsub.f32 %v2575, %v2707
    %v2880 = vsub.f32 %v2576, %v2704
    %v2881 = vsub.f32 %v2577, %v2705
    %v2882 = vsub.f32 %v2578, %v2706
    %v2883 = vsub.f32 %v2579, %v2707
    %v2884 = vsub.f32 %v2580, %v2704
    %v2885 = vsub.f32 %v2581, %v2705
    %v2886 = vsub.f32 %v2582, %v2706
    %v2887 = vsub.f32 %v2583, %v2707
    %v2888 = vsub.f32 %v2584, %v2704
    %v2889 = vsub.f32 %v2585, %v2705
    %v2890 = vsub.f32 %v2586, %v2706
    %v2891 = vsub.f32 %v2587, %v2707
    %v2892 = vsub.f32 %v2588, %v2704
    %v2893 = vsub.f32 %v2589, %v2705
    %v2894 = vsub.f32 %v2590, %v2706
    %v2895 = vsub.f32 %v2591, %v2707
    %v2896 = vsub.f32 %v2592, %v2704
    %v2897 = vsub.f32 %v2593, %v2705
    %v2898 = vsub.f32 %v2594, %v2706
    %v2899 = vsub.f32 %v2595, %v2707
    %v2900 = vsub.f32 %v2596, %v2704
    %v2901 = vsub.f32 %v2597, %v2705
    %v2902 = vsub.f32 %v2598, %v2706
    %v2903 = vsub.f32 %v2599, %v2707
    %v2904 = vsub.f32 %v2600, %v2704
    %v2905 = vsub.f32 %v2601, %v2705
    %v2906 = vsub.f32 %v2602, %v2706
    %v2907 = vsub.f32 %v2603, %v2707
    %v2908 = vsub.f32 %v2604, %v2704
    %v2909 = vsub.f32 %v2605, %v2705
    %v2910 = vsub.f32 %v2606, %v2706
    %v2911 = vsub.f32 %v2607, %v2707
    %v2912 = vsub.f32 %v2608, %v2704
    %v2913 = vsub.f32 %v2609, %v2705
    %v2914 = vsub.f32 %v2610, %v2706
    %v2915 = vsub.f32 %v2611, %v2707
    %v2916 = vsub.f32 %v2612, %v2704
    %v2917 = vsub.f32 %v2613, %v2705
    %v2918 = vsub.f32 %v2614, %v2706
    %v2919 = vsub.f32 %v2615, %v2707
    %v2920 = vsub.f32 %v2616, %v2704
    %v2921 = vsub.f32 %v2617, %v2705
    %v2922 = vsub.f32 %v2618, %v2706
    %v2923 = vsub.f32 %v2619, %v2707
    %v2924 = vmul.f32 %v2704, %v2704
    %v2925 = vmul.f32 %v2705, %v2705
    %v2926 = vmul.f32 %v2706, %v2706
    %v2927 = vmul.f32 %v2707, %v2707
    %v2928 = vsub.f32 %v2856, %v2924
    %v2929 = vsub.f32 %v2857, %v2925
    %v2930 = vsub.f32 %v2858, %v2926
    %v2931 = vsub.f32 %v2859, %v2927
    %v2932 = vadd.f32 %v2928, 1e-05
    %v2933 = vadd.f32 %v2929, 1e-05
    %v2934 = vadd.f32 %v2930, 1e-05
    %v2935 = vadd.f32 %v2931, 1e-05
    %v2936 = vrsqrt.pop %v2932
    %v2937 = vrsqrt.pop %v2933
    %v2938 = vrsqrt.pop %v2934
    %v2939 = vrsqrt.pop %v2935
    %v2940 = vmul.f32 %v2860, %v2936
    %v2941 = vmul.f32 %v2861, %v2937
    %v2942 = vmul.f32 %v2862, %v2938
    %v2943 = vmul.f32 %v2863, %v2939
    %v2944 = vmul.f32 %v2864, %v2936
    %v2945 = vmul.f32 %v2865, %v2937
    %v2946 = vmul.f32 %v2866, %v2938
    %v2947 = vmul.f32 %v2867, %v2939
    %v2948 = vmul.f32 %v2868, %v2936
    %v2949 = vmul.f32 %v2869, %v2937
    %v2950 = vmul.f32 %v2870, %v2938
    %v2951 = vmul.f32 %v2871, %v2939
    %v2952 = vmul.f32 %v2872, %v2936
    %v2953 = vmul.f32 %v2873, %v2937
    %v2954 = vmul.f32 %v2874, %v2938
    %v2955 = vmul.f32 %v2875, %v2939
    %v2956 = vmul.f32 %v2876, %v2936
    %v2957 = vmul.f32 %v2877, %v2937
    %v2958 = vmul.f32 %v2878, %v2938
    %v2959 = vmul.f32 %v2879, %v2939
    %v2960 = vmul.f32 %v2880, %v2936
    %v2961 = vmul.f32 %v2881, %v2937
    %v2962 = vmul.f32 %v2882, %v2938
    %v2963 = vmul.f32 %v2883, %v2939
    %v2964 = vmul.f32 %v2884, %v2936
    %v2965 = vmul.f32 %v2885, %v2937
    %v2966 = vmul.f32 %v2886, %v2938
    %v2967 = vmul.f32 %v2887, %v2939
    %v2968 = vmul.f32 %v2888, %v2936
    %v2969 = vmul.f32 %v2889, %v2937
    %v2970 = vmul.f32 %v2890, %v2938
    %v2971 = vmul.f32 %v2891, %v2939
    %v2972 = vmul.f32 %v2892, %v2936
    %v2973 = vmul.f32 %v2893, %v2937
    %v2974 = vmul.f32 %v2894, %v2938
    %v2975 = vmul.f32 %v2895, %v2939
    %v2976 = vmul.f32 %v2896, %v2936
    %v2977 = vmul.f32 %v2897, %v2937
    %v2978 = vmul.f32 %v2898, %v2938
    %v2979 = vmul.f32 %v2899, %v2939
    %v2980 = vmul.f32 %v2900, %v2936
    %v2981 = vmul.f32 %v2901, %v2937
    %v2982 = vmul.f32 %v2902, %v2938
    %v2983 = vmul.f32 %v2903, %v2939
    %v2984 = vmul.f32 %v2904, %v2936
    %v2985 = vmul.f32 %v2905, %v2937
    %v2986 = vmul.f32 %v2906, %v2938
    %v2987 = vmul.f32 %v2907, %v2939
    %v2988 = vmul.f32 %v2908, %v2936
    %v2989 = vmul.f32 %v2909, %v2937
    %v2990 = vmul.f32 %v2910, %v2938
    %v2991 = vmul.f32 %v2911, %v2939
    %v2992 = vmul.f32 %v2912, %v2936
    %v2993 = vmul.f32 %v2913, %v2937
    %v2994 = vmul.f32 %v2914, %v2938
    %v2995 = vmul.f32 %v2915, %v2939
    %v2996 = vmul.f32 %v2916, %v2936
    %v2997 = vmul.f32 %v2917, %v2937
    %v2998 = vmul.f32 %v2918, %v2938
    %v2999 = vmul.f32 %v2919, %v2939
    %v3000 = vmul.f32 %v2920, %v2936
    %v3001 = vmul.f32 %v2921, %v2937
    %v3002 = vmul.f32 %v2922, %v2938
    %v3003 = vmul.f32 %v2923, %v2939
    %v3004 = vlaneseq
    %v3005 = vshrl.u32 %v3004, 7
    %v3006 = vsub.s32 1, %v3005
    %v3007 = vrot.slane %v43, %v3006
    %v3008 = vlaneseq
    %v3009 = vshrl.u32 %v3008, 7
    %v3010 = vsub.s32 1, %v3009
    %v3011 = vrot.slane %v44, %v3010
    %v3012 = vlaneseq
    %v3013 = vshrl.u32 %v3012, 7
    %v3014 = vsub.s32 1, %v3013
    %v3015 = vrot.slane %v45, %v3014
    %v3016 = vlaneseq
    %v3017 = vshrl.u32 %v3016, 7
    %v3018 = vsub.s32 1, %v3017
    %v3019 = vrot.slane %v46, %v3018
    %v3020 = vmul.f32 %v2940, %v3007
    %v3021 = vmul.f32 %v2941, %v3011
    %v3022 = vmul.f32 %v2942, %v3015
    %v3023 = vmul.f32 %v2943, %v3019
    %v3024 = vmul.f32 %v2944, %v3007
    %v3025 = vmul.f32 %v2945, %v3011
    %v3026 = vmul.f32 %v2946, %v3015
    %v3027 = vmul.f32 %v2947, %v3019
    %v3028 = vmul.f32 %v2948, %v3007
    %v3029 = vmul.f32 %v2949, %v3011
    %v3030 = vmul.f32 %v2950, %v3015
    %v3031 = vmul.f32 %v2951, %v3019
    %v3032 = vmul.f32 %v2952, %v3007
    %v3033 = vmul.f32 %v2953, %v3011
    %v3034 = vmul.f32 %v2954, %v3015
    %v3035 = vmul.f32 %v2955, %v3019
    %v3036 = vmul.f32 %v2956, %v3007
    %v3037 = vmul.f32 %v2957, %v3011
    %v3038 = vmul.f32 %v2958, %v3015
    %v3039 = vmul.f32 %v2959, %v3019
    %v3040 = vmul.f32 %v2960, %v3007
    %v3041 = vmul.f32 %v2961, %v3011
    %v3042 = vmul.f32 %v2962, %v3015
    %v3043 = vmul.f32 %v2963, %v3019
    %v3044 = vmul.f32 %v2964, %v3007
    %v3045 = vmul.f32 %v2965, %v3011
    %v3046 = vmul.f32 %v2966, %v3015
    %v3047 = vmul.f32 %v2967, %v3019
    %v3048 = vmul.f32 %v2968, %v3007
    %v3049 = vmul.f32 %v2969, %v3011
    %v3050 = vmul.f32 %v2970, %v3015
    %v3051 = vmul.f32 %v2971, %v3019
    %v3052 = vmul.f32 %v2972, %v3007
    %v3053 = vmul.f32 %v2973, %v3011
    %v3054 = vmul.f32 %v2974, %v3015
    %v3055 = vmul.f32 %v2975, %v3019
    %v3056 = vmul.f32 %v2976, %v3007
    %v3057 = vmul.f32 %v2977, %v3011
    %v3058 = vmul.f32 %v2978, %v3015
    %v3059 = vmul.f32 %v2979, %v3019
    %v3060 = vmul.f32 %v2980, %v3007
    %v3061 = vmul.f32 %v2981, %v3011
    %v3062 = vmul.f32 %v2982, %v3015
    %v3063 = vmul.f32 %v2983, %v3019
    %v3064 = vmul.f32 %v2984, %v3007
    %v3065 = vmul.f32 %v2985, %v3011
    %v3066 = vmul.f32 %v2986, %v3015
    %v3067 = vmul.f32 %v2987, %v3019
    %v3068 = vmul.f32 %v2988, %v3007
    %v3069 = vmul.f32 %v2989, %v3011
    %v3070 = vmul.f32 %v2990, %v3015
    %v3071 = vmul.f32 %v2991, %v3019
    %v3072 = vmul.f32 %v2992, %v3007
    %v3073 = vmul.f32 %v2993, %v3011
    %v3074 = vmul.f32 %v2994, %v3015
    %v3075 = vmul.f32 %v2995, %v3019
    %v3076 = vmul.f32 %v2996, %v3007
    %v3077 = vmul.f32 %v2997, %v3011
    %v3078 = vmul.f32 %v2998, %v3015
    %v3079 = vmul.f32 %v2999, %v3019
    %v3080 = vmul.f32 %v3000, %v3007
    %v3081 = vmul.f32 %v3001, %v3011
    %v3082 = vmul.f32 %v3002, %v3015
    %v3083 = vmul.f32 %v3003, %v3019
    %v3084 = vlaneseq
    %v3085 = vshrl.u32 %v3084, 7
    %v3086 = vsub.s32 2, %v3085
    %v3087 = vrot.slane %v43, %v3086
    %v3088 = vlaneseq
    %v3089 = vshrl.u32 %v3088, 7
    %v3090 = vsub.s32 2, %v3089
    %v3091 = vrot.slane %v44, %v3090
    %v3092 = vlaneseq
    %v3093 = vshrl.u32 %v3092, 7
    %v3094 = vsub.s32 2, %v3093
    %v3095 = vrot.slane %v45, %v3094
    %v3096 = vlaneseq
    %v3097 = vshrl.u32 %v3096, 7
    %v3098 = vsub.s32 2, %v3097
    %v3099 = vrot.slane %v46, %v3098
    %v3100 = vadd.f32 %v3020, %v3087
    %v3101 = vadd.f32 %v3021, %v3091
    %v3102 = vadd.f32 %v3022, %v3095
    %v3103 = vadd.f32 %v3023, %v3099
    %v3104 = vadd.f32 %v3024, %v3087
    %v3105 = vadd.f32 %v3025, %v3091
    %v3106 = vadd.f32 %v3026, %v3095
    %v3107 = vadd.f32 %v3027, %v3099
    %v3108 = vadd.f32 %v3028, %v3087
    %v3109 = vadd.f32 %v3029, %v3091
    %v3110 = vadd.f32 %v3030, %v3095
    %v3111 = vadd.f32 %v3031, %v3099
    %v3112 = vadd.f32 %v3032, %v3087
    %v3113 = vadd.f32 %v3033, %v3091
    %v3114 = vadd.f32 %v3034, %v3095
    %v3115 = vadd.f32 %v3035, %v3099
    %v3116 = vadd.f32 %v3036, %v3087
    %v3117 = vadd.f32 %v3037, %v3091
    %v3118 = vadd.f32 %v3038, %v3095
    %v3119 = vadd.f32 %v3039, %v3099
    %v3120 = vadd.f32 %v3040, %v3087
    %v3121 = vadd.f32 %v3041, %v3091
    %v3122 = vadd.f32 %v3042, %v3095
    %v3123 = vadd.f32 %v3043, %v3099
    %v3124 = vadd.f32 %v3044, %v3087
    %v3125 = vadd.f32 %v3045, %v3091
    %v3126 = vadd.f32 %v3046, %v3095
    %v3127 = vadd.f32 %v3047, %v3099
    %v3128 = vadd.f32 %v3048, %v3087
    %v3129 = vadd.f32 %v3049, %v3091
    %v3130 = vadd.f32 %v3050, %v3095
    %v3131 = vadd.f32 %v3051, %v3099
    %v3132 = vadd.f32 %v3052, %v3087
    %v3133 = vadd.f32 %v3053, %v3091
    %v3134 = vadd.f32 %v3054, %v3095
    %v3135 = vadd.f32 %v3055, %v3099
    %v3136 = vadd.f32 %v3056, %v3087
    %v3137 = vadd.f32 %v3057, %v3091
    %v3138 = vadd.f32 %v3058, %v3095
    %v3139 = vadd.f32 %v3059, %v3099
    %v3140 = vadd.f32 %v3060, %v3087
    %v3141 = vadd.f32 %v3061, %v3091
    %v3142 = vadd.f32 %v3062, %v3095
    %v3143 = vadd.f32 %v3063, %v3099
    %v3144 = vadd.f32 %v3064, %v3087
    %v3145 = vadd.f32 %v3065, %v3091
    %v3146 = vadd.f32 %v3066, %v3095
    %v3147 = vadd.f32 %v3067, %v3099
    %v3148 = vadd.f32 %v3068, %v3087
    %v3149 = vadd.f32 %v3069, %v3091
    %v3150 = vadd.f32 %v3070, %v3095
    %v3151 = vadd.f32 %v3071, %v3099
    %v3152 = vadd.f32 %v3072, %v3087
    %v3153 = vadd.f32 %v3073, %v3091
    %v3154 = vadd.f32 %v3074, %v3095
    %v3155 = vadd.f32 %v3075, %v3099
    %v3156 = vadd.f32 %v3076, %v3087
    %v3157 = vadd.f32 %v3077, %v3091
    %v3158 = vadd.f32 %v3078, %v3095
    %v3159 = vadd.f32 %v3079, %v3099
    %v3160 = vadd.f32 %v3080, %v3087
    %v3161 = vadd.f32 %v3081, %v3091
    %v3162 = vadd.f32 %v3082, %v3095
    %v3163 = vadd.f32 %v3083, %v3099
    %v3164 = vmax.f32 %v3100, 0.0
    %v3165 = vmax.f32 %v3101, 0.0
    %v3166 = vmax.f32 %v3102, 0.0
    %v3167 = vmax.f32 %v3103, 0.0
    %v3168 = vmax.f32 %v3104, 0.0
    %v3169 = vmax.f32 %v3105, 0.0
    %v3170 = vmax.f32 %v3106, 0.0
    %v3171 = vmax.f32 %v3107, 0.0
    %v3172 = vmax.f32 %v3108, 0.0
    %v3173 = vmax.f32 %v3109, 0.0
    %v3174 = vmax.f32 %v3110, 0.0
    %v3175 = vmax.f32 %v3111, 0.0
    %v3176 = vmax.f32 %v3112, 0.0
    %v3177 = vmax.f32 %v3113, 0.0
    %v3178 = vmax.f32 %v3114, 0.0
    %v3179 = vmax.f32 %v3115, 0.0
    %v3180 = vmax.f32 %v3116, 0.0
    %v3181 = vmax.f32 %v3117, 0.0
    %v3182 = vmax.f32 %v3118, 0.0
    %v3183 = vmax.f32 %v3119, 0.0
    %v3184 = vmax.f32 %v3120, 0.0
    %v3185 = vmax.f32 %v3121, 0.0
    %v3186 = vmax.f32 %v3122, 0.0
    %v3187 = vmax.f32 %v3123, 0.0
    %v3188 = vmax.f32 %v3124, 0.0
    %v3189 = vmax.f32 %v3125, 0.0
    %v3190 = vmax.f32 %v3126, 0.0
    %v3191 = vmax.f32 %v3127, 0.0
    %v3192 = vmax.f32 %v3128, 0.0
    %v3193 = vmax.f32 %v3129, 0.0
    %v3194 = vmax.f32 %v3130, 0.0
    %v3195 = vmax.f32 %v3131, 0.0
    %v3196 = vmax.f32 %v3132, 0.0
    %v3197 = vmax.f32 %v3133, 0.0
    %v3198 = vmax.f32 %v3134, 0.0
    %v3199 = vmax.f32 %v3135, 0.0
    %v3200 = vmax.f32 %v3136, 0.0
    %v3201 = vmax.f32 %v3137, 0.0
    %v3202 = vmax.f32 %v3138, 0.0
    %v3203 = vmax.f32 %v3139, 0.0
    %v3204 = vmax.f32 %v3140, 0.0
    %v3205 = vmax.f32 %v3141, 0.0
    %v3206 = vmax.f32 %v3142, 0.0
    %v3207 = vmax.f32 %v3143, 0.0
    %v3208 = vmax.f32 %v3144, 0.0
    %v3209 = vmax.f32 %v3145, 0.0
    %v3210 = vmax.f32 %v3146, 0.0
    %v3211 = vmax.f32 %v3147, 0.0
    %v3212 = vmax.f32 %v3148, 0.0
    %v3213 = vmax.f32 %v3149, 0.0
    %v3214 = vmax.f32 %v3150, 0.0
    %v3215 = vmax.f32 %v3151, 0.0
    %v3216 = vmax.f32 %v3152, 0.0
    %v3217 = vmax.f32 %v3153, 0.0
    %v3218 = vmax.f32 %v3154, 0.0
    %v3219 = vmax.f32 %v3155, 0.0
    %v3220 = vmax.f32 %v3156, 0.0
    %v3221 = vmax.f32 %v3157, 0.0
    %v3222 = vmax.f32 %v3158, 0.0
    %v3223 = vmax.f32 %v3159, 0.0
    %v3224 = vmax.f32 %v3160, 0.0
    %v3225 = vmax.f32 %v3161, 0.0
    %v3226 = vmax.f32 %v3162, 0.0
    %v3227 = vmax.f32 %v3163, 0.0
    %v3228 = vpack.c.bf16 %v3168, %v3164
    %v3229 = vpack.c.bf16 %v3169, %v3165
    %v3230 = vpack.c.bf16 %v3170, %v3166
    %v3231 = vpack.c.bf16 %v3171, %v3167
    %v3232 = vpack.c.bf16 %v3176, %v3172
    %v3233 = vpack.c.bf16 %v3177, %v3173
    %v3234 = vpack.c.bf16 %v3178, %v3174
    %v3235 = vpack.c.bf16 %v3179, %v3175
    %v3236 = vpack.c.bf16 %v3184, %v3180
    %v3237 = vpack.c.bf16 %v3185, %v3181
    %v3238 = vpack.c.bf16 %v3186, %v3182
    %v3239 = vpack.c.bf16 %v3187, %v3183
    %v3240 = vpack.c.bf16 %v3192, %v3188
    %v3241 = vpack.c.bf16 %v3193, %v3189
    %v3242 = vpack.c.bf16 %v3194, %v3190
    %v3243 = vpack.c.bf16 %v3195, %v3191
    %v3244 = vpack.c.bf16 %v3200, %v3196
    %v3245 = vpack.c.bf16 %v3201, %v3197
    %v3246 = vpack.c.bf16 %v3202, %v3198
    %v3247 = vpack.c.bf16 %v3203, %v3199
    %v3248 = vpack.c.bf16 %v3208, %v3204
    %v3249 = vpack.c.bf16 %v3209, %v3205
    %v3250 = vpack.c.bf16 %v3210, %v3206
    %v3251 = vpack.c.bf16 %v3211, %v3207
    %v3252 = vpack.c.bf16 %v3216, %v3212
    %v3253 = vpack.c.bf16 %v3217, %v3213
    %v3254 = vpack.c.bf16 %v3218, %v3214
    %v3255 = vpack.c.bf16 %v3219, %v3215
    %v3256 = vpack.c.bf16 %v3224, %v3220
    %v3257 = vpack.c.bf16 %v3225, %v3221
    %v3258 = vpack.c.bf16 %v3226, %v3222
    %v3259 = vpack.c.bf16 %v3227, %v3223
    %3260 = vst [vmem:[#allocation2] sm:$0xff] %v3228
    %3261 = vst [vmem:[#allocation2 + $0x8] sm:$0xff] %v3229
    %3262 = vst [vmem:[#allocation2 + $0x10] sm:$0xff] %v3230
    %3263 = vst [vmem:[#allocation2 + $0x18] sm:$0xff] %v3231
    %3264 = vst [vmem:[#allocation2 + $0x20] sm:$0xff] %v3232
    %3265 = vst [vmem:[#allocation2 + $0x28] sm:$0xff] %v3233
    %3266 = vst [vmem:[#allocation2 + $0x30] sm:$0xff] %v3234
    %3267 = vst [vmem:[#allocation2 + $0x38] sm:$0xff] %v3235
    %3268 = vst [vmem:[#allocation2 + $0x40] sm:$0xff] %v3236
    %3269 = vst [vmem:[#allocation2 + $0x48] sm:$0xff] %v3237
    %3270 = vst [vmem:[#allocation2 + $0x50] sm:$0xff] %v3238
    %3271 = vst [vmem:[#allocation2 + $0x58] sm:$0xff] %v3239
    %3272 = vst [vmem:[#allocation2 + $0x60] sm:$0xff] %v3240
    %3273 = vst [vmem:[#allocation2 + $0x68] sm:$0xff] %v3241
    %3274 = vst [vmem:[#allocation2 + $0x70] sm:$0xff] %v3242
    %3275 = vst [vmem:[#allocation2 + $0x78] sm:$0xff] %v3243
    %3276 = vst [vmem:[#allocation2 + $0x80] sm:$0xff] %v3244
    %3277 = vst [vmem:[#allocation2 + $0x88] sm:$0xff] %v3245
    %3278 = vst [vmem:[#allocation2 + $0x90] sm:$0xff] %v3246
    %3279 = vst [vmem:[#allocation2 + $0x98] sm:$0xff] %v3247
    %3280 = vst [vmem:[#allocation2 + $0xa0] sm:$0xff] %v3248
    %3281 = vst [vmem:[#allocation2 + $0xa8] sm:$0xff] %v3249
    %3282 = vst [vmem:[#allocation2 + $0xb0] sm:$0xff] %v3250
    %3283 = vst [vmem:[#allocation2 + $0xb8] sm:$0xff] %v3251
    %3284 = vst [vmem:[#allocation2 + $0xc0] sm:$0xff] %v3252
    %3285 = vst [vmem:[#allocation2 + $0xc8] sm:$0xff] %v3253
    %3286 = vst [vmem:[#allocation2 + $0xd0] sm:$0xff] %v3254
    %3287 = vst [vmem:[#allocation2 + $0xd8] sm:$0xff] %v3255
    %3288 = vst [vmem:[#allocation2 + $0xe0] sm:$0xff] %v3256
    %3289 = vst [vmem:[#allocation2 + $0xe8] sm:$0xff] %v3257
    %3290 = vst [vmem:[#allocation2 + $0xf0] sm:$0xff] %v3258
    %3291 = vst [vmem:[#allocation2 + $0xf8] sm:$0xff] %v3259
    %v3292 = vld [vmem:[#allocation2] sm:$0xff]
    %v3293 = vld [vmem:[#allocation2 + $0x8] sm:$0xff]
    %v3294 = vld [vmem:[#allocation2 + $0x10] sm:$0xff]
    %v3295 = vld [vmem:[#allocation2 + $0x18] sm:$0xff]
    %v3296 = vld [vmem:[#allocation2 + $0x20] sm:$0xff]
    %v3297 = vld [vmem:[#allocation2 + $0x28] sm:$0xff]
    %v3298 = vld [vmem:[#allocation2 + $0x30] sm:$0xff]
    %v3299 = vld [vmem:[#allocation2 + $0x38] sm:$0xff]
    %v3300 = vld [vmem:[#allocation2 + $0x40] sm:$0xff]
    %v3301 = vld [vmem:[#allocation2 + $0x48] sm:$0xff]
    %v3302 = vld [vmem:[#allocation2 + $0x50] sm:$0xff]
    %v3303 = vld [vmem:[#allocation2 + $0x58] sm:$0xff]
    %v3304 = vld [vmem:[#allocation2 + $0x60] sm:$0xff]
    %v3305 = vld [vmem:[#allocation2 + $0x68] sm:$0xff]
    %v3306 = vld [vmem:[#allocation2 + $0x70] sm:$0xff]
    %v3307 = vld [vmem:[#allocation2 + $0x78] sm:$0xff]
    %v3308 = vld [vmem:[#allocation2 + $0x80] sm:$0xff]
    %v3309 = vld [vmem:[#allocation2 + $0x88] sm:$0xff]
    %v3310 = vld [vmem:[#allocation2 + $0x90] sm:$0xff]
    %v3311 = vld [vmem:[#allocation2 + $0x98] sm:$0xff]
    %v3312 = vld [vmem:[#allocation2 + $0xa0] sm:$0xff]
    %v3313 = vld [vmem:[#allocation2 + $0xa8] sm:$0xff]
    %v3314 = vld [vmem:[#allocation2 + $0xb0] sm:$0xff]
    %v3315 = vld [vmem:[#allocation2 + $0xb8] sm:$0xff]
    %v3316 = vld [vmem:[#allocation2 + $0xc0] sm:$0xff]
    %v3317 = vld [vmem:[#allocation2 + $0xc8] sm:$0xff]
    %v3318 = vld [vmem:[#allocation2 + $0xd0] sm:$0xff]
    %v3319 = vld [vmem:[#allocation2 + $0xd8] sm:$0xff]
    %v3320 = vld [vmem:[#allocation2 + $0xe0] sm:$0xff]
    %v3321 = vld [vmem:[#allocation2 + $0xe8] sm:$0xff]
    %v3322 = vld [vmem:[#allocation2 + $0xf0] sm:$0xff]
    %v3323 = vld [vmem:[#allocation2 + $0xf8] sm:$0xff]
    %v3324 = vld [vmem:[%s6] sm:$0xff]
    %v3325 = vld [vmem:[%s6 + $0x8] sm:$0xff]
    %v3326 = vld [vmem:[%s6 + $0x10] sm:$0xff]
    %v3327 = vld [vmem:[%s6 + $0x18] sm:$0xff]
    %v3328 = vld [vmem:[%s6 + $0x20] sm:$0xff]
    %v3329 = vld [vmem:[%s6 + $0x28] sm:$0xff]
    %v3330 = vld [vmem:[%s6 + $0x30] sm:$0xff]
    %v3331 = vld [vmem:[%s6 + $0x38] sm:$0xff]
    %v3332 = vld [vmem:[%s6 + $0x40] sm:$0xff]
    %v3333 = vld [vmem:[%s6 + $0x48] sm:$0xff]
    %v3334 = vld [vmem:[%s6 + $0x50] sm:$0xff]
    %v3335 = vld [vmem:[%s6 + $0x58] sm:$0xff]
    %v3336 = vld [vmem:[%s6 + $0x60] sm:$0xff]
    %v3337 = vld [vmem:[%s6 + $0x68] sm:$0xff]
    %v3338 = vld [vmem:[%s6 + $0x70] sm:$0xff]
    %v3339 = vld [vmem:[%s6 + $0x78] sm:$0xff]
    %v3340 = vld [vmem:[%s6 + $0x80] sm:$0xff]
    %v3341 = vld [vmem:[%s6 + $0x88] sm:$0xff]
    %v3342 = vld [vmem:[%s6 + $0x90] sm:$0xff]
    %v3343 = vld [vmem:[%s6 + $0x98] sm:$0xff]
    %v3344 = vld [vmem:[%s6 + $0xa0] sm:$0xff]
    %v3345 = vld [vmem:[%s6 + $0xa8] sm:$0xff]
    %v3346 = vld [vmem:[%s6 + $0xb0] sm:$0xff]
    %v3347 = vld [vmem:[%s6 + $0xb8] sm:$0xff]
    %v3348 = vld [vmem:[%s6 + $0xc0] sm:$0xff]
    %v3349 = vld [vmem:[%s6 + $0xc8] sm:$0xff]
    %v3350 = vld [vmem:[%s6 + $0xd0] sm:$0xff]
    %v3351 = vld [vmem:[%s6 + $0xd8] sm:$0xff]
    %v3352 = vld [vmem:[%s6 + $0xe0] sm:$0xff]
    %v3353 = vld [vmem:[%s6 + $0xe8] sm:$0xff]
    %v3354 = vld [vmem:[%s6 + $0xf0] sm:$0xff]
    %v3355 = vld [vmem:[%s6 + $0xf8] sm:$0xff]
    %v3356 = vld [vmem:[%s6 + $0x100] sm:$0xff]
    %v3357 = vld [vmem:[%s6 + $0x108] sm:$0xff]
    %v3358 = vld [vmem:[%s6 + $0x110] sm:$0xff]
    %v3359 = vld [vmem:[%s6 + $0x118] sm:$0xff]
    %v3360 = vld [vmem:[%s6 + $0x120] sm:$0xff]
    %v3361 = vld [vmem:[%s6 + $0x128] sm:$0xff]
    %v3362 = vld [vmem:[%s6 + $0x130] sm:$0xff]
    %v3363 = vld [vmem:[%s6 + $0x138] sm:$0xff]
    %v3364 = vld [vmem:[%s6 + $0x140] sm:$0xff]
    %v3365 = vld [vmem:[%s6 + $0x148] sm:$0xff]
    %v3366 = vld [vmem:[%s6 + $0x150] sm:$0xff]
    %v3367 = vld [vmem:[%s6 + $0x158] sm:$0xff]
    %v3368 = vld [vmem:[%s6 + $0x160] sm:$0xff]
    %v3369 = vld [vmem:[%s6 + $0x168] sm:$0xff]
    %v3370 = vld [vmem:[%s6 + $0x170] sm:$0xff]
    %v3371 = vld [vmem:[%s6 + $0x178] sm:$0xff]
    %v3372 = vld [vmem:[%s6 + $0x180] sm:$0xff]
    %v3373 = vld [vmem:[%s6 + $0x188] sm:$0xff]
    %v3374 = vld [vmem:[%s6 + $0x190] sm:$0xff]
    %v3375 = vld [vmem:[%s6 + $0x198] sm:$0xff]
    %v3376 = vld [vmem:[%s6 + $0x1a0] sm:$0xff]
    %v3377 = vld [vmem:[%s6 + $0x1a8] sm:$0xff]
    %v3378 = vld [vmem:[%s6 + $0x1b0] sm:$0xff]
    %v3379 = vld [vmem:[%s6 + $0x1b8] sm:$0xff]
    %v3380 = vld [vmem:[%s6 + $0x1c0] sm:$0xff]
    %v3381 = vld [vmem:[%s6 + $0x1c8] sm:$0xff]
    %v3382 = vld [vmem:[%s6 + $0x1d0] sm:$0xff]
    %v3383 = vld [vmem:[%s6 + $0x1d8] sm:$0xff]
    %v3384 = vld [vmem:[%s6 + $0x1e0] sm:$0xff]
    %v3385 = vld [vmem:[%s6 + $0x1e8] sm:$0xff]
    %v3386 = vld [vmem:[%s6 + $0x1f0] sm:$0xff]
    %v3387 = vld [vmem:[%s6 + $0x1f8] sm:$0xff]
    %v3388 = vld [vmem:[%s6 + $0x200] sm:$0xff]
    %v3389 = vld [vmem:[%s6 + $0x208] sm:$0xff]
    %v3390 = vld [vmem:[%s6 + $0x210] sm:$0xff]
    %v3391 = vld [vmem:[%s6 + $0x218] sm:$0xff]
    %v3392 = vld [vmem:[%s6 + $0x220] sm:$0xff]
    %v3393 = vld [vmem:[%s6 + $0x228] sm:$0xff]
    %v3394 = vld [vmem:[%s6 + $0x230] sm:$0xff]
    %v3395 = vld [vmem:[%s6 + $0x238] sm:$0xff]
    %v3396 = vld [vmem:[%s6 + $0x240] sm:$0xff]
    %v3397 = vld [vmem:[%s6 + $0x248] sm:$0xff]
    %v3398 = vld [vmem:[%s6 + $0x250] sm:$0xff]
    %v3399 = vld [vmem:[%s6 + $0x258] sm:$0xff]
    %v3400 = vld [vmem:[%s6 + $0x260] sm:$0xff]
    %v3401 = vld [vmem:[%s6 + $0x268] sm:$0xff]
    %v3402 = vld [vmem:[%s6 + $0x270] sm:$0xff]
    %v3403 = vld [vmem:[%s6 + $0x278] sm:$0xff]
    %v3404 = vld [vmem:[%s6 + $0x280] sm:$0xff]
    %v3405 = vld [vmem:[%s6 + $0x288] sm:$0xff]
    %v3406 = vld [vmem:[%s6 + $0x290] sm:$0xff]
    %v3407 = vld [vmem:[%s6 + $0x298] sm:$0xff]
    %v3408 = vld [vmem:[%s6 + $0x2a0] sm:$0xff]
    %v3409 = vld [vmem:[%s6 + $0x2a8] sm:$0xff]
    %v3410 = vld [vmem:[%s6 + $0x2b0] sm:$0xff]
    %v3411 = vld [vmem:[%s6 + $0x2b8] sm:$0xff]
    %v3412 = vld [vmem:[%s6 + $0x2c0] sm:$0xff]
    %v3413 = vld [vmem:[%s6 + $0x2c8] sm:$0xff]
    %v3414 = vld [vmem:[%s6 + $0x2d0] sm:$0xff]
    %v3415 = vld [vmem:[%s6 + $0x2d8] sm:$0xff]
    %v3416 = vld [vmem:[%s6 + $0x2e0] sm:$0xff]
    %v3417 = vld [vmem:[%s6 + $0x2e8] sm:$0xff]
    %v3418 = vld [vmem:[%s6 + $0x2f0] sm:$0xff]
    %v3419 = vld [vmem:[%s6 + $0x2f8] sm:$0xff]
    %v3420 = vld [vmem:[%s6 + $0x300] sm:$0xff]
    %v3421 = vld [vmem:[%s6 + $0x308] sm:$0xff]
    %v3422 = vld [vmem:[%s6 + $0x310] sm:$0xff]
    %v3423 = vld [vmem:[%s6 + $0x318] sm:$0xff]
    %v3424 = vld [vmem:[%s6 + $0x320] sm:$0xff]
    %v3425 = vld [vmem:[%s6 + $0x328] sm:$0xff]
    %v3426 = vld [vmem:[%s6 + $0x330] sm:$0xff]
    %v3427 = vld [vmem:[%s6 + $0x338] sm:$0xff]
    %v3428 = vld [vmem:[%s6 + $0x340] sm:$0xff]
    %v3429 = vld [vmem:[%s6 + $0x348] sm:$0xff]
    %v3430 = vld [vmem:[%s6 + $0x350] sm:$0xff]
    %v3431 = vld [vmem:[%s6 + $0x358] sm:$0xff]
    %v3432 = vld [vmem:[%s6 + $0x360] sm:$0xff]
    %v3433 = vld [vmem:[%s6 + $0x368] sm:$0xff]
    %v3434 = vld [vmem:[%s6 + $0x370] sm:$0xff]
    %v3435 = vld [vmem:[%s6 + $0x378] sm:$0xff]
    %v3436 = vld [vmem:[%s6 + $0x380] sm:$0xff]
    %v3437 = vld [vmem:[%s6 + $0x388] sm:$0xff]
    %v3438 = vld [vmem:[%s6 + $0x390] sm:$0xff]
    %v3439 = vld [vmem:[%s6 + $0x398] sm:$0xff]
    %v3440 = vld [vmem:[%s6 + $0x3a0] sm:$0xff]
    %v3441 = vld [vmem:[%s6 + $0x3a8] sm:$0xff]
    %v3442 = vld [vmem:[%s6 + $0x3b0] sm:$0xff]
    %v3443 = vld [vmem:[%s6 + $0x3b8] sm:$0xff]
    %v3444 = vld [vmem:[%s6 + $0x3c0] sm:$0xff]
    %v3445 = vld [vmem:[%s6 + $0x3c8] sm:$0xff]
    %v3446 = vld [vmem:[%s6 + $0x3d0] sm:$0xff]
    %v3447 = vld [vmem:[%s6 + $0x3d8] sm:$0xff]
    %v3448 = vld [vmem:[%s6 + $0x3e0] sm:$0xff]
    %v3449 = vld [vmem:[%s6 + $0x3e8] sm:$0xff]
    %v3450 = vld [vmem:[%s6 + $0x3f0] sm:$0xff]
    %v3451 = vld [vmem:[%s6 + $0x3f8] sm:$0xff]
    %v3452 = vlaneseq
    %v3453 = vshrl.u32 %v3452, 7
    %v3454 = vsub.s32 3, %v3453
    %v3455 = vrot.slane %v43, %v3454
    %v3456 = vlaneseq
    %v3457 = vshrl.u32 %v3456, 7
    %v3458 = vsub.s32 3, %v3457
    %v3459 = vrot.slane %v44, %v3458
    %v3460 = vlaneseq
    %v3461 = vshrl.u32 %v3460, 7
    %v3462 = vsub.s32 3, %v3461
    %v3463 = vrot.slane %v45, %v3462
    %v3464 = vlaneseq
    %v3465 = vshrl.u32 %v3464, 7
    %v3466 = vsub.s32 3, %v3465
    %v3467 = vrot.slane %v46, %v3466
    %v3596 = vunpack.c.l.b16 %v3324
    %v3597 = vunpack.c.h.b16 %v3324
    %v3598 = vunpack.c.l.b16 %v3325
    %v3599 = vunpack.c.h.b16 %v3325
    %v3600 = vunpack.c.l.b16 %v3326
    %v3601 = vunpack.c.h.b16 %v3326
    %v3602 = vunpack.c.l.b16 %v3327
    %v3603 = vunpack.c.h.b16 %v3327
    %v3604 = vunpack.c.l.b16 %v3328
    %v3605 = vunpack.c.h.b16 %v3328
    %v3606 = vunpack.c.l.b16 %v3329
    %v3607 = vunpack.c.h.b16 %v3329
    %v3608 = vunpack.c.l.b16 %v3330
    %v3609 = vunpack.c.h.b16 %v3330
    %v3610 = vunpack.c.l.b16 %v3331
    %v3611 = vunpack.c.h.b16 %v3331
    %v3612 = vunpack.c.l.b16 %v3332
    %v3613 = vunpack.c.h.b16 %v3332
    %v3614 = vunpack.c.l.b16 %v3333
    %v3615 = vunpack.c.h.b16 %v3333
    %v3616 = vunpack.c.l.b16 %v3334
    %v3617 = vunpack.c.h.b16 %v3334
    %v3618 = vunpack.c.l.b16 %v3335
    %v3619 = vunpack.c.h.b16 %v3335
    %v3620 = vunpack.c.l.b16 %v3336
    %v3621 = vunpack.c.h.b16 %v3336
    %v3622 = vunpack.c.l.b16 %v3337
    %v3623 = vunpack.c.h.b16 %v3337
    %v3624 = vunpack.c.l.b16 %v3338
    %v3625 = vunpack.c.h.b16 %v3338
    %v3626 = vunpack.c.l.b16 %v3339
    %v3627 = vunpack.c.h.b16 %v3339
    %v3628 = vunpack.c.l.b16 %v3340
    %v3629 = vunpack.c.h.b16 %v3340
    %v3630 = vunpack.c.l.b16 %v3341
    %v3631 = vunpack.c.h.b16 %v3341
    %v3632 = vunpack.c.l.b16 %v3342
    %v3633 = vunpack.c.h.b16 %v3342
    %v3634 = vunpack.c.l.b16 %v3343
    %v3635 = vunpack.c.h.b16 %v3343
    %v3636 = vunpack.c.l.b16 %v3344
    %v3637 = vunpack.c.h.b16 %v3344
    %v3638 = vunpack.c.l.b16 %v3345
    %v3639 = vunpack.c.h.b16 %v3345
    %v3640 = vunpack.c.l.b16 %v3346
    %v3641 = vunpack.c.h.b16 %v3346
    %v3642 = vunpack.c.l.b16 %v3347
    %v3643 = vunpack.c.h.b16 %v3347
    %v3644 = vunpack.c.l.b16 %v3348
    %v3645 = vunpack.c.h.b16 %v3348
    %v3646 = vunpack.c.l.b16 %v3349
    %v3647 = vunpack.c.h.b16 %v3349
    %v3648 = vunpack.c.l.b16 %v3350
    %v3649 = vunpack.c.h.b16 %v3350
    %v3650 = vunpack.c.l.b16 %v3351
    %v3651 = vunpack.c.h.b16 %v3351
    %v3652 = vunpack.c.l.b16 %v3352
    %v3653 = vunpack.c.h.b16 %v3352
    %v3654 = vunpack.c.l.b16 %v3353
    %v3655 = vunpack.c.h.b16 %v3353
    %v3656 = vunpack.c.l.b16 %v3354
    %v3657 = vunpack.c.h.b16 %v3354
    %v3658 = vunpack.c.l.b16 %v3355
    %v3659 = vunpack.c.h.b16 %v3355
    %v3660 = vunpack.c.l.b16 %v3356
    %v3661 = vunpack.c.h.b16 %v3356
    %v3662 = vunpack.c.l.b16 %v3357
    %v3663 = vunpack.c.h.b16 %v3357
    %v3664 = vunpack.c.l.b16 %v3358
    %v3665 = vunpack.c.h.b16 %v3358
    %v3666 = vunpack.c.l.b16 %v3359
    %v3667 = vunpack.c.h.b16 %v3359
    %v3668 = vunpack.c.l.b16 %v3360
    %v3669 = vunpack.c.h.b16 %v3360
    %v3670 = vunpack.c.l.b16 %v3361
    %v3671 = vunpack.c.h.b16 %v3361
    %v3672 = vunpack.c.l.b16 %v3362
    %v3673 = vunpack.c.h.b16 %v3362
    %v3674 = vunpack.c.l.b16 %v3363
    %v3675 = vunpack.c.h.b16 %v3363
    %v3676 = vunpack.c.l.b16 %v3364
    %v3677 = vunpack.c.h.b16 %v3364
    %v3678 = vunpack.c.l.b16 %v3365
    %v3679 = vunpack.c.h.b16 %v3365
    %v3680 = vunpack.c.l.b16 %v3366
    %v3681 = vunpack.c.h.b16 %v3366
    %v3682 = vunpack.c.l.b16 %v3367
    %v3683 = vunpack.c.h.b16 %v3367
    %v3684 = vunpack.c.l.b16 %v3368
    %v3685 = vunpack.c.h.b16 %v3368
    %v3686 = vunpack.c.l.b16 %v3369
    %v3687 = vunpack.c.h.b16 %v3369
    %v3688 = vunpack.c.l.b16 %v3370
    %v3689 = vunpack.c.h.b16 %v3370
    %v3690 = vunpack.c.l.b16 %v3371
    %v3691 = vunpack.c.h.b16 %v3371
    %v3692 = vunpack.c.l.b16 %v3372
    %v3693 = vunpack.c.h.b16 %v3372
    %v3694 = vunpack.c.l.b16 %v3373
    %v3695 = vunpack.c.h.b16 %v3373
    %v3696 = vunpack.c.l.b16 %v3374
    %v3697 = vunpack.c.h.b16 %v3374
    %v3698 = vunpack.c.l.b16 %v3375
    %v3699 = vunpack.c.h.b16 %v3375
    %v3700 = vunpack.c.l.b16 %v3376
    %v3701 = vunpack.c.h.b16 %v3376
    %v3702 = vunpack.c.l.b16 %v3377
    %v3703 = vunpack.c.h.b16 %v3377
    %v3704 = vunpack.c.l.b16 %v3378
    %v3705 = vunpack.c.h.b16 %v3378
    %v3706 = vunpack.c.l.b16 %v3379
    %v3707 = vunpack.c.h.b16 %v3379
    %v3708 = vunpack.c.l.b16 %v3380
    %v3709 = vunpack.c.h.b16 %v3380
    %v3710 = vunpack.c.l.b16 %v3381
    %v3711 = vunpack.c.h.b16 %v3381
    %v3712 = vunpack.c.l.b16 %v3382
    %v3713 = vunpack.c.h.b16 %v3382
    %v3714 = vunpack.c.l.b16 %v3383
    %v3715 = vunpack.c.h.b16 %v3383
    %v3716 = vunpack.c.l.b16 %v3384
    %v3717 = vunpack.c.h.b16 %v3384
    %v3718 = vunpack.c.l.b16 %v3385
    %v3719 = vunpack.c.h.b16 %v3385
    %v3720 = vunpack.c.l.b16 %v3386
    %v3721 = vunpack.c.h.b16 %v3386
    %v3722 = vunpack.c.l.b16 %v3387
    %v3723 = vunpack.c.h.b16 %v3387
    %v3724 = vunpack.c.l.b16 %v3388
    %v3725 = vunpack.c.h.b16 %v3388
    %v3726 = vunpack.c.l.b16 %v3389
    %v3727 = vunpack.c.h.b16 %v3389
    %v3728 = vunpack.c.l.b16 %v3390
    %v3729 = vunpack.c.h.b16 %v3390
    %v3730 = vunpack.c.l.b16 %v3391
    %v3731 = vunpack.c.h.b16 %v3391
    %v3732 = vunpack.c.l.b16 %v3392
    %v3733 = vunpack.c.h.b16 %v3392
    %v3734 = vunpack.c.l.b16 %v3393
    %v3735 = vunpack.c.h.b16 %v3393
    %v3736 = vunpack.c.l.b16 %v3394
    %v3737 = vunpack.c.h.b16 %v3394
    %v3738 = vunpack.c.l.b16 %v3395
    %v3739 = vunpack.c.h.b16 %v3395
    %v3740 = vunpack.c.l.b16 %v3396
    %v3741 = vunpack.c.h.b16 %v3396
    %v3742 = vunpack.c.l.b16 %v3397
    %v3743 = vunpack.c.h.b16 %v3397
    %v3744 = vunpack.c.l.b16 %v3398
    %v3745 = vunpack.c.h.b16 %v3398
    %v3746 = vunpack.c.l.b16 %v3399
    %v3747 = vunpack.c.h.b16 %v3399
    %v3748 = vunpack.c.l.b16 %v3400
    %v3749 = vunpack.c.h.b16 %v3400
    %v3750 = vunpack.c.l.b16 %v3401
    %v3751 = vunpack.c.h.b16 %v3401
    %v3752 = vunpack.c.l.b16 %v3402
    %v3753 = vunpack.c.h.b16 %v3402
    %v3754 = vunpack.c.l.b16 %v3403
    %v3755 = vunpack.c.h.b16 %v3403
    %v3756 = vunpack.c.l.b16 %v3404
    %v3757 = vunpack.c.h.b16 %v3404
    %v3758 = vunpack.c.l.b16 %v3405
    %v3759 = vunpack.c.h.b16 %v3405
    %v3760 = vunpack.c.l.b16 %v3406
    %v3761 = vunpack.c.h.b16 %v3406
    %v3762 = vunpack.c.l.b16 %v3407
    %v3763 = vunpack.c.h.b16 %v3407
    %v3764 = vunpack.c.l.b16 %v3408
    %v3765 = vunpack.c.h.b16 %v3408
    %v3766 = vunpack.c.l.b16 %v3409
    %v3767 = vunpack.c.h.b16 %v3409
    %v3768 = vunpack.c.l.b16 %v3410
    %v3769 = vunpack.c.h.b16 %v3410
    %v3770 = vunpack.c.l.b16 %v3411
    %v3771 = vunpack.c.h.b16 %v3411
    %v3772 = vunpack.c.l.b16 %v3412
    %v3773 = vunpack.c.h.b16 %v3412
    %v3774 = vunpack.c.l.b16 %v3413
    %v3775 = vunpack.c.h.b16 %v3413
    %v3776 = vunpack.c.l.b16 %v3414
    %v3777 = vunpack.c.h.b16 %v3414
    %v3778 = vunpack.c.l.b16 %v3415
    %v3779 = vunpack.c.h.b16 %v3415
    %v3780 = vunpack.c.l.b16 %v3416
    %v3781 = vunpack.c.h.b16 %v3416
    %v3782 = vunpack.c.l.b16 %v3417
    %v3783 = vunpack.c.h.b16 %v3417
    %v3784 = vunpack.c.l.b16 %v3418
    %v3785 = vunpack.c.h.b16 %v3418
    %v3786 = vunpack.c.l.b16 %v3419
    %v3787 = vunpack.c.h.b16 %v3419
    %v3788 = vunpack.c.l.b16 %v3420
    %v3789 = vunpack.c.h.b16 %v3420
    %v3790 = vunpack.c.l.b16 %v3421
    %v3791 = vunpack.c.h.b16 %v3421
    %v3792 = vunpack.c.l.b16 %v3422
    %v3793 = vunpack.c.h.b16 %v3422
    %v3794 = vunpack.c.l.b16 %v3423
    %v3795 = vunpack.c.h.b16 %v3423
    %v3796 = vunpack.c.l.b16 %v3424
    %v3797 = vunpack.c.h.b16 %v3424
    %v3798 = vunpack.c.l.b16 %v3425
    %v3799 = vunpack.c.h.b16 %v3425
    %v3800 = vunpack.c.l.b16 %v3426
    %v3801 = vunpack.c.h.b16 %v3426
    %v3802 = vunpack.c.l.b16 %v3427
    %v3803 = vunpack.c.h.b16 %v3427
    %v3804 = vunpack.c.l.b16 %v3428
    %v3805 = vunpack.c.h.b16 %v3428
    %v3806 = vunpack.c.l.b16 %v3429
    %v3807 = vunpack.c.h.b16 %v3429
    %v3808 = vunpack.c.l.b16 %v3430
    %v3809 = vunpack.c.h.b16 %v3430
    %v3810 = vunpack.c.l.b16 %v3431
    %v3811 = vunpack.c.h.b16 %v3431
    %v3812 = vunpack.c.l.b16 %v3432
    %v3813 = vunpack.c.h.b16 %v3432
    %v3814 = vunpack.c.l.b16 %v3433
    %v3815 = vunpack.c.h.b16 %v3433
    %v3816 = vunpack.c.l.b16 %v3434
    %v3817 = vunpack.c.h.b16 %v3434
    %v3818 = vunpack.c.l.b16 %v3435
    %v3819 = vunpack.c.h.b16 %v3435
    %v3820 = vunpack.c.l.b16 %v3436
    %v3821 = vunpack.c.h.b16 %v3436
    %v3822 = vunpack.c.l.b16 %v3437
    %v3823 = vunpack.c.h.b16 %v3437
    %v3824 = vunpack.c.l.b16 %v3438
    %v3825 = vunpack.c.h.b16 %v3438
    %v3826 = vunpack.c.l.b16 %v3439
    %v3827 = vunpack.c.h.b16 %v3439
    %v3828 = vunpack.c.l.b16 %v3440
    %v3829 = vunpack.c.h.b16 %v3440
    %v3830 = vunpack.c.l.b16 %v3441
    %v3831 = vunpack.c.h.b16 %v3441
    %v3832 = vunpack.c.l.b16 %v3442
    %v3833 = vunpack.c.h.b16 %v3442
    %v3834 = vunpack.c.l.b16 %v3443
    %v3835 = vunpack.c.h.b16 %v3443
    %v3836 = vunpack.c.l.b16 %v3444
    %v3837 = vunpack.c.h.b16 %v3444
    %v3838 = vunpack.c.l.b16 %v3445
    %v3839 = vunpack.c.h.b16 %v3445
    %v3840 = vunpack.c.l.b16 %v3446
    %v3841 = vunpack.c.h.b16 %v3446
    %v3842 = vunpack.c.l.b16 %v3447
    %v3843 = vunpack.c.h.b16 %v3447
    %v3844 = vunpack.c.l.b16 %v3448
    %v3845 = vunpack.c.h.b16 %v3448
    %v3846 = vunpack.c.l.b16 %v3449
    %v3847 = vunpack.c.h.b16 %v3449
    %v3848 = vunpack.c.l.b16 %v3450
    %v3849 = vunpack.c.h.b16 %v3450
    %v3850 = vunpack.c.l.b16 %v3451
    %v3851 = vunpack.c.h.b16 %v3451
    %v3852 = vpack.c.b16 %v3600, %v3596
    %v3853 = vpack.c.b16 %v3601, %v3597
    %v3854 = vpack.c.b16 %v3602, %v3598
    %v3855 = vpack.c.b16 %v3603, %v3599
    %v3856 = vpack.c.b16 %v3608, %v3604
    %v3857 = vpack.c.b16 %v3609, %v3605
    %v3858 = vpack.c.b16 %v3610, %v3606
    %v3859 = vpack.c.b16 %v3611, %v3607
    %v3860 = vpack.c.b16 %v3616, %v3612
    %v3861 = vpack.c.b16 %v3617, %v3613
    %v3862 = vpack.c.b16 %v3618, %v3614
    %v3863 = vpack.c.b16 %v3619, %v3615
    %v3864 = vpack.c.b16 %v3624, %v3620
    %v3865 = vpack.c.b16 %v3625, %v3621
    %v3866 = vpack.c.b16 %v3626, %v3622
    %v3867 = vpack.c.b16 %v3627, %v3623
    %v3868 = vpack.c.b16 %v3632, %v3628
    %v3869 = vpack.c.b16 %v3633, %v3629
    %v3870 = vpack.c.b16 %v3634, %v3630
    %v3871 = vpack.c.b16 %v3635, %v3631
    %v3872 = vpack.c.b16 %v3640, %v3636
    %v3873 = vpack.c.b16 %v3641, %v3637
    %v3874 = vpack.c.b16 %v3642, %v3638
    %v3875 = vpack.c.b16 %v3643, %v3639
    %v3876 = vpack.c.b16 %v3648, %v3644
    %v3877 = vpack.c.b16 %v3649, %v3645
    %v3878 = vpack.c.b16 %v3650, %v3646
    %v3879 = vpack.c.b16 %v3651, %v3647
    %v3880 = vpack.c.b16 %v3656, %v3652
    %v3881 = vpack.c.b16 %v3657, %v3653
    %v3882 = vpack.c.b16 %v3658, %v3654
    %v3883 = vpack.c.b16 %v3659, %v3655
    %v3884 = vpack.c.b16 %v3664, %v3660
    %v3885 = vpack.c.b16 %v3665, %v3661
    %v3886 = vpack.c.b16 %v3666, %v3662
    %v3887 = vpack.c.b16 %v3667, %v3663
    %v3888 = vpack.c.b16 %v3672, %v3668
    %v3889 = vpack.c.b16 %v3673, %v3669
    %v3890 = vpack.c.b16 %v3674, %v3670
    %v3891 = vpack.c.b16 %v3675, %v3671
    %v3892 = vpack.c.b16 %v3680, %v3676
    %v3893 = vpack.c.b16 %v3681, %v3677
    %v3894 = vpack.c.b16 %v3682, %v3678
    %v3895 = vpack.c.b16 %v3683, %v3679
    %v3896 = vpack.c.b16 %v3688, %v3684
    %v3897 = vpack.c.b16 %v3689, %v3685
    %v3898 = vpack.c.b16 %v3690, %v3686
    %v3899 = vpack.c.b16 %v3691, %v3687
    %v3900 = vpack.c.b16 %v3696, %v3692
    %v3901 = vpack.c.b16 %v3697, %v3693
    %v3902 = vpack.c.b16 %v3698, %v3694
    %v3903 = vpack.c.b16 %v3699, %v3695
    %v3904 = vpack.c.b16 %v3704, %v3700
    %v3905 = vpack.c.b16 %v3705, %v3701
    %v3906 = vpack.c.b16 %v3706, %v3702
    %v3907 = vpack.c.b16 %v3707, %v3703
    %v3908 = vpack.c.b16 %v3712, %v3708
    %v3909 = vpack.c.b16 %v3713, %v3709
    %v3910 = vpack.c.b16 %v3714, %v3710
    %v3911 = vpack.c.b16 %v3715, %v3711
    %v3912 = vpack.c.b16 %v3720, %v3716
    %v3913 = vpack.c.b16 %v3721, %v3717
    %v3914 = vpack.c.b16 %v3722, %v3718
    %v3915 = vpack.c.b16 %v3723, %v3719
    %v3916 = vpack.c.b16 %v3728, %v3724
    %v3917 = vpack.c.b16 %v3729, %v3725
    %v3918 = vpack.c.b16 %v3730, %v3726
    %v3919 = vpack.c.b16 %v3731, %v3727
    %v3920 = vpack.c.b16 %v3736, %v3732
    %v3921 = vpack.c.b16 %v3737, %v3733
    %v3922 = vpack.c.b16 %v3738, %v3734
    %v3923 = vpack.c.b16 %v3739, %v3735
    %v3924 = vpack.c.b16 %v3744, %v3740
    %v3925 = vpack.c.b16 %v3745, %v3741
    %v3926 = vpack.c.b16 %v3746, %v3742
    %v3927 = vpack.c.b16 %v3747, %v3743
    %v3928 = vpack.c.b16 %v3752, %v3748
    %v3929 = vpack.c.b16 %v3753, %v3749
    %v3930 = vpack.c.b16 %v3754, %v3750
    %v3931 = vpack.c.b16 %v3755, %v3751
    %v3932 = vpack.c.b16 %v3760, %v3756
    %v3933 = vpack.c.b16 %v3761, %v3757
    %v3934 = vpack.c.b16 %v3762, %v3758
    %v3935 = vpack.c.b16 %v3763, %v3759
    %v3936 = vpack.c.b16 %v3768, %v3764
    %v3937 = vpack.c.b16 %v3769, %v3765
    %v3938 = vpack.c.b16 %v3770, %v3766
    %v3939 = vpack.c.b16 %v3771, %v3767
    %v3940 = vpack.c.b16 %v3776, %v3772
    %v3941 = vpack.c.b16 %v3777, %v3773
    %v3942 = vpack.c.b16 %v3778, %v3774
    %v3943 = vpack.c.b16 %v3779, %v3775
    %v3944 = vpack.c.b16 %v3784, %v3780
    %v3945 = vpack.c.b16 %v3785, %v3781
    %v3946 = vpack.c.b16 %v3786, %v3782
    %v3947 = vpack.c.b16 %v3787, %v3783
    %v3948 = vpack.c.b16 %v3792, %v3788
    %v3949 = vpack.c.b16 %v3793, %v3789
    %v3950 = vpack.c.b16 %v3794, %v3790
    %v3951 = vpack.c.b16 %v3795, %v3791
    %v3952 = vpack.c.b16 %v3800, %v3796
    %v3953 = vpack.c.b16 %v3801, %v3797
    %v3954 = vpack.c.b16 %v3802, %v3798
    %v3955 = vpack.c.b16 %v3803, %v3799
    %v3956 = vpack.c.b16 %v3808, %v3804
    %v3957 = vpack.c.b16 %v3809, %v3805
    %v3958 = vpack.c.b16 %v3810, %v3806
    %v3959 = vpack.c.b16 %v3811, %v3807
    %v3960 = vpack.c.b16 %v3816, %v3812
    %v3961 = vpack.c.b16 %v3817, %v3813
    %v3962 = vpack.c.b16 %v3818, %v3814
    %v3963 = vpack.c.b16 %v3819, %v3815
    %v3964 = vpack.c.b16 %v3824, %v3820
    %v3965 = vpack.c.b16 %v3825, %v3821
    %v3966 = vpack.c.b16 %v3826, %v3822
    %v3967 = vpack.c.b16 %v3827, %v3823
    %v3968 = vpack.c.b16 %v3832, %v3828
    %v3969 = vpack.c.b16 %v3833, %v3829
    %v3970 = vpack.c.b16 %v3834, %v3830
    %v3971 = vpack.c.b16 %v3835, %v3831
    %v3972 = vpack.c.b16 %v3840, %v3836
    %v3973 = vpack.c.b16 %v3841, %v3837
    %v3974 = vpack.c.b16 %v3842, %v3838
    %v3975 = vpack.c.b16 %v3843, %v3839
    %v3976 = vpack.c.b16 %v3848, %v3844
    %v3977 = vpack.c.b16 %v3849, %v3845
    %v3978 = vpack.c.b16 %v3850, %v3846
    %v3979 = vpack.c.b16 %v3851, %v3847
    %4108 = vmatprep.subr.bf16.mxu0 %v3853
    %4109 = vmatpush1.bf16.msra.mxu0 %v3852
    %4110 = vmatprep.subr.bf16.mxu0 %v3857
    %4111 = vmatpush1.bf16.msra.mxu0 %v3856
    %4112 = vmatprep.subr.bf16.mxu0 %v3861
    %4113 = vmatpush1.bf16.msra.mxu0 %v3860
    %4114 = vmatprep.subr.bf16.mxu0 %v3865
    %4115 = vmatpush1.bf16.msra.mxu0 %v3864
    %4116 = vmatprep.subr.bf16.mxu0 %v3869
    %4117 = vmatpush1.bf16.msra.mxu0 %v3868
    %4118 = vmatprep.subr.bf16.mxu0 %v3873
    %4119 = vmatpush1.bf16.msra.mxu0 %v3872
    %4120 = vmatprep.subr.bf16.mxu0 %v3877
    %4121 = vmatpush1.bf16.msra.mxu0 %v3876
    %4122 = vmatprep.subr.bf16.mxu0 %v3881
    %4123 = vmatpush1.bf16.msra.mxu0 %v3880
    %4124 = vmatprep.subr.bf16.mxu0 %v3885
    %4125 = vmatpush1.bf16.msra.mxu0 %v3884
    %4126 = vmatprep.subr.bf16.mxu0 %v3889
    %4127 = vmatpush1.bf16.msra.mxu0 %v3888
    %4128 = vmatprep.subr.bf16.mxu0 %v3893
    %4129 = vmatpush1.bf16.msra.mxu0 %v3892
    %4130 = vmatprep.subr.bf16.mxu0 %v3897
    %4131 = vmatpush1.bf16.msra.mxu0 %v3896
    %4132 = vmatprep.subr.bf16.mxu0 %v3901
    %4133 = vmatpush1.bf16.msra.mxu0 %v3900
    %4134 = vmatprep.subr.bf16.mxu0 %v3905
    %4135 = vmatpush1.bf16.msra.mxu0 %v3904
    %4136 = vmatprep.subr.bf16.mxu0 %v3909
    %4137 = vmatpush1.bf16.msra.mxu0 %v3908
    %4138 = vmatprep.subr.bf16.mxu0 %v3913
    %4139 = vmatpush1.bf16.msra.mxu0 %v3912
    %4140 = vmatprep.mubr.bf16.mxu0 %v3293
    %4141 = vmatmul.mubr.bf16.gmra.mrb[0].mxu0 %v3292
    %v4142 = vpop.f32.mrb[0].mxu0
    %v4143 = vadd.f32 %v3455, %v4142
    %v4144 = vpop.f32.mrb[0].mxu0
    %v4145 = vadd.f32 %v3459, %v4144
    %v4146 = vpop.f32.mrb[0].mxu0
    %v4147 = vadd.f32 %v3455, %v4146
    %v4148 = vpop.f32.mrb[0].mxu0
    %v4149 = vadd.f32 %v3459, %v4148
    %4150 = vmatprep.mubr.bf16.mxu0 %v3297
    %4151 = vmatmul.mubr.bf16.gmra.mrb[0].mxu0 %v3296
    %v4152 = vpop.f32.mrb[0].mxu0
    %v4153 = vadd.f32 %v3455, %v4152
    %v4154 = vpop.f32.mrb[0].mxu0
    %v4155 = vadd.f32 %v3459, %v4154
    %v4156 = vpop.f32.mrb[0].mxu0
    %v4157 = vadd.f32 %v3455, %v4156
    %v4158 = vpop.f32.mrb[0].mxu0
    %v4159 = vadd.f32 %v3459, %v4158
    %4160 = vmatprep.mubr.bf16.mxu0 %v3301
    %4161 = vmatmul.mubr.bf16.gmra.mrb[0].mxu0 %v3300
    %v4162 = vpop.f32.mrb[0].mxu0
    %v4163 = vadd.f32 %v3455, %v4162
    %v4164 = vpop.f32.mrb[0].mxu0
    %v4165 = vadd.f32 %v3459, %v4164
    %v4166 = vpop.f32.mrb[0].mxu0
    %v4167 = vadd.f32 %v3455, %v4166
    %v4168 = vpop.f32.mrb[0].mxu0
    %v4169 = vadd.f32 %v3459, %v4168
    %4170 = vmatprep.mubr.bf16.mxu0 %v3305
    %4171 = vmatmul.mubr.bf16.gmra.mrb[0].mxu0 %v3304
    %v4172 = vpop.f32.mrb[0].mxu0
    %v4173 = vadd.f32 %v3455, %v4172
    %v4174 = vpop.f32.mrb[0].mxu0
    %v4175 = vadd.f32 %v3459, %v4174
    %v4176 = vpop.f32.mrb[0].mxu0
    %v4177 = vadd.f32 %v3455, %v4176
    %v4178 = vpop.f32.mrb[0].mxu0
    %v4179 = vadd.f32 %v3459, %v4178
    %4180 = vmatprep.mubr.bf16.mxu0 %v3309
    %4181 = vmatmul.mubr.bf16.gmra.mrb[0].mxu0 %v3308
    %v4182 = vpop.f32.mrb[0].mxu0
    %v4183 = vadd.f32 %v3455, %v4182
    %v4184 = vpop.f32.mrb[0].mxu0
    %v4185 = vadd.f32 %v3459, %v4184
    %v4186 = vpop.f32.mrb[0].mxu0
    %v4187 = vadd.f32 %v3455, %v4186
    %v4188 = vpop.f32.mrb[0].mxu0
    %v4189 = vadd.f32 %v3459, %v4188
    %4190 = vmatprep.mubr.bf16.mxu0 %v3313
    %4191 = vmatmul.mubr.bf16.gmra.mrb[0].mxu0 %v3312
    %v4192 = vpop.f32.mrb[0].mxu0
    %v4193 = vadd.f32 %v3455, %v4192
    %v4194 = vpop.f32.mrb[0].mxu0
    %v4195 = vadd.f32 %v3459, %v4194
    %v4196 = vpop.f32.mrb[0].mxu0
    %v4197 = vadd.f32 %v3455, %v4196
    %v4198 = vpop.f32.mrb[0].mxu0
    %v4199 = vadd.f32 %v3459, %v4198
    %4200 = vmatprep.mubr.bf16.mxu0 %v3317
    %4201 = vmatmul.mubr.bf16.gmra.mrb[0].mxu0 %v3316
    %v4202 = vpop.f32.mrb[0].mxu0
    %v4203 = vadd.f32 %v3455, %v4202
    %v4204 = vpop.f32.mrb[0].mxu0
    %v4205 = vadd.f32 %v3459, %v4204
    %v4206 = vpop.f32.mrb[0].mxu0
    %v4207 = vadd.f32 %v3455, %v4206
    %v4208 = vpop.f32.mrb[0].mxu0
    %v4209 = vadd.f32 %v3459, %v4208
    %4210 = vmatprep.mubr.bf16.mxu0 %v3321
    %4211 = vmatmul.mubr.bf16.gmra.mrb[0].mxu0 %v3320
    %v4212 = vpop.f32.mrb[0].mxu0
    %v4213 = vadd.f32 %v3455, %v4212
    %v4214 = vpop.f32.mrb[0].mxu0
    %v4215 = vadd.f32 %v3459, %v4214
    %v4216 = vpop.f32.mrb[0].mxu0
    %v4217 = vadd.f32 %v3455, %v4216
    %v4218 = vpop.f32.mrb[0].mxu0
    %v4219 = vadd.f32 %v3459, %v4218
    %4220 = vdwg.mxu0
    %4221 = vmatprep.subr.bf16.mxu0 %v3917
    %4222 = vmatpush1.bf16.msra.mxu0 %v3916
    %4223 = vmatprep.subr.bf16.mxu0 %v3921
    %4224 = vmatpush1.bf16.msra.mxu0 %v3920
    %4225 = vmatprep.subr.bf16.mxu0 %v3925
    %4226 = vmatpush1.bf16.msra.mxu0 %v3924
    %4227 = vmatprep.subr.bf16.mxu0 %v3929
    %4228 = vmatpush1.bf16.msra.mxu0 %v3928
    %4229 = vmatprep.subr.bf16.mxu0 %v3933
    %4230 = vmatpush1.bf16.msra.mxu0 %v3932
    %4231 = vmatprep.subr.bf16.mxu0 %v3937
    %4232 = vmatpush1.bf16.msra.mxu0 %v3936
    %4233 = vmatprep.subr.bf16.mxu0 %v3941
    %4234 = vmatpush1.bf16.msra.mxu0 %v3940
    %4235 = vmatprep.subr.bf16.mxu0 %v3945
    %4236 = vmatpush1.bf16.msra.mxu0 %v3944
    %4237 = vmatprep.subr.bf16.mxu0 %v3949
    %4238 = vmatpush1.bf16.msra.mxu0 %v3948
    %4239 = vmatprep.subr.bf16.mxu0 %v3953
    %4240 = vmatpush1.bf16.msra.mxu0 %v3952
    %4241 = vmatprep.subr.bf16.mxu0 %v3957
    %4242 = vmatpush1.bf16.msra.mxu0 %v3956
    %4243 = vmatprep.subr.bf16.mxu0 %v3961
    %4244 = vmatpush1.bf16.msra.mxu0 %v3960
    %4245 = vmatprep.subr.bf16.mxu0 %v3965
    %4246 = vmatpush1.bf16.msra.mxu0 %v3964
    %4247 = vmatprep.subr.bf16.mxu0 %v3969
    %4248 = vmatpush1.bf16.msra.mxu0 %v3968
    %4249 = vmatprep.subr.bf16.mxu0 %v3973
    %4250 = vmatpush1.bf16.msra.mxu0 %v3972
    %4251 = vmatprep.subr.bf16.mxu0 %v3977
    %4252 = vmatpush1.bf16.msra.mxu0 %v3976
    %4253 = vmatprep.mubr.bf16.mxu0 %v3295
    %4254 = vmatmul.mubr.bf16.gmra.mrb[0].mxu0 %v3294
    %v4255 = vpop.f32.mrb[0].mxu0
    %v4256 = vadd.f32 %v4143, %v4255
    %v4257 = vpop.f32.mrb[0].mxu0
    %v4258 = vadd.f32 %v4145, %v4257
    %v4259 = vpop.f32.mrb[0].mxu0
    %v4260 = vadd.f32 %v4147, %v4259
    %v4261 = vpop.f32.mrb[0].mxu0
    %v4262 = vadd.f32 %v4149, %v4261
    %4263 = vmatprep.mubr.bf16.mxu0 %v3299
    %4264 = vmatmul.mubr.bf16.gmra.mrb[0].mxu0 %v3298
    %v4265 = vpop.f32.mrb[0].mxu0
    %v4266 = vadd.f32 %v4153, %v4265
    %v4267 = vpop.f32.mrb[0].mxu0
    %v4268 = vadd.f32 %v4155, %v4267
    %v4269 = vpop.f32.mrb[0].mxu0
    %v4270 = vadd.f32 %v4157, %v4269
    %v4271 = vpop.f32.mrb[0].mxu0
    %v4272 = vadd.f32 %v4159, %v4271
    %4273 = vmatprep.mubr.bf16.mxu0 %v3303
    %4274 = vmatmul.mubr.bf16.gmra.mrb[0].mxu0 %v3302
    %v4275 = vpop.f32.mrb[0].mxu0
    %v4276 = vadd.f32 %v4163, %v4275
    %v4277 = vpop.f32.mrb[0].mxu0
    %v4278 = vadd.f32 %v4165, %v4277
    %v4279 = vpop.f32.mrb[0].mxu0
    %v4280 = vadd.f32 %v4167, %v4279
    %v4281 = vpop.f32.mrb[0].mxu0
    %v4282 = vadd.f32 %v4169, %v4281
    %4283 = vmatprep.mubr.bf16.mxu0 %v3307
    %4284 = vmatmul.mubr.bf16.gmra.mrb[0].mxu0 %v3306
    %v4285 = vpop.f32.mrb[0].mxu0
    %v4286 = vadd.f32 %v4173, %v4285
    %v4287 = vpop.f32.mrb[0].mxu0
    %v4288 = vadd.f32 %v4175, %v4287
    %v4289 = vpop.f32.mrb[0].mxu0
    %v4290 = vadd.f32 %v4177, %v4289
    %v4291 = vpop.f32.mrb[0].mxu0
    %v4292 = vadd.f32 %v4179, %v4291
    %4293 = vmatprep.mubr.bf16.mxu0 %v3311
    %4294 = vmatmul.mubr.bf16.gmra.mrb[0].mxu0 %v3310
    %v4295 = vpop.f32.mrb[0].mxu0
    %v4296 = vadd.f32 %v4183, %v4295
    %v4297 = vpop.f32.mrb[0].mxu0
    %v4298 = vadd.f32 %v4185, %v4297
    %v4299 = vpop.f32.mrb[0].mxu0
    %v4300 = vadd.f32 %v4187, %v4299
    %v4301 = vpop.f32.mrb[0].mxu0
    %v4302 = vadd.f32 %v4189, %v4301
    %4303 = vmatprep.mubr.bf16.mxu0 %v3315
    %4304 = vmatmul.mubr.bf16.gmra.mrb[0].mxu0 %v3314
    %v4305 = vpop.f32.mrb[0].mxu0
    %v4306 = vadd.f32 %v4193, %v4305
    %v4307 = vpop.f32.mrb[0].mxu0
    %v4308 = vadd.f32 %v4195, %v4307
    %v4309 = vpop.f32.mrb[0].mxu0
    %v4310 = vadd.f32 %v4197, %v4309
    %v4311 = vpop.f32.mrb[0].mxu0
    %v4312 = vadd.f32 %v4199, %v4311
    %4313 = vmatprep.mubr.bf16.mxu0 %v3319
    %4314 = vmatmul.mubr.bf16.gmra.mrb[0].mxu0 %v3318
    %v4315 = vpop.f32.mrb[0].mxu0
    %v4316 = vadd.f32 %v4203, %v4315
    %v4317 = vpop.f32.mrb[0].mxu0
    %v4318 = vadd.f32 %v4205, %v4317
    %v4319 = vpop.f32.mrb[0].mxu0
    %v4320 = vadd.f32 %v4207, %v4319
    %v4321 = vpop.f32.mrb[0].mxu0
    %v4322 = vadd.f32 %v4209, %v4321
    %4323 = vmatprep.mubr.bf16.mxu0 %v3323
    %4324 = vmatmul.mubr.bf16.gmra.mrb[0].mxu0 %v3322
    %v4325 = vpop.f32.mrb[0].mxu0
    %v4326 = vadd.f32 %v4213, %v4325
    %v4327 = vpop.f32.mrb[0].mxu0
    %v4328 = vadd.f32 %v4215, %v4327
    %v4329 = vpop.f32.mrb[0].mxu0
    %v4330 = vadd.f32 %v4217, %v4329
    %v4331 = vpop.f32.mrb[0].mxu0
    %v4332 = vadd.f32 %v4219, %v4331
    %4333 = vdwg.mxu0
    %4334 = vmatprep.subr.bf16.mxu0 %v3855
    %4335 = vmatpush1.bf16.msra.mxu0 %v3854
    %4336 = vmatprep.subr.bf16.mxu0 %v3859
    %4337 = vmatpush1.bf16.msra.mxu0 %v3858
    %4338 = vmatprep.subr.bf16.mxu0 %v3863
    %4339 = vmatpush1.bf16.msra.mxu0 %v3862
    %4340 = vmatprep.subr.bf16.mxu0 %v3867
    %4341 = vmatpush1.bf16.msra.mxu0 %v3866
    %4342 = vmatprep.subr.bf16.mxu0 %v3871
    %4343 = vmatpush1.bf16.msra.mxu0 %v3870
    %4344 = vmatprep.subr.bf16.mxu0 %v3875
    %4345 = vmatpush1.bf16.msra.mxu0 %v3874
    %4346 = vmatprep.subr.bf16.mxu0 %v3879
    %4347 = vmatpush1.bf16.msra.mxu0 %v3878
    %4348 = vmatprep.subr.bf16.mxu0 %v3883
    %4349 = vmatpush1.bf16.msra.mxu0 %v3882
    %4350 = vmatprep.subr.bf16.mxu0 %v3887
    %4351 = vmatpush1.bf16.msra.mxu0 %v3886
    %4352 = vmatprep.subr.bf16.mxu0 %v3891
    %4353 = vmatpush1.bf16.msra.mxu0 %v3890
    %4354 = vmatprep.subr.bf16.mxu0 %v3895
    %4355 = vmatpush1.bf16.msra.mxu0 %v3894
    %4356 = vmatprep.subr.bf16.mxu0 %v3899
    %4357 = vmatpush1.bf16.msra.mxu0 %v3898
    %4358 = vmatprep.subr.bf16.mxu0 %v3903
    %4359 = vmatpush1.bf16.msra.mxu0 %v3902
    %4360 = vmatprep.subr.bf16.mxu0 %v3907
    %4361 = vmatpush1.bf16.msra.mxu0 %v3906
    %4362 = vmatprep.subr.bf16.mxu0 %v3911
    %4363 = vmatpush1.bf16.msra.mxu0 %v3910
    %4364 = vmatprep.subr.bf16.mxu0 %v3915
    %4365 = vmatpush1.bf16.msra.mxu0 %v3914
    %4366 = vmatprep.mubr.bf16.mxu0 %v3293
    %4367 = vmatmul.mubr.bf16.gmra.mrb[0].mxu0 %v3292
    %v4368 = vpop.f32.mrb[0].mxu0
    %v4369 = vadd.f32 %v3463, %v4368
    %v4370 = vpop.f32.mrb[0].mxu0
    %v4371 = vadd.f32 %v3467, %v4370
    %v4372 = vpop.f32.mrb[0].mxu0
    %v4373 = vadd.f32 %v3463, %v4372
    %v4374 = vpop.f32.mrb[0].mxu0
    %v4375 = vadd.f32 %v3467, %v4374
    %4376 = vmatprep.mubr.bf16.mxu0 %v3297
    %4377 = vmatmul.mubr.bf16.gmra.mrb[0].mxu0 %v3296
    %v4378 = vpop.f32.mrb[0].mxu0
    %v4379 = vadd.f32 %v3463, %v4378
    %v4380 = vpop.f32.mrb[0].mxu0
    %v4381 = vadd.f32 %v3467, %v4380
    %v4382 = vpop.f32.mrb[0].mxu0
    %v4383 = vadd.f32 %v3463, %v4382
    %v4384 = vpop.f32.mrb[0].mxu0
    %v4385 = vadd.f32 %v3467, %v4384
    %4386 = vmatprep.mubr.bf16.mxu0 %v3301
    %4387 = vmatmul.mubr.bf16.gmra.mrb[0].mxu0 %v3300
    %v4388 = vpop.f32.mrb[0].mxu0
    %v4389 = vadd.f32 %v3463, %v4388
    %v4390 = vpop.f32.mrb[0].mxu0
    %v4391 = vadd.f32 %v3467, %v4390
    %v4392 = vpop.f32.mrb[0].mxu0
    %v4393 = vadd.f32 %v3463, %v4392
    %v4394 = vpop.f32.mrb[0].mxu0
    %v4395 = vadd.f32 %v3467, %v4394
    %4396 = vmatprep.mubr.bf16.mxu0 %v3305
    %4397 = vmatmul.mubr.bf16.gmra.mrb[0].mxu0 %v3304
    %v4398 = vpop.f32.mrb[0].mxu0
    %v4399 = vadd.f32 %v3463, %v4398
    %v4400 = vpop.f32.mrb[0].mxu0
    %v4401 = vadd.f32 %v3467, %v4400
    %v4402 = vpop.f32.mrb[0].mxu0
    %v4403 = vadd.f32 %v3463, %v4402
    %v4404 = vpop.f32.mrb[0].mxu0
    %v4405 = vadd.f32 %v3467, %v4404
    %4406 = vmatprep.mubr.bf16.mxu0 %v3309
    %4407 = vmatmul.mubr.bf16.gmra.mrb[0].mxu0 %v3308
    %v4408 = vpop.f32.mrb[0].mxu0
    %v4409 = vadd.f32 %v3463, %v4408
    %v4410 = vpop.f32.mrb[0].mxu0
    %v4411 = vadd.f32 %v3467, %v4410
    %v4412 = vpop.f32.mrb[0].mxu0
    %v4413 = vadd.f32 %v3463, %v4412
    %v4414 = vpop.f32.mrb[0].mxu0
    %v4415 = vadd.f32 %v3467, %v4414
    %4416 = vmatprep.mubr.bf16.mxu0 %v3313
    %4417 = vmatmul.mubr.bf16.gmra.mrb[0].mxu0 %v3312
    %v4418 = vpop.f32.mrb[0].mxu0
    %v4419 = vadd.f32 %v3463, %v4418
    %v4420 = vpop.f32.mrb[0].mxu0
    %v4421 = vadd.f32 %v3467, %v4420
    %v4422 = vpop.f32.mrb[0].mxu0
    %v4423 = vadd.f32 %v3463, %v4422
    %v4424 = vpop.f32.mrb[0].mxu0
    %v4425 = vadd.f32 %v3467, %v4424
    %4426 = vmatprep.mubr.bf16.mxu0 %v3317
    %4427 = vmatmul.mubr.bf16.gmra.mrb[0].mxu0 %v3316
    %v4428 = vpop.f32.mrb[0].mxu0
    %v4429 = vadd.f32 %v3463, %v4428
    %v4430 = vpop.f32.mrb[0].mxu0
    %v4431 = vadd.f32 %v3467, %v4430
    %v4432 = vpop.f32.mrb[0].mxu0
    %v4433 = vadd.f32 %v3463, %v4432
    %v4434 = vpop.f32.mrb[0].mxu0
    %v4435 = vadd.f32 %v3467, %v4434
    %4436 = vmatprep.mubr.bf16.mxu0 %v3321
    %4437 = vmatmul.mubr.bf16.gmra.mrb[0].mxu0 %v3320
    %v4438 = vpop.f32.mrb[0].mxu0
    %v4439 = vadd.f32 %v3463, %v4438
    %v4440 = vpop.f32.mrb[0].mxu0
    %v4441 = vadd.f32 %v3467, %v4440
    %v4442 = vpop.f32.mrb[0].mxu0
    %v4443 = vadd.f32 %v3463, %v4442
    %v4444 = vpop.f32.mrb[0].mxu0
    %v4445 = vadd.f32 %v3467, %v4444
    %4446 = vdwg.mxu0
    %4447 = vmatprep.subr.bf16.mxu0 %v3919
    %4448 = vmatpush1.bf16.msra.mxu0 %v3918
    %4449 = vmatprep.subr.bf16.mxu0 %v3923
    %4450 = vmatpush1.bf16.msra.mxu0 %v3922
    %4451 = vmatprep.subr.bf16.mxu0 %v3927
    %4452 = vmatpush1.bf16.msra.mxu0 %v3926
    %4453 = vmatprep.subr.bf16.mxu0 %v3931
    %4454 = vmatpush1.bf16.msra.mxu0 %v3930
    %4455 = vmatprep.subr.bf16.mxu0 %v3935
    %4456 = vmatpush1.bf16.msra.mxu0 %v3934
    %4457 = vmatprep.subr.bf16.mxu0 %v3939
    %4458 = vmatpush1.bf16.msra.mxu0 %v3938
    %4459 = vmatprep.subr.bf16.mxu0 %v3943
    %4460 = vmatpush1.bf16.msra.mxu0 %v3942
    %4461 = vmatprep.subr.bf16.mxu0 %v3947
    %4462 = vmatpush1.bf16.msra.mxu0 %v3946
    %4463 = vmatprep.subr.bf16.mxu0 %v3951
    %4464 = vmatpush1.bf16.msra.mxu0 %v3950
    %4465 = vmatprep.subr.bf16.mxu0 %v3955
    %4466 = vmatpush1.bf16.msra.mxu0 %v3954
    %4467 = vmatprep.subr.bf16.mxu0 %v3959
    %4468 = vmatpush1.bf16.msra.mxu0 %v3958
    %4469 = vmatprep.subr.bf16.mxu0 %v3963
    %4470 = vmatpush1.bf16.msra.mxu0 %v3962
    %4471 = vmatprep.subr.bf16.mxu0 %v3967
    %4472 = vmatpush1.bf16.msra.mxu0 %v3966
    %4473 = vmatprep.subr.bf16.mxu0 %v3971
    %4474 = vmatpush1.bf16.msra.mxu0 %v3970
    %4475 = vmatprep.subr.bf16.mxu0 %v3975
    %4476 = vmatpush1.bf16.msra.mxu0 %v3974
    %4477 = vmatprep.subr.bf16.mxu0 %v3979
    %4478 = vmatpush1.bf16.msra.mxu0 %v3978
    %4479 = vmatprep.mubr.bf16.mxu0 %v3295
    %4480 = vmatmul.mubr.bf16.gmra.mrb[0].mxu0 %v3294
    %v4481 = vpop.f32.mrb[0].mxu0
    %v4482 = vadd.f32 %v4369, %v4481
    %v4483 = vpop.f32.mrb[0].mxu0
    %v4484 = vadd.f32 %v4371, %v4483
    %v4485 = vpop.f32.mrb[0].mxu0
    %v4486 = vadd.f32 %v4373, %v4485
    %v4487 = vpop.f32.mrb[0].mxu0
    %v4488 = vadd.f32 %v4375, %v4487
    %4489 = vmatprep.mubr.bf16.mxu0 %v3299
    %4490 = vmatmul.mubr.bf16.gmra.mrb[0].mxu0 %v3298
    %v4491 = vpop.f32.mrb[0].mxu0
    %v4492 = vadd.f32 %v4379, %v4491
    %v4493 = vpop.f32.mrb[0].mxu0
    %v4494 = vadd.f32 %v4381, %v4493
    %v4495 = vpop.f32.mrb[0].mxu0
    %v4496 = vadd.f32 %v4383, %v4495
    %v4497 = vpop.f32.mrb[0].mxu0
    %v4498 = vadd.f32 %v4385, %v4497
    %4499 = vmatprep.mubr.bf16.mxu0 %v3303
    %4500 = vmatmul.mubr.bf16.gmra.mrb[0].mxu0 %v3302
    %v4501 = vpop.f32.mrb[0].mxu0
    %v4502 = vadd.f32 %v4389, %v4501
    %v4503 = vpop.f32.mrb[0].mxu0
    %v4504 = vadd.f32 %v4391, %v4503
    %v4505 = vpop.f32.mrb[0].mxu0
    %v4506 = vadd.f32 %v4393, %v4505
    %v4507 = vpop.f32.mrb[0].mxu0
    %v4508 = vadd.f32 %v4395, %v4507
    %4509 = vmatprep.mubr.bf16.mxu0 %v3307
    %4510 = vmatmul.mubr.bf16.gmra.mrb[0].mxu0 %v3306
    %v4511 = vpop.f32.mrb[0].mxu0
    %v4512 = vadd.f32 %v4399, %v4511
    %v4513 = vpop.f32.mrb[0].mxu0
    %v4514 = vadd.f32 %v4401, %v4513
    %v4515 = vpop.f32.mrb[0].mxu0
    %v4516 = vadd.f32 %v4403, %v4515
    %v4517 = vpop.f32.mrb[0].mxu0
    %v4518 = vadd.f32 %v4405, %v4517
    %4519 = vmatprep.mubr.bf16.mxu0 %v3311
    %4520 = vmatmul.mubr.bf16.gmra.mrb[0].mxu0 %v3310
    %v4521 = vpop.f32.mrb[0].mxu0
    %v4522 = vadd.f32 %v4409, %v4521
    %v4523 = vpop.f32.mrb[0].mxu0
    %v4524 = vadd.f32 %v4411, %v4523
    %v4525 = vpop.f32.mrb[0].mxu0
    %v4526 = vadd.f32 %v4413, %v4525
    %v4527 = vpop.f32.mrb[0].mxu0
    %v4528 = vadd.f32 %v4415, %v4527
    %4529 = vmatprep.mubr.bf16.mxu0 %v3315
    %4530 = vmatmul.mubr.bf16.gmra.mrb[0].mxu0 %v3314
    %v4531 = vpop.f32.mrb[0].mxu0
    %v4532 = vadd.f32 %v4419, %v4531
    %v4533 = vpop.f32.mrb[0].mxu0
    %v4534 = vadd.f32 %v4421, %v4533
    %v4535 = vpop.f32.mrb[0].mxu0
    %v4536 = vadd.f32 %v4423, %v4535
    %v4537 = vpop.f32.mrb[0].mxu0
    %v4538 = vadd.f32 %v4425, %v4537
    %4539 = vmatprep.mubr.bf16.mxu0 %v3319
    %4540 = vmatmul.mubr.bf16.gmra.mrb[0].mxu0 %v3318
    %v4541 = vpop.f32.mrb[0].mxu0
    %v4542 = vadd.f32 %v4429, %v4541
    %v4543 = vpop.f32.mrb[0].mxu0
    %v4544 = vadd.f32 %v4431, %v4543
    %v4545 = vpop.f32.mrb[0].mxu0
    %v4546 = vadd.f32 %v4433, %v4545
    %v4547 = vpop.f32.mrb[0].mxu0
    %v4548 = vadd.f32 %v4435, %v4547
    %4549 = vmatprep.mubr.bf16.mxu0 %v3323
    %4550 = vmatmul.mubr.bf16.gmra.mrb[0].mxu0 %v3322
    %v4551 = vpop.f32.mrb[0].mxu0
    %v4552 = vadd.f32 %v4439, %v4551
    %v4553 = vpop.f32.mrb[0].mxu0
    %v4554 = vadd.f32 %v4441, %v4553
    %v4555 = vpop.f32.mrb[0].mxu0
    %v4556 = vadd.f32 %v4443, %v4555
    %v4557 = vpop.f32.mrb[0].mxu0
    %v4558 = vadd.f32 %v4445, %v4557
    %4559 = vdwg.mxu0
    %v4560 = vadd.f32 %v4256, %v4260
    %v4561 = vadd.f32 %v4560, %v4266
    %v4562 = vadd.f32 %v4561, %v4270
    %v4563 = vadd.f32 %v4562, %v4276
    %v4564 = vadd.f32 %v4563, %v4280
    %v4565 = vadd.f32 %v4564, %v4286
    %v4566 = vadd.f32 %v4565, %v4290
    %v4567 = vadd.f32 %v4566, %v4296
    %v4568 = vadd.f32 %v4567, %v4300
    %v4569 = vadd.f32 %v4568, %v4306
    %v4570 = vadd.f32 %v4569, %v4310
    %v4571 = vadd.f32 %v4570, %v4316
    %v4572 = vadd.f32 %v4571, %v4320
    %v4573 = vadd.f32 %v4572, %v4326
    %v4574 = vadd.f32 %v4573, %v4330
    %v4575 = vrot.slane %v4574, 4
    %v4576 = vadd.f32 %v4574, %v4575
    %v4577 = vrot.slane %v4576, 2
    %v4578 = vadd.f32 %v4576, %v4577
    %v4579 = vrot.slane %v4578, 1
    %v4580 = vadd.f32 %v4578, %v4579
    %v4581 = vadd.f32 %v4258, %v4262
    %v4582 = vadd.f32 %v4581, %v4268
    %v4583 = vadd.f32 %v4582, %v4272
    %v4584 = vadd.f32 %v4583, %v4278
    %v4585 = vadd.f32 %v4584, %v4282
    %v4586 = vadd.f32 %v4585, %v4288
    %v4587 = vadd.f32 %v4586, %v4292
    %v4588 = vadd.f32 %v4587, %v4298
    %v4589 = vadd.f32 %v4588, %v4302
    %v4590 = vadd.f32 %v4589, %v4308
    %v4591 = vadd.f32 %v4590, %v4312
    %v4592 = vadd.f32 %v4591, %v4318
    %v4593 = vadd.f32 %v4592, %v4322
    %v4594 = vadd.f32 %v4593, %v4328
    %v4595 = vadd.f32 %v4594, %v4332
    %v4596 = vrot.slane %v4595, 4
    %v4597 = vadd.f32 %v4595, %v4596
    %v4598 = vrot.slane %v4597, 2
    %v4599 = vadd.f32 %v4597, %v4598
    %v4600 = vrot.slane %v4599, 1
    %v4601 = vadd.f32 %v4599, %v4600
    %v4602 = vadd.f32 %v4482, %v4486
    %v4603 = vadd.f32 %v4602, %v4492
    %v4604 = vadd.f32 %v4603, %v4496
    %v4605 = vadd.f32 %v4604, %v4502
    %v4606 = vadd.f32 %v4605, %v4506
    %v4607 = vadd.f32 %v4606, %v4512
    %v4608 = vadd.f32 %v4607, %v4516
    %v4609 = vadd.f32 %v4608, %v4522
    %v4610 = vadd.f32 %v4609, %v4526
    %v4611 = vadd.f32 %v4610, %v4532
    %v4612 = vadd.f32 %v4611, %v4536
    %v4613 = vadd.f32 %v4612, %v4542
    %v4614 = vadd.f32 %v4613, %v4546
    %v4615 = vadd.f32 %v4614, %v4552
    %v4616 = vadd.f32 %v4615, %v4556
    %v4617 = vrot.slane %v4616, 4
    %v4618 = vadd.f32 %v4616, %v4617
    %v4619 = vrot.slane %v4618, 2
    %v4620 = vadd.f32 %v4618, %v4619
    %v4621 = vrot.slane %v4620, 1
    %v4622 = vadd.f32 %v4620, %v4621
    %v4623 = vadd.f32 %v4484, %v4488
    %v4624 = vadd.f32 %v4623, %v4494
    %v4625 = vadd.f32 %v4624, %v4498
    %v4626 = vadd.f32 %v4625, %v4504
    %v4627 = vadd.f32 %v4626, %v4508
    %v4628 = vadd.f32 %v4627, %v4514
    %v4629 = vadd.f32 %v4628, %v4518
    %v4630 = vadd.f32 %v4629, %v4524
    %v4631 = vadd.f32 %v4630, %v4528
    %v4632 = vadd.f32 %v4631, %v4534
    %v4633 = vadd.f32 %v4632, %v4538
    %v4634 = vadd.f32 %v4633, %v4544
    %v4635 = vadd.f32 %v4634, %v4548
    %v4636 = vadd.f32 %v4635, %v4554
    %v4637 = vadd.f32 %v4636, %v4558
    %v4638 = vrot.slane %v4637, 4
    %v4639 = vadd.f32 %v4637, %v4638
    %v4640 = vrot.slane %v4639, 2
    %v4641 = vadd.f32 %v4639, %v4640
    %v4642 = vrot.slane %v4641, 1
    %v4643 = vadd.f32 %v4641, %v4642
    %v4644 = vmul.f32 %v4580, 0.0078125
    %v4645 = vmul.f32 %v4601, 0.0078125
    %v4646 = vmul.f32 %v4622, 0.0078125
    %v4647 = vmul.f32 %v4643, 0.0078125
    %v4648 = vmul.f32 %v4256, %v4256
    %v4649 = vmul.f32 %v4258, %v4258
    %v4650 = vmul.f32 %v4482, %v4482
    %v4651 = vmul.f32 %v4484, %v4484
    %v4652 = vmul.f32 %v4260, %v4260
    %v4653 = vmul.f32 %v4262, %v4262
    %v4654 = vmul.f32 %v4486, %v4486
    %v4655 = vmul.f32 %v4488, %v4488
    %v4656 = vmul.f32 %v4266, %v4266
    %v4657 = vmul.f32 %v4268, %v4268
    %v4658 = vmul.f32 %v4492, %v4492
    %v4659 = vmul.f32 %v4494, %v4494
    %v4660 = vmul.f32 %v4270, %v4270
    %v4661 = vmul.f32 %v4272, %v4272
    %v4662 = vmul.f32 %v4496, %v4496
    %v4663 = vmul.f32 %v4498, %v4498
    %v4664 = vmul.f32 %v4276, %v4276
    %v4665 = vmul.f32 %v4278, %v4278
    %v4666 = vmul.f32 %v4502, %v4502
    %v4667 = vmul.f32 %v4504, %v4504
    %v4668 = vmul.f32 %v4280, %v4280
    %v4669 = vmul.f32 %v4282, %v4282
    %v4670 = vmul.f32 %v4506, %v4506
    %v4671 = vmul.f32 %v4508, %v4508
    %v4672 = vmul.f32 %v4286, %v4286
    %v4673 = vmul.f32 %v4288, %v4288
    %v4674 = vmul.f32 %v4512, %v4512
    %v4675 = vmul.f32 %v4514, %v4514
    %v4676 = vmul.f32 %v4290, %v4290
    %v4677 = vmul.f32 %v4292, %v4292
    %v4678 = vmul.f32 %v4516, %v4516
    %v4679 = vmul.f32 %v4518, %v4518
    %v4680 = vmul.f32 %v4296, %v4296
    %v4681 = vmul.f32 %v4298, %v4298
    %v4682 = vmul.f32 %v4522, %v4522
    %v4683 = vmul.f32 %v4524, %v4524
    %v4684 = vmul.f32 %v4300, %v4300
    %v4685 = vmul.f32 %v4302, %v4302
    %v4686 = vmul.f32 %v4526, %v4526
    %v4687 = vmul.f32 %v4528, %v4528
    %v4688 = vmul.f32 %v4306, %v4306
    %v4689 = vmul.f32 %v4308, %v4308
    %v4690 = vmul.f32 %v4532, %v4532
    %v4691 = vmul.f32 %v4534, %v4534
    %v4692 = vmul.f32 %v4310, %v4310
    %v4693 = vmul.f32 %v4312, %v4312
    %v4694 = vmul.f32 %v4536, %v4536
    %v4695 = vmul.f32 %v4538, %v4538
    %v4696 = vmul.f32 %v4316, %v4316
    %v4697 = vmul.f32 %v4318, %v4318
    %v4698 = vmul.f32 %v4542, %v4542
    %v4699 = vmul.f32 %v4544, %v4544
    %v4700 = vmul.f32 %v4320, %v4320
    %v4701 = vmul.f32 %v4322, %v4322
    %v4702 = vmul.f32 %v4546, %v4546
    %v4703 = vmul.f32 %v4548, %v4548
    %v4704 = vmul.f32 %v4326, %v4326
    %v4705 = vmul.f32 %v4328, %v4328
    %v4706 = vmul.f32 %v4552, %v4552
    %v4707 = vmul.f32 %v4554, %v4554
    %v4708 = vmul.f32 %v4330, %v4330
    %v4709 = vmul.f32 %v4332, %v4332
    %v4710 = vmul.f32 %v4556, %v4556
    %v4711 = vmul.f32 %v4558, %v4558
    %v4712 = vadd.f32 %v4648, %v4652
    %v4713 = vadd.f32 %v4712, %v4656
    %v4714 = vadd.f32 %v4713, %v4660
    %v4715 = vadd.f32 %v4714, %v4664
    %v4716 = vadd.f32 %v4715, %v4668
    %v4717 = vadd.f32 %v4716, %v4672
    %v4718 = vadd.f32 %v4717, %v4676
    %v4719 = vadd.f32 %v4718, %v4680
    %v4720 = vadd.f32 %v4719, %v4684
    %v4721 = vadd.f32 %v4720, %v4688
    %v4722 = vadd.f32 %v4721, %v4692
    %v4723 = vadd.f32 %v4722, %v4696
    %v4724 = vadd.f32 %v4723, %v4700
    %v4725 = vadd.f32 %v4724, %v4704
    %v4726 = vadd.f32 %v4725, %v4708
    %v4727 = vrot.slane %v4726, 4
    %v4728 = vadd.f32 %v4726, %v4727
    %v4729 = vrot.slane %v4728, 2
    %v4730 = vadd.f32 %v4728, %v4729
    %v4731 = vrot.slane %v4730, 1
    %v4732 = vadd.f32 %v4730, %v4731
    %v4733 = vadd.f32 %v4649, %v4653
    %v4734 = vadd.f32 %v4733, %v4657
    %v4735 = vadd.f32 %v4734, %v4661
    %v4736 = vadd.f32 %v4735, %v4665
    %v4737 = vadd.f32 %v4736, %v4669
    %v4738 = vadd.f32 %v4737, %v4673
    %v4739 = vadd.f32 %v4738, %v4677
    %v4740 = vadd.f32 %v4739, %v4681
    %v4741 = vadd.f32 %v4740, %v4685
    %v4742 = vadd.f32 %v4741, %v4689
    %v4743 = vadd.f32 %v4742, %v4693
    %v4744 = vadd.f32 %v4743, %v4697
    %v4745 = vadd.f32 %v4744, %v4701
    %v4746 = vadd.f32 %v4745, %v4705
    %v4747 = vadd.f32 %v4746, %v4709
    %v4748 = vrot.slane %v4747, 4
    %v4749 = vadd.f32 %v4747, %v4748
    %v4750 = vrot.slane %v4749, 2
    %v4751 = vadd.f32 %v4749, %v4750
    %v4752 = vrot.slane %v4751, 1
    %v4753 = vadd.f32 %v4751, %v4752
    %v4754 = vadd.f32 %v4650, %v4654
    %v4755 = vadd.f32 %v4754, %v4658
    %v4756 = vadd.f32 %v4755, %v4662
    %v4757 = vadd.f32 %v4756, %v4666
    %v4758 = vadd.f32 %v4757, %v4670
    %v4759 = vadd.f32 %v4758, %v4674
    %v4760 = vadd.f32 %v4759, %v4678
    %v4761 = vadd.f32 %v4760, %v4682
    %v4762 = vadd.f32 %v4761, %v4686
    %v4763 = vadd.f32 %v4762, %v4690
    %v4764 = vadd.f32 %v4763, %v4694
    %v4765 = vadd.f32 %v4764, %v4698
    %v4766 = vadd.f32 %v4765, %v4702
    %v4767 = vadd.f32 %v4766, %v4706
    %v4768 = vadd.f32 %v4767, %v4710
    %v4769 = vrot.slane %v4768, 4
    %v4770 = vadd.f32 %v4768, %v4769
    %v4771 = vrot.slane %v4770, 2
    %v4772 = vadd.f32 %v4770, %v4771
    %v4773 = vrot.slane %v4772, 1
    %v4774 = vadd.f32 %v4772, %v4773
    %v4775 = vadd.f32 %v4651, %v4655
    %v4776 = vadd.f32 %v4775, %v4659
    %v4777 = vadd.f32 %v4776, %v4663
    %v4778 = vadd.f32 %v4777, %v4667
    %v4779 = vadd.f32 %v4778, %v4671
    %v4780 = vadd.f32 %v4779, %v4675
    %v4781 = vadd.f32 %v4780, %v4679
    %v4782 = vadd.f32 %v4781, %v4683
    %v4783 = vadd.f32 %v4782, %v4687
    %v4784 = vadd.f32 %v4783, %v4691
    %v4785 = vadd.f32 %v4784, %v4695
    %v4786 = vadd.f32 %v4785, %v4699
    %v4787 = vadd.f32 %v4786, %v4703
    %v4788 = vadd.f32 %v4787, %v4707
    %v4789 = vadd.f32 %v4788, %v4711
    %v4790 = vrot.slane %v4789, 4
    %v4791 = vadd.f32 %v4789, %v4790
    %v4792 = vrot.slane %v4791, 2
    %v4793 = vadd.f32 %v4791, %v4792
    %v4794 = vrot.slane %v4793, 1
    %v4795 = vadd.f32 %v4793, %v4794
    %v4796 = vmul.f32 %v4732, 0.0078125
    %v4797 = vmul.f32 %v4753, 0.0078125
    %v4798 = vmul.f32 %v4774, 0.0078125
    %v4799 = vmul.f32 %v4795, 0.0078125
    %v4800 = vsub.f32 %v4256, %v4644
    %v4801 = vsub.f32 %v4258, %v4645
    %v4802 = vsub.f32 %v4482, %v4646
    %v4803 = vsub.f32 %v4484, %v4647
    %v4804 = vsub.f32 %v4260, %v4644
    %v4805 = vsub.f32 %v4262, %v4645
    %v4806 = vsub.f32 %v4486, %v4646
    %v4807 = vsub.f32 %v4488, %v4647
    %v4808 = vsub.f32 %v4266, %v4644
    %v4809 = vsub.f32 %v4268, %v4645
    %v4810 = vsub.f32 %v4492, %v4646
    %v4811 = vsub.f32 %v4494, %v4647
    %v4812 = vsub.f32 %v4270, %v4644
    %v4813 = vsub.f32 %v4272, %v4645
    %v4814 = vsub.f32 %v4496, %v4646
    %v4815 = vsub.f32 %v4498, %v4647
    %v4816 = vsub.f32 %v4276, %v4644
    %v4817 = vsub.f32 %v4278, %v4645
    %v4818 = vsub.f32 %v4502, %v4646
    %v4819 = vsub.f32 %v4504, %v4647
    %v4820 = vsub.f32 %v4280, %v4644
    %v4821 = vsub.f32 %v4282, %v4645
    %v4822 = vsub.f32 %v4506, %v4646
    %v4823 = vsub.f32 %v4508, %v4647
    %v4824 = vsub.f32 %v4286, %v4644
    %v4825 = vsub.f32 %v4288, %v4645
    %v4826 = vsub.f32 %v4512, %v4646
    %v4827 = vsub.f32 %v4514, %v4647
    %v4828 = vsub.f32 %v4290, %v4644
    %v4829 = vsub.f32 %v4292, %v4645
    %v4830 = vsub.f32 %v4516, %v4646
    %v4831 = vsub.f32 %v4518, %v4647
    %v4832 = vsub.f32 %v4296, %v4644
    %v4833 = vsub.f32 %v4298, %v4645
    %v4834 = vsub.f32 %v4522, %v4646
    %v4835 = vsub.f32 %v4524, %v4647
    %v4836 = vsub.f32 %v4300, %v4644
    %v4837 = vsub.f32 %v4302, %v4645
    %v4838 = vsub.f32 %v4526, %v4646
    %v4839 = vsub.f32 %v4528, %v4647
    %v4840 = vsub.f32 %v4306, %v4644
    %v4841 = vsub.f32 %v4308, %v4645
    %v4842 = vsub.f32 %v4532, %v4646
    %v4843 = vsub.f32 %v4534, %v4647
    %v4844 = vsub.f32 %v4310, %v4644
    %v4845 = vsub.f32 %v4312, %v4645
    %v4846 = vsub.f32 %v4536, %v4646
    %v4847 = vsub.f32 %v4538, %v4647
    %v4848 = vsub.f32 %v4316, %v4644
    %v4849 = vsub.f32 %v4318, %v4645
    %v4850 = vsub.f32 %v4542, %v4646
    %v4851 = vsub.f32 %v4544, %v4647
    %v4852 = vsub.f32 %v4320, %v4644
    %v4853 = vsub.f32 %v4322, %v4645
    %v4854 = vsub.f32 %v4546, %v4646
    %v4855 = vsub.f32 %v4548, %v4647
    %v4856 = vsub.f32 %v4326, %v4644
    %v4857 = vsub.f32 %v4328, %v4645
    %v4858 = vsub.f32 %v4552, %v4646
    %v4859 = vsub.f32 %v4554, %v4647
    %v4860 = vsub.f32 %v4330, %v4644
    %v4861 = vsub.f32 %v4332, %v4645
    %v4862 = vsub.f32 %v4556, %v4646
    %v4863 = vsub.f32 %v4558, %v4647
    %v4864 = vmul.f32 %v4644, %v4644
    %v4865 = vmul.f32 %v4645, %v4645
    %v4866 = vmul.f32 %v4646, %v4646
    %v4867 = vmul.f32 %v4647, %v4647
    %v4868 = vsub.f32 %v4796, %v4864
    %v4869 = vsub.f32 %v4797, %v4865
    %v4870 = vsub.f32 %v4798, %v4866
    %v4871 = vsub.f32 %v4799, %v4867
    %v4872 = vadd.f32 %v4868, 1e-05
    %v4873 = vadd.f32 %v4869, 1e-05
    %v4874 = vadd.f32 %v4870, 1e-05
    %v4875 = vadd.f32 %v4871, 1e-05
    %v4876 = vrsqrt.pop %v4872
    %v4877 = vrsqrt.pop %v4873
    %v4878 = vrsqrt.pop %v4874
    %v4879 = vrsqrt.pop %v4875
    %v4880 = vmul.f32 %v4800, %v4876
    %v4881 = vmul.f32 %v4801, %v4877
    %v4882 = vmul.f32 %v4802, %v4878
    %v4883 = vmul.f32 %v4803, %v4879
    %v4884 = vmul.f32 %v4804, %v4876
    %v4885 = vmul.f32 %v4805, %v4877
    %v4886 = vmul.f32 %v4806, %v4878
    %v4887 = vmul.f32 %v4807, %v4879
    %v4888 = vmul.f32 %v4808, %v4876
    %v4889 = vmul.f32 %v4809, %v4877
    %v4890 = vmul.f32 %v4810, %v4878
    %v4891 = vmul.f32 %v4811, %v4879
    %v4892 = vmul.f32 %v4812, %v4876
    %v4893 = vmul.f32 %v4813, %v4877
    %v4894 = vmul.f32 %v4814, %v4878
    %v4895 = vmul.f32 %v4815, %v4879
    %v4896 = vmul.f32 %v4816, %v4876
    %v4897 = vmul.f32 %v4817, %v4877
    %v4898 = vmul.f32 %v4818, %v4878
    %v4899 = vmul.f32 %v4819, %v4879
    %v4900 = vmul.f32 %v4820, %v4876
    %v4901 = vmul.f32 %v4821, %v4877
    %v4902 = vmul.f32 %v4822, %v4878
    %v4903 = vmul.f32 %v4823, %v4879
    %v4904 = vmul.f32 %v4824, %v4876
    %v4905 = vmul.f32 %v4825, %v4877
    %v4906 = vmul.f32 %v4826, %v4878
    %v4907 = vmul.f32 %v4827, %v4879
    %v4908 = vmul.f32 %v4828, %v4876
    %v4909 = vmul.f32 %v4829, %v4877
    %v4910 = vmul.f32 %v4830, %v4878
    %v4911 = vmul.f32 %v4831, %v4879
    %v4912 = vmul.f32 %v4832, %v4876
    %v4913 = vmul.f32 %v4833, %v4877
    %v4914 = vmul.f32 %v4834, %v4878
    %v4915 = vmul.f32 %v4835, %v4879
    %v4916 = vmul.f32 %v4836, %v4876
    %v4917 = vmul.f32 %v4837, %v4877
    %v4918 = vmul.f32 %v4838, %v4878
    %v4919 = vmul.f32 %v4839, %v4879
    %v4920 = vmul.f32 %v4840, %v4876
    %v4921 = vmul.f32 %v4841, %v4877
    %v4922 = vmul.f32 %v4842, %v4878
    %v4923 = vmul.f32 %v4843, %v4879
    %v4924 = vmul.f32 %v4844, %v4876
    %v4925 = vmul.f32 %v4845, %v4877
    %v4926 = vmul.f32 %v4846, %v4878
    %v4927 = vmul.f32 %v4847, %v4879
    %v4928 = vmul.f32 %v4848, %v4876
    %v4929 = vmul.f32 %v4849, %v4877
    %v4930 = vmul.f32 %v4850, %v4878
    %v4931 = vmul.f32 %v4851, %v4879
    %v4932 = vmul.f32 %v4852, %v4876
    %v4933 = vmul.f32 %v4853, %v4877
    %v4934 = vmul.f32 %v4854, %v4878
    %v4935 = vmul.f32 %v4855, %v4879
    %v4936 = vmul.f32 %v4856, %v4876
    %v4937 = vmul.f32 %v4857, %v4877
    %v4938 = vmul.f32 %v4858, %v4878
    %v4939 = vmul.f32 %v4859, %v4879
    %v4940 = vmul.f32 %v4860, %v4876
    %v4941 = vmul.f32 %v4861, %v4877
    %v4942 = vmul.f32 %v4862, %v4878
    %v4943 = vmul.f32 %v4863, %v4879
    %v4944 = vlaneseq
    %v4945 = vshrl.u32 %v4944, 7
    %v4946 = vsub.s32 4, %v4945
    %v4947 = vrot.slane %v43, %v4946
    %v4948 = vlaneseq
    %v4949 = vshrl.u32 %v4948, 7
    %v4950 = vsub.s32 4, %v4949
    %v4951 = vrot.slane %v44, %v4950
    %v4952 = vlaneseq
    %v4953 = vshrl.u32 %v4952, 7
    %v4954 = vsub.s32 4, %v4953
    %v4955 = vrot.slane %v45, %v4954
    %v4956 = vlaneseq
    %v4957 = vshrl.u32 %v4956, 7
    %v4958 = vsub.s32 4, %v4957
    %v4959 = vrot.slane %v46, %v4958
    %v4960 = vmul.f32 %v4880, %v4947
    %v4961 = vmul.f32 %v4881, %v4951
    %v4962 = vmul.f32 %v4882, %v4955
    %v4963 = vmul.f32 %v4883, %v4959
    %v4964 = vmul.f32 %v4884, %v4947
    %v4965 = vmul.f32 %v4885, %v4951
    %v4966 = vmul.f32 %v4886, %v4955
    %v4967 = vmul.f32 %v4887, %v4959
    %v4968 = vmul.f32 %v4888, %v4947
    %v4969 = vmul.f32 %v4889, %v4951
    %v4970 = vmul.f32 %v4890, %v4955
    %v4971 = vmul.f32 %v4891, %v4959
    %v4972 = vmul.f32 %v4892, %v4947
    %v4973 = vmul.f32 %v4893, %v4951
    %v4974 = vmul.f32 %v4894, %v4955
    %v4975 = vmul.f32 %v4895, %v4959
    %v4976 = vmul.f32 %v4896, %v4947
    %v4977 = vmul.f32 %v4897, %v4951
    %v4978 = vmul.f32 %v4898, %v4955
    %v4979 = vmul.f32 %v4899, %v4959
    %v4980 = vmul.f32 %v4900, %v4947
    %v4981 = vmul.f32 %v4901, %v4951
    %v4982 = vmul.f32 %v4902, %v4955
    %v4983 = vmul.f32 %v4903, %v4959
    %v4984 = vmul.f32 %v4904, %v4947
    %v4985 = vmul.f32 %v4905, %v4951
    %v4986 = vmul.f32 %v4906, %v4955
    %v4987 = vmul.f32 %v4907, %v4959
    %v4988 = vmul.f32 %v4908, %v4947
    %v4989 = vmul.f32 %v4909, %v4951
    %v4990 = vmul.f32 %v4910, %v4955
    %v4991 = vmul.f32 %v4911, %v4959
    %v4992 = vmul.f32 %v4912, %v4947
    %v4993 = vmul.f32 %v4913, %v4951
    %v4994 = vmul.f32 %v4914, %v4955
    %v4995 = vmul.f32 %v4915, %v4959
    %v4996 = vmul.f32 %v4916, %v4947
    %v4997 = vmul.f32 %v4917, %v4951
    %v4998 = vmul.f32 %v4918, %v4955
    %v4999 = vmul.f32 %v4919, %v4959
    %v5000 = vmul.f32 %v4920, %v4947
    %v5001 = vmul.f32 %v4921, %v4951
    %v5002 = vmul.f32 %v4922, %v4955
    %v5003 = vmul.f32 %v4923, %v4959
    %v5004 = vmul.f32 %v4924, %v4947
    %v5005 = vmul.f32 %v4925, %v4951
    %v5006 = vmul.f32 %v4926, %v4955
    %v5007 = vmul.f32 %v4927, %v4959
    %v5008 = vmul.f32 %v4928, %v4947
    %v5009 = vmul.f32 %v4929, %v4951
    %v5010 = vmul.f32 %v4930, %v4955
    %v5011 = vmul.f32 %v4931, %v4959
    %v5012 = vmul.f32 %v4932, %v4947
    %v5013 = vmul.f32 %v4933, %v4951
    %v5014 = vmul.f32 %v4934, %v4955
    %v5015 = vmul.f32 %v4935, %v4959
    %v5016 = vmul.f32 %v4936, %v4947
    %v5017 = vmul.f32 %v4937, %v4951
    %v5018 = vmul.f32 %v4938, %v4955
    %v5019 = vmul.f32 %v4939, %v4959
    %v5020 = vmul.f32 %v4940, %v4947
    %v5021 = vmul.f32 %v4941, %v4951
    %v5022 = vmul.f32 %v4942, %v4955
    %v5023 = vmul.f32 %v4943, %v4959
    %v5024 = vlaneseq
    %v5025 = vshrl.u32 %v5024, 7
    %v5026 = vsub.s32 5, %v5025
    %v5027 = vrot.slane %v43, %v5026
    %v5028 = vlaneseq
    %v5029 = vshrl.u32 %v5028, 7
    %v5030 = vsub.s32 5, %v5029
    %v5031 = vrot.slane %v44, %v5030
    %v5032 = vlaneseq
    %v5033 = vshrl.u32 %v5032, 7
    %v5034 = vsub.s32 5, %v5033
    %v5035 = vrot.slane %v45, %v5034
    %v5036 = vlaneseq
    %v5037 = vshrl.u32 %v5036, 7
    %v5038 = vsub.s32 5, %v5037
    %v5039 = vrot.slane %v46, %v5038
    %v5040 = vadd.f32 %v4960, %v5027
    %v5041 = vadd.f32 %v4961, %v5031
    %v5042 = vadd.f32 %v4962, %v5035
    %v5043 = vadd.f32 %v4963, %v5039
    %v5044 = vadd.f32 %v4964, %v5027
    %v5045 = vadd.f32 %v4965, %v5031
    %v5046 = vadd.f32 %v4966, %v5035
    %v5047 = vadd.f32 %v4967, %v5039
    %v5048 = vadd.f32 %v4968, %v5027
    %v5049 = vadd.f32 %v4969, %v5031
    %v5050 = vadd.f32 %v4970, %v5035
    %v5051 = vadd.f32 %v4971, %v5039
    %v5052 = vadd.f32 %v4972, %v5027
    %v5053 = vadd.f32 %v4973, %v5031
    %v5054 = vadd.f32 %v4974, %v5035
    %v5055 = vadd.f32 %v4975, %v5039
    %v5056 = vadd.f32 %v4976, %v5027
    %v5057 = vadd.f32 %v4977, %v5031
    %v5058 = vadd.f32 %v4978, %v5035
    %v5059 = vadd.f32 %v4979, %v5039
    %v5060 = vadd.f32 %v4980, %v5027
    %v5061 = vadd.f32 %v4981, %v5031
    %v5062 = vadd.f32 %v4982, %v5035
    %v5063 = vadd.f32 %v4983, %v5039
    %v5064 = vadd.f32 %v4984, %v5027
    %v5065 = vadd.f32 %v4985, %v5031
    %v5066 = vadd.f32 %v4986, %v5035
    %v5067 = vadd.f32 %v4987, %v5039
    %v5068 = vadd.f32 %v4988, %v5027
    %v5069 = vadd.f32 %v4989, %v5031
    %v5070 = vadd.f32 %v4990, %v5035
    %v5071 = vadd.f32 %v4991, %v5039
    %v5072 = vadd.f32 %v4992, %v5027
    %v5073 = vadd.f32 %v4993, %v5031
    %v5074 = vadd.f32 %v4994, %v5035
    %v5075 = vadd.f32 %v4995, %v5039
    %v5076 = vadd.f32 %v4996, %v5027
    %v5077 = vadd.f32 %v4997, %v5031
    %v5078 = vadd.f32 %v4998, %v5035
    %v5079 = vadd.f32 %v4999, %v5039
    %v5080 = vadd.f32 %v5000, %v5027
    %v5081 = vadd.f32 %v5001, %v5031
    %v5082 = vadd.f32 %v5002, %v5035
    %v5083 = vadd.f32 %v5003, %v5039
    %v5084 = vadd.f32 %v5004, %v5027
    %v5085 = vadd.f32 %v5005, %v5031
    %v5086 = vadd.f32 %v5006, %v5035
    %v5087 = vadd.f32 %v5007, %v5039
    %v5088 = vadd.f32 %v5008, %v5027
    %v5089 = vadd.f32 %v5009, %v5031
    %v5090 = vadd.f32 %v5010, %v5035
    %v5091 = vadd.f32 %v5011, %v5039
    %v5092 = vadd.f32 %v5012, %v5027
    %v5093 = vadd.f32 %v5013, %v5031
    %v5094 = vadd.f32 %v5014, %v5035
    %v5095 = vadd.f32 %v5015, %v5039
    %v5096 = vadd.f32 %v5016, %v5027
    %v5097 = vadd.f32 %v5017, %v5031
    %v5098 = vadd.f32 %v5018, %v5035
    %v5099 = vadd.f32 %v5019, %v5039
    %v5100 = vadd.f32 %v5020, %v5027
    %v5101 = vadd.f32 %v5021, %v5031
    %v5102 = vadd.f32 %v5022, %v5035
    %v5103 = vadd.f32 %v5023, %v5039
    %v5104 = vmax.f32 %v5040, 0.0
    %v5105 = vmax.f32 %v5041, 0.0
    %v5106 = vmax.f32 %v5042, 0.0
    %v5107 = vmax.f32 %v5043, 0.0
    %v5108 = vmax.f32 %v5044, 0.0
    %v5109 = vmax.f32 %v5045, 0.0
    %v5110 = vmax.f32 %v5046, 0.0
    %v5111 = vmax.f32 %v5047, 0.0
    %v5112 = vmax.f32 %v5048, 0.0
    %v5113 = vmax.f32 %v5049, 0.0
    %v5114 = vmax.f32 %v5050, 0.0
    %v5115 = vmax.f32 %v5051, 0.0
    %v5116 = vmax.f32 %v5052, 0.0
    %v5117 = vmax.f32 %v5053, 0.0
    %v5118 = vmax.f32 %v5054, 0.0
    %v5119 = vmax.f32 %v5055, 0.0
    %v5120 = vmax.f32 %v5056, 0.0
    %v5121 = vmax.f32 %v5057, 0.0
    %v5122 = vmax.f32 %v5058, 0.0
    %v5123 = vmax.f32 %v5059, 0.0
    %v5124 = vmax.f32 %v5060, 0.0
    %v5125 = vmax.f32 %v5061, 0.0
    %v5126 = vmax.f32 %v5062, 0.0
    %v5127 = vmax.f32 %v5063, 0.0
    %v5128 = vmax.f32 %v5064, 0.0
    %v5129 = vmax.f32 %v5065, 0.0
    %v5130 = vmax.f32 %v5066, 0.0
    %v5131 = vmax.f32 %v5067, 0.0
    %v5132 = vmax.f32 %v5068, 0.0
    %v5133 = vmax.f32 %v5069, 0.0
    %v5134 = vmax.f32 %v5070, 0.0
    %v5135 = vmax.f32 %v5071, 0.0
    %v5136 = vmax.f32 %v5072, 0.0
    %v5137 = vmax.f32 %v5073, 0.0
    %v5138 = vmax.f32 %v5074, 0.0
    %v5139 = vmax.f32 %v5075, 0.0
    %v5140 = vmax.f32 %v5076, 0.0
    %v5141 = vmax.f32 %v5077, 0.0
    %v5142 = vmax.f32 %v5078, 0.0
    %v5143 = vmax.f32 %v5079, 0.0
    %v5144 = vmax.f32 %v5080, 0.0
    %v5145 = vmax.f32 %v5081, 0.0
    %v5146 = vmax.f32 %v5082, 0.0
    %v5147 = vmax.f32 %v5083, 0.0
    %v5148 = vmax.f32 %v5084, 0.0
    %v5149 = vmax.f32 %v5085, 0.0
    %v5150 = vmax.f32 %v5086, 0.0
    %v5151 = vmax.f32 %v5087, 0.0
    %v5152 = vmax.f32 %v5088, 0.0
    %v5153 = vmax.f32 %v5089, 0.0
    %v5154 = vmax.f32 %v5090, 0.0
    %v5155 = vmax.f32 %v5091, 0.0
    %v5156 = vmax.f32 %v5092, 0.0
    %v5157 = vmax.f32 %v5093, 0.0
    %v5158 = vmax.f32 %v5094, 0.0
    %v5159 = vmax.f32 %v5095, 0.0
    %v5160 = vmax.f32 %v5096, 0.0
    %v5161 = vmax.f32 %v5097, 0.0
    %v5162 = vmax.f32 %v5098, 0.0
    %v5163 = vmax.f32 %v5099, 0.0
    %v5164 = vmax.f32 %v5100, 0.0
    %v5165 = vmax.f32 %v5101, 0.0
    %v5166 = vmax.f32 %v5102, 0.0
    %v5167 = vmax.f32 %v5103, 0.0
    %v5168 = vmul.f32 %v5105, 0.5
    %v5169 = vmul.f32 %v5109, 0.5
    %v5170 = vmul.f32 %v5113, 0.5
    %v5171 = vmul.f32 %v5117, 0.5
    %v5172 = vmul.f32 %v5121, 0.5
    %v5173 = vmul.f32 %v5125, 0.5
    %v5174 = vmul.f32 %v5129, 0.5
    %v5175 = vmul.f32 %v5133, 0.5
    %v5176 = vmul.f32 %v5137, 0.5
    %v5177 = vmul.f32 %v5141, 0.5
    %v5178 = vmul.f32 %v5145, 0.5
    %v5179 = vmul.f32 %v5149, 0.5
    %v5180 = vmul.f32 %v5153, 0.5
    %v5181 = vmul.f32 %v5157, 0.5
    %v5182 = vmul.f32 %v5161, 0.5
    %v5183 = vmul.f32 %v5165, 0.5
    %v5184 = vtanh.pop %v5168
    %v5185 = vtanh.pop %v5169
    %v5186 = vtanh.pop %v5170
    %v5187 = vtanh.pop %v5171
    %v5188 = vtanh.pop %v5172
    %v5189 = vtanh.pop %v5173
    %v5190 = vtanh.pop %v5174
    %v5191 = vtanh.pop %v5175
    %v5192 = vtanh.pop %v5176
    %v5193 = vtanh.pop %v5177
    %v5194 = vtanh.pop %v5178
    %v5195 = vtanh.pop %v5179
    %v5196 = vtanh.pop %v5180
    %v5197 = vtanh.pop %v5181
    %v5198 = vtanh.pop %v5182
    %v5199 = vtanh.pop %v5183
    %v5200 = vadd.f32 %v5184, 1.0
    %v5201 = vadd.f32 %v5185, 1.0
    %v5202 = vadd.f32 %v5186, 1.0
    %v5203 = vadd.f32 %v5187, 1.0
    %v5204 = vadd.f32 %v5188, 1.0
    %v5205 = vadd.f32 %v5189, 1.0
    %v5206 = vadd.f32 %v5190, 1.0
    %v5207 = vadd.f32 %v5191, 1.0
    %v5208 = vadd.f32 %v5192, 1.0
    %v5209 = vadd.f32 %v5193, 1.0
    %v5210 = vadd.f32 %v5194, 1.0
    %v5211 = vadd.f32 %v5195, 1.0
    %v5212 = vadd.f32 %v5196, 1.0
    %v5213 = vadd.f32 %v5197, 1.0
    %v5214 = vadd.f32 %v5198, 1.0
    %v5215 = vadd.f32 %v5199, 1.0
    %v5216 = vmul.f32 %v5200, 0.5
    %v5217 = vmul.f32 %v5201, 0.5
    %v5218 = vmul.f32 %v5202, 0.5
    %v5219 = vmul.f32 %v5203, 0.5
    %v5220 = vmul.f32 %v5204, 0.5
    %v5221 = vmul.f32 %v5205, 0.5
    %v5222 = vmul.f32 %v5206, 0.5
    %v5223 = vmul.f32 %v5207, 0.5
    %v5224 = vmul.f32 %v5208, 0.5
    %v5225 = vmul.f32 %v5209, 0.5
    %v5226 = vmul.f32 %v5210, 0.5
    %v5227 = vmul.f32 %v5211, 0.5
    %v5228 = vmul.f32 %v5212, 0.5
    %v5229 = vmul.f32 %v5213, 0.5
    %v5230 = vmul.f32 %v5214, 0.5
    %v5231 = vmul.f32 %v5215, 0.5
    %v5232 = vmul.f32 %v5216, %v964
    %v5233 = vmul.f32 %v5217, %v965
    %v5234 = vmul.f32 %v5218, %v966
    %v5235 = vmul.f32 %v5219, %v967
    %v5236 = vmul.f32 %v5220, %v968
    %v5237 = vmul.f32 %v5221, %v969
    %v5238 = vmul.f32 %v5222, %v970
    %v5239 = vmul.f32 %v5223, %v971
    %v5240 = vmul.f32 %v5224, %v972
    %v5241 = vmul.f32 %v5225, %v973
    %v5242 = vmul.f32 %v5226, %v974
    %v5243 = vmul.f32 %v5227, %v975
    %v5244 = vmul.f32 %v5228, %v976
    %v5245 = vmul.f32 %v5229, %v977
    %v5246 = vmul.f32 %v5230, %v978
    %v5247 = vmul.f32 %v5231, %v979
    %v5248 = vmul.f32 %v5104, 0.5
    %v5249 = vmul.f32 %v5108, 0.5
    %v5250 = vmul.f32 %v5112, 0.5
    %v5251 = vmul.f32 %v5116, 0.5
    %v5252 = vmul.f32 %v5120, 0.5
    %v5253 = vmul.f32 %v5124, 0.5
    %v5254 = vmul.f32 %v5128, 0.5
    %v5255 = vmul.f32 %v5132, 0.5
    %v5256 = vmul.f32 %v5136, 0.5
    %v5257 = vmul.f32 %v5140, 0.5
    %v5258 = vmul.f32 %v5144, 0.5
    %v5259 = vmul.f32 %v5148, 0.5
    %v5260 = vmul.f32 %v5152, 0.5
    %v5261 = vmul.f32 %v5156, 0.5
    %v5262 = vmul.f32 %v5160, 0.5
    %v5263 = vmul.f32 %v5164, 0.5
    %v5264 = vtanh.pop %v5248
    %v5265 = vtanh.pop %v5249
    %v5266 = vtanh.pop %v5250
    %v5267 = vtanh.pop %v5251
    %v5268 = vtanh.pop %v5252
    %v5269 = vtanh.pop %v5253
    %v5270 = vtanh.pop %v5254
    %v5271 = vtanh.pop %v5255
    %v5272 = vtanh.pop %v5256
    %v5273 = vtanh.pop %v5257
    %v5274 = vtanh.pop %v5258
    %v5275 = vtanh.pop %v5259
    %v5276 = vtanh.pop %v5260
    %v5277 = vtanh.pop %v5261
    %v5278 = vtanh.pop %v5262
    %v5279 = vtanh.pop %v5263
    %v5280 = vadd.f32 %v5264, 1.0
    %v5281 = vadd.f32 %v5265, 1.0
    %v5282 = vadd.f32 %v5266, 1.0
    %v5283 = vadd.f32 %v5267, 1.0
    %v5284 = vadd.f32 %v5268, 1.0
    %v5285 = vadd.f32 %v5269, 1.0
    %v5286 = vadd.f32 %v5270, 1.0
    %v5287 = vadd.f32 %v5271, 1.0
    %v5288 = vadd.f32 %v5272, 1.0
    %v5289 = vadd.f32 %v5273, 1.0
    %v5290 = vadd.f32 %v5274, 1.0
    %v5291 = vadd.f32 %v5275, 1.0
    %v5292 = vadd.f32 %v5276, 1.0
    %v5293 = vadd.f32 %v5277, 1.0
    %v5294 = vadd.f32 %v5278, 1.0
    %v5295 = vadd.f32 %v5279, 1.0
    %v5296 = vmul.f32 %v5280, 0.5
    %v5297 = vmul.f32 %v5281, 0.5
    %v5298 = vmul.f32 %v5282, 0.5
    %v5299 = vmul.f32 %v5283, 0.5
    %v5300 = vmul.f32 %v5284, 0.5
    %v5301 = vmul.f32 %v5285, 0.5
    %v5302 = vmul.f32 %v5286, 0.5
    %v5303 = vmul.f32 %v5287, 0.5
    %v5304 = vmul.f32 %v5288, 0.5
    %v5305 = vmul.f32 %v5289, 0.5
    %v5306 = vmul.f32 %v5290, 0.5
    %v5307 = vmul.f32 %v5291, 0.5
    %v5308 = vmul.f32 %v5292, 0.5
    %v5309 = vmul.f32 %v5293, 0.5
    %v5310 = vmul.f32 %v5294, 0.5
    %v5311 = vmul.f32 %v5295, 0.5
    %v5312 = vtanh.pop %v5107
    %v5313 = vtanh.pop %v5111
    %v5314 = vtanh.pop %v5115
    %v5315 = vtanh.pop %v5119
    %v5316 = vtanh.pop %v5123
    %v5317 = vtanh.pop %v5127
    %v5318 = vtanh.pop %v5131
    %v5319 = vtanh.pop %v5135
    %v5320 = vtanh.pop %v5139
    %v5321 = vtanh.pop %v5143
    %v5322 = vtanh.pop %v5147
    %v5323 = vtanh.pop %v5151
    %v5324 = vtanh.pop %v5155
    %v5325 = vtanh.pop %v5159
    %v5326 = vtanh.pop %v5163
    %v5327 = vtanh.pop %v5167
    %v5328 = vmul.f32 %v5296, %v5312
    %v5329 = vmul.f32 %v5297, %v5313
    %v5330 = vmul.f32 %v5298, %v5314
    %v5331 = vmul.f32 %v5299, %v5315
    %v5332 = vmul.f32 %v5300, %v5316
    %v5333 = vmul.f32 %v5301, %v5317
    %v5334 = vmul.f32 %v5302, %v5318
    %v5335 = vmul.f32 %v5303, %v5319
    %v5336 = vmul.f32 %v5304, %v5320
    %v5337 = vmul.f32 %v5305, %v5321
    %v5338 = vmul.f32 %v5306, %v5322
    %v5339 = vmul.f32 %v5307, %v5323
    %v5340 = vmul.f32 %v5308, %v5324
    %v5341 = vmul.f32 %v5309, %v5325
    %v5342 = vmul.f32 %v5310, %v5326
    %v5343 = vmul.f32 %v5311, %v5327
    %v5344 = vadd.f32 %v5232, %v5328
    %v5345 = vadd.f32 %v5233, %v5329
    %v5346 = vadd.f32 %v5234, %v5330
    %v5347 = vadd.f32 %v5235, %v5331
    %v5348 = vadd.f32 %v5236, %v5332
    %v5349 = vadd.f32 %v5237, %v5333
    %v5350 = vadd.f32 %v5238, %v5334
    %v5351 = vadd.f32 %v5239, %v5335
    %v5352 = vadd.f32 %v5240, %v5336
    %v5353 = vadd.f32 %v5241, %v5337
    %v5354 = vadd.f32 %v5242, %v5338
    %v5355 = vadd.f32 %v5243, %v5339
    %v5356 = vadd.f32 %v5244, %v5340
    %v5357 = vadd.f32 %v5245, %v5341
    %v5358 = vadd.f32 %v5246, %v5342
    %v5359 = vadd.f32 %v5247, %v5343
    %v5360 = vmul.f32 %v5106, 0.5
    %v5361 = vmul.f32 %v5110, 0.5
    %v5362 = vmul.f32 %v5114, 0.5
    %v5363 = vmul.f32 %v5118, 0.5
    %v5364 = vmul.f32 %v5122, 0.5
    %v5365 = vmul.f32 %v5126, 0.5
    %v5366 = vmul.f32 %v5130, 0.5
    %v5367 = vmul.f32 %v5134, 0.5
    %v5368 = vmul.f32 %v5138, 0.5
    %v5369 = vmul.f32 %v5142, 0.5
    %v5370 = vmul.f32 %v5146, 0.5
    %v5371 = vmul.f32 %v5150, 0.5
    %v5372 = vmul.f32 %v5154, 0.5
    %v5373 = vmul.f32 %v5158, 0.5
    %v5374 = vmul.f32 %v5162, 0.5
    %v5375 = vmul.f32 %v5166, 0.5
    %v5376 = vtanh.pop %v5360
    %v5377 = vtanh.pop %v5361
    %v5378 = vtanh.pop %v5362
    %v5379 = vtanh.pop %v5363
    %v5380 = vtanh.pop %v5364
    %v5381 = vtanh.pop %v5365
    %v5382 = vtanh.pop %v5366
    %v5383 = vtanh.pop %v5367
    %v5384 = vtanh.pop %v5368
    %v5385 = vtanh.pop %v5369
    %v5386 = vtanh.pop %v5370
    %v5387 = vtanh.pop %v5371
    %v5388 = vtanh.pop %v5372
    %v5389 = vtanh.pop %v5373
    %v5390 = vtanh.pop %v5374
    %v5391 = vtanh.pop %v5375
    %v5392 = vadd.f32 %v5376, 1.0
    %v5393 = vadd.f32 %v5377, 1.0
    %v5394 = vadd.f32 %v5378, 1.0
    %v5395 = vadd.f32 %v5379, 1.0
    %v5396 = vadd.f32 %v5380, 1.0
    %v5397 = vadd.f32 %v5381, 1.0
    %v5398 = vadd.f32 %v5382, 1.0
    %v5399 = vadd.f32 %v5383, 1.0
    %v5400 = vadd.f32 %v5384, 1.0
    %v5401 = vadd.f32 %v5385, 1.0
    %v5402 = vadd.f32 %v5386, 1.0
    %v5403 = vadd.f32 %v5387, 1.0
    %v5404 = vadd.f32 %v5388, 1.0
    %v5405 = vadd.f32 %v5389, 1.0
    %v5406 = vadd.f32 %v5390, 1.0
    %v5407 = vadd.f32 %v5391, 1.0
    %v5408 = vmul.f32 %v5392, 0.5
    %v5409 = vmul.f32 %v5393, 0.5
    %v5410 = vmul.f32 %v5394, 0.5
    %v5411 = vmul.f32 %v5395, 0.5
    %v5412 = vmul.f32 %v5396, 0.5
    %v5413 = vmul.f32 %v5397, 0.5
    %v5414 = vmul.f32 %v5398, 0.5
    %v5415 = vmul.f32 %v5399, 0.5
    %v5416 = vmul.f32 %v5400, 0.5
    %v5417 = vmul.f32 %v5401, 0.5
    %v5418 = vmul.f32 %v5402, 0.5
    %v5419 = vmul.f32 %v5403, 0.5
    %v5420 = vmul.f32 %v5404, 0.5
    %v5421 = vmul.f32 %v5405, 0.5
    %v5422 = vmul.f32 %v5406, 0.5
    %v5423 = vmul.f32 %v5407, 0.5
    %v5424 = vtanh.pop %v5344
    %v5425 = vtanh.pop %v5345
    %v5426 = vtanh.pop %v5346
    %v5427 = vtanh.pop %v5347
    %v5428 = vtanh.pop %v5348
    %v5429 = vtanh.pop %v5349
    %v5430 = vtanh.pop %v5350
    %v5431 = vtanh.pop %v5351
    %v5432 = vtanh.pop %v5352
    %v5433 = vtanh.pop %v5353
    %v5434 = vtanh.pop %v5354
    %v5435 = vtanh.pop %v5355
    %v5436 = vtanh.pop %v5356
    %v5437 = vtanh.pop %v5357
    %v5438 = vtanh.pop %v5358
    %v5439 = vtanh.pop %v5359
    %v5440 = vmul.f32 %v5408, %v5424
    %v5441 = vmul.f32 %v5409, %v5425
    %v5442 = vmul.f32 %v5410, %v5426
    %v5443 = vmul.f32 %v5411, %v5427
    %v5444 = vmul.f32 %v5412, %v5428
    %v5445 = vmul.f32 %v5413, %v5429
    %v5446 = vmul.f32 %v5414, %v5430
    %v5447 = vmul.f32 %v5415, %v5431
    %v5448 = vmul.f32 %v5416, %v5432
    %v5449 = vmul.f32 %v5417, %v5433
    %v5450 = vmul.f32 %v5418, %v5434
    %v5451 = vmul.f32 %v5419, %v5435
    %v5452 = vmul.f32 %v5420, %v5436
    %v5453 = vmul.f32 %v5421, %v5437
    %v5454 = vmul.f32 %v5422, %v5438
    %v5455 = vmul.f32 %v5423, %v5439
    %5456 = vst [vmem:[#allocation3] sm:$0xff] %v5440
    %5457 = vst [vmem:[#allocation3 + $0x8] sm:$0xff] %v5441
    %5458 = vst [vmem:[#allocation3 + $0x10] sm:$0xff] %v5442
    %5459 = vst [vmem:[#allocation3 + $0x18] sm:$0xff] %v5443
    %5460 = vst [vmem:[#allocation3 + $0x20] sm:$0xff] %v5444
    %5461 = vst [vmem:[#allocation3 + $0x28] sm:$0xff] %v5445
    %5462 = vst [vmem:[#allocation3 + $0x30] sm:$0xff] %v5446
    %5463 = vst [vmem:[#allocation3 + $0x38] sm:$0xff] %v5447
    %5464 = vst [vmem:[#allocation3 + $0x40] sm:$0xff] %v5448
    %5465 = vst [vmem:[#allocation3 + $0x48] sm:$0xff] %v5449
    %5466 = vst [vmem:[#allocation3 + $0x50] sm:$0xff] %v5450
    %5467 = vst [vmem:[#allocation3 + $0x58] sm:$0xff] %v5451
    %5468 = vst [vmem:[#allocation3 + $0x60] sm:$0xff] %v5452
    %5469 = vst [vmem:[#allocation3 + $0x68] sm:$0xff] %v5453
    %5470 = vst [vmem:[#allocation3 + $0x70] sm:$0xff] %v5454
    %5471 = vst [vmem:[#allocation3 + $0x78] sm:$0xff] %v5455
    %5472 = vst [vmem:[#allocation5] sm:$0xff] %v5344
    %5473 = vst [vmem:[#allocation5 + $0x8] sm:$0xff] %v5345
    %5474 = vst [vmem:[#allocation5 + $0x10] sm:$0xff] %v5346
    %5475 = vst [vmem:[#allocation5 + $0x18] sm:$0xff] %v5347
    %5476 = vst [vmem:[#allocation5 + $0x20] sm:$0xff] %v5348
    %5477 = vst [vmem:[#allocation5 + $0x28] sm:$0xff] %v5349
    %5478 = vst [vmem:[#allocation5 + $0x30] sm:$0xff] %v5350
    %5479 = vst [vmem:[#allocation5 + $0x38] sm:$0xff] %v5351
    %5480 = vst [vmem:[#allocation5 + $0x40] sm:$0xff] %v5352
    %5481 = vst [vmem:[#allocation5 + $0x48] sm:$0xff] %v5353
    %5482 = vst [vmem:[#allocation5 + $0x50] sm:$0xff] %v5354
    %5483 = vst [vmem:[#allocation5 + $0x58] sm:$0xff] %v5355
    %5484 = vst [vmem:[#allocation5 + $0x60] sm:$0xff] %v5356
    %5485 = vst [vmem:[#allocation5 + $0x68] sm:$0xff] %v5357
    %5486 = vst [vmem:[#allocation5 + $0x70] sm:$0xff] %v5358
    %5487 = vst [vmem:[#allocation5 + $0x78] sm:$0xff] %v5359
    // Predicated region
    $region46: #{ms_lstm_cell_forward.1} parent=1 // pred_check
      _
    $region47: #{ms_lstm_cell_forward.1} parent=1 // pred_check_branch
      %5489 = sbr.rel (0) target = $region49
    $region48: #{ms_lstm_cell_forward.1} parent=1 // pred_region
      %s5491 = ssub.s32 2048, 2048
      %5492 = vsyncadd [#allocation4], %s5491
      %s5493 = sshll.u32 [#allocation3], 4
      %s5494 = int_to_ptr.vmem [resolvable:$true] %s5493
      %5499 = dma.vmem_to_hbm [thread:$0]  %s5494, 2048, %s11, [#allocation4], 128, 128, 8
    $region49: #{ms_lstm_cell_forward.1} parent=1 // pred_fallthru
      _
    // Predicated region
    $region50: #{ms_lstm_cell_forward.1} parent=1 // pred_check
      _
    $region51: #{ms_lstm_cell_forward.1} parent=1 // pred_check_branch
      %5501 = sbr.rel (0) target = $region53
    $region52: #{ms_lstm_cell_forward.1} parent=1 // pred_region
      %s5503 = ssub.s32 2048, 2048
      %5504 = vsyncadd [#allocation6], %s5503
      %s5505 = sshll.u32 [#allocation5], 4
      %s5506 = int_to_ptr.vmem [resolvable:$true] %s5505
      %5511 = dma.vmem_to_hbm [thread:$0]  %s5506, 2048, %s12, [#allocation6], 128, 128, 8
    $region53: #{ms_lstm_cell_forward.1} parent=1 // pred_fallthru
      _
    // Predicated region
    $region54: #{ms_lstm_cell_forward.1} parent=1 // pred_check
      _
    $region55: #{ms_lstm_cell_forward.1} parent=1 // pred_check_branch
      %5513 = sbr.rel (0) target = $region57
    $region56: #{ms_lstm_cell_forward.1} parent=1 // pred_region
      %5514 = dma.done [#allocation4], 2048
    $region57: #{ms_lstm_cell_forward.1} parent=1 // pred_fallthru
      _
    // Predicated region
    $region58: #{ms_lstm_cell_forward.1} parent=1 // pred_check
      _
    $region59: #{ms_lstm_cell_forward.1} parent=1 // pred_check_branch
      %5516 = sbr.rel (0) target = $region61
    $region60: #{ms_lstm_cell_forward.1} parent=1 // pred_region
      %5517 = dma.done [#allocation6], 2048
    $region61: #{ms_lstm_cell_forward.1} parent=1 // pred_fallthru
      _
    %5518 = vsyncpa [#allocation4], 1
    %5519 = vsyncpa [#allocation6], 1

</llo_original>
